<compile_context>
chip_gen: v7x
topology: tpu7x:2x2x1
jax: 0.10.0
libtpu: 0.0.40
codegen_flags: <defaults>
</compile_context>

<pallas_src>
import functools

import jax
import jax.numpy as jnp
from jax.experimental import pallas as pl
from jax.experimental.pallas import tpu as pltpu


def lstm_kernel(x_ref, w_ih_ref, w_hh_ref, b_ref, w_fc_ref, b_fc_ref, out_ref,
                *, seq_len, hidden_dim):
    B = x_ref.shape[0]
    Din = x_ref.shape[2]
    S = seq_len
    H = hidden_dim

    # ---- Hoisted input projection (parallel over all timesteps) -------------
    # One (B*S, Din) @ (Din, 4H) matmul instead of S tiny (B, Din) matmuls on
    # the serial critical path.
    x_all = x_ref[...].reshape(B * S, Din)                     # rows = b*S + t
    gates_x = (jnp.dot(x_all, w_ih_ref[...],
                       preferred_element_type=jnp.float32)
               + b_ref[...])                                    # (B*S, 4H)
    gates_x = gates_x.reshape(B, S, 4 * H)                      # (B, S, 4H)

    w_hh = w_hh_ref[...]                                        # (H, 4H), load once

    # ---- Serial recurrence, fully unrolled (S small & static) ---------------
    h = jnp.zeros((B, H), jnp.float32)
    c = jnp.zeros((B, H), jnp.float32)
    for t in range(S):
        g = gates_x[:, t, :]                                    # (B, 4H)
        if t > 0:   # h0 == 0 -> the recurrent matmul is a no-op on step 0
            g = g + jnp.dot(h, w_hh, preferred_element_type=jnp.float32)
        i_g = jax.nn.sigmoid(g[:, 0 * H:1 * H])
        f_g = jax.nn.sigmoid(g[:, 1 * H:2 * H])
        g_g = jnp.tanh(g[:, 2 * H:3 * H])
        o_g = jax.nn.sigmoid(g[:, 3 * H:4 * H])
        c = f_g * c + i_g * g_g
        h = o_g * jnp.tanh(c)

    # ---- Final FC on the last timestep's hidden state ------------------------
    out_ref[...] = (jnp.dot(h, w_fc_ref[...],
                            preferred_element_type=jnp.float32)
                    + b_fc_ref[...]).astype(out_ref.dtype)


def lstm_model_forward(x, w_ih, w_hh, b_ih, b_hh, w_fc, b_fc):
    """x: (batch, seq, input_dim) float32. Returns (batch, output_dim)."""
    B, S, Din = x.shape
    H4 = w_ih.shape[0]
    H = H4 // 4
    Dout = w_fc.shape[0]

    # Glue: pre-transpose weights to right-multiply form; fuse the two biases.
    w_ih_t = jnp.transpose(w_ih)                   # (Din, 4H)
    w_hh_t = jnp.transpose(w_hh)                   # (H, 4H)
    b = (b_ih + b_hh).reshape(1, 4 * H)            # (1, 4H)
    w_fc_t = jnp.transpose(w_fc)                   # (H, Dout)
    b_fc_2d = b_fc.reshape(1, Dout)                # (1, Dout)

    kernel = functools.partial(lstm_kernel, seq_len=S, hidden_dim=H)

    out = pl.pallas_call(
        kernel,
        out_shape=jax.ShapeDtypeStruct((B, Dout), jnp.float32),
        grid_spec=pltpu.PrefetchScalarGridSpec(
            num_scalar_prefetch=0,
            grid=(1,),                                            # single step
            in_specs=[
                pl.BlockSpec((B, S, Din), lambda i: (0, 0, 0)),   # whole x, no transpose
                pl.BlockSpec((Din, 4 * H), lambda i: (0, 0)),     # W_ih^T
                pl.BlockSpec((H, 4 * H), lambda i: (0, 0)),       # W_hh^T
                pl.BlockSpec((1, 4 * H), lambda i: (0, 0)),       # fused bias
                pl.BlockSpec((H, Dout), lambda i: (0, 0)),        # W_fc^T
                pl.BlockSpec((1, Dout), lambda i: (0, 0)),        # b_fc
            ],
            out_specs=pl.BlockSpec((B, Dout), lambda i: (0, 0)),
        ),
        compiler_params=pltpu.CompilerParams(
            dimension_semantics=("arbitrary",)),
    )(x, w_ih_t, w_hh_t, b, w_fc_t, b_fc_2d)
    return out


def reference_forward(x, w_ih, w_hh, b_ih, b_hh, w_fc, b_fc):
    """Pure-JAX reference matching torch.nn.LSTM semantics (gate order i,f,g,o)."""
    B, S, Din = x.shape
    H = w_hh.shape[1]

    def step(carry, x_t):
        h, c = carry
        gates = x_t @ w_ih.T + h @ w_hh.T + b_ih + b_hh
        i = jax.nn.sigmoid(gates[:, 0 * H:1 * H])
        f = jax.nn.sigmoid(gates[:, 1 * H:2 * H])
        g = jnp.tanh(gates[:, 2 * H:3 * H])
        o = jax.nn.sigmoid(gates[:, 3 * H:4 * H])
        c = f * c + i * g
        h = o * jnp.tanh(c)
        return (h, c), h

    init = (jnp.zeros((B, H), jnp.float32), jnp.zeros((B, H), jnp.float32))
    (h_last, _), _ = jax.lax.scan(step, init, jnp.transpose(x, (1, 0, 2)))
    return h_last @ w_fc.T + b_fc


if __name__ == "__main__":
    input_dim = 768
    hidden_dim = 128
    output_dim = 1
    batch = 2
    seq = 8

    key = jax.random.PRNGKey(0)
    keys = jax.random.split(key, 8)
    k = 1.0 / jnp.sqrt(hidden_dim)  # PyTorch default init scale

    x = jax.random.normal(keys[0], (batch, seq, input_dim), jnp.float32)
    w_ih = jax.random.uniform(keys[1], (4 * hidden_dim, input_dim), jnp.float32, -k, k)
    w_hh = jax.random.uniform(keys[2], (4 * hidden_dim, hidden_dim), jnp.float32, -k, k)
    b_ih = jax.random.uniform(keys[3], (4 * hidden_dim,), jnp.float32, -k, k)
    b_hh = jax.random.uniform(keys[4], (4 * hidden_dim,), jnp.float32, -k, k)
    w_fc = jax.random.uniform(keys[5], (output_dim, hidden_dim), jnp.float32, -k, k)
    b_fc = jax.random.uniform(keys[6], (output_dim,), jnp.float32, -k, k)

    out = lstm_model_forward(x, w_ih, w_hh, b_ih, b_hh, w_fc, b_fc)
    out = jax.block_until_ready(out)

    ref = reference_forward(x, w_ih, w_hh, b_ih, b_hh, w_fc, b_fc)
    assert out.shape == (batch, output_dim), out.shape
    assert jnp.allclose(out, ref, rtol=1e-4, atol=1e-4), (out, ref)

    print("KERNEL_OK")
</pallas_src>

<mosaic_0001>
module attributes {stable_mosaic.version = 11 : i64} {
  func.func @lstm_kernel(%arg0: i32, %arg1: memref<2x8x768xf32, #tpu.memory_space<vmem>>, %arg2: memref<768x512xf32, #tpu.memory_space<vmem>>, %arg3: memref<128x512xf32, #tpu.memory_space<vmem>>, %arg4: memref<1x512xf32, #tpu.memory_space<vmem>>, %arg5: memref<128x1xf32, #tpu.memory_space<vmem>>, %arg6: memref<1x1xf32, #tpu.memory_space<vmem>>, %arg7: memref<2x1xf32, #tpu.memory_space<vmem>>) attributes {dimension_semantics = [#tpu.dimension_semantics<arbitrary>], iteration_bounds = array<i64: 1>, scalar_prefetch = 0 : i64, scratch_operands = 0 : i64, tpu.core_type = #tpu.core_type<tc>, window_params = [{pipeline_mode = #tpu.pipeline_mode<synchronous>, transform_indices = @transform_0, window_bounds = array<i64: 2, 8, 768>}, {pipeline_mode = #tpu.pipeline_mode<synchronous>, transform_indices = @transform_1, window_bounds = array<i64: 768, 512>}, {pipeline_mode = #tpu.pipeline_mode<synchronous>, transform_indices = @transform_2, window_bounds = array<i64: 128, 512>}, {pipeline_mode = #tpu.pipeline_mode<synchronous>, transform_indices = @transform_3, window_bounds = array<i64: 1, 512>}, {pipeline_mode = #tpu.pipeline_mode<synchronous>, transform_indices = @transform_4, window_bounds = array<i64: 128, 1>}, {pipeline_mode = #tpu.pipeline_mode<synchronous>, transform_indices = @transform_5, window_bounds = array<i64: 1, 1>}, {pipeline_mode = #tpu.pipeline_mode<synchronous>, transform_indices = @transform_6, window_bounds = array<i64: 2, 1>}]} {
    %c0 = arith.constant 0 : index
    %c0_0 = arith.constant 0 : index
    %c0_1 = arith.constant 0 : index
    %0 = vector.load %arg1[%c0, %c0_0, %c0_1] : memref<2x8x768xf32, #tpu.memory_space<vmem>>, vector<2x8x768xf32>
    %1 = vector.shape_cast %0 : vector<2x8x768xf32> to vector<16x768xf32>
    %c0_2 = arith.constant 0 : index
    %c0_3 = arith.constant 0 : index
    %2 = vector.load %arg2[%c0_2, %c0_3] : memref<768x512xf32, #tpu.memory_space<vmem>>, vector<768x512xf32>
    %cst = arith.constant dense<0.000000e+00> : vector<16x512xf32>
    %3 = tpu.matmul %1, %2, %cst {dimension_numbers = #tpu.dot_dimension_numbers<[1], [0], [0], [1], [0, 0, 1, 1], [], []>} : vector<16x768xf32>, vector<768x512xf32>, vector<16x512xf32> -> vector<16x512xf32>
    %c0_4 = arith.constant 0 : index
    %c0_5 = arith.constant 0 : index
    %4 = vector.load %arg4[%c0_4, %c0_5] : memref<1x512xf32, #tpu.memory_space<vmem>>, vector<1x512xf32>
    %5 = vector.broadcast %4 : vector<1x512xf32> to vector<16x512xf32>
    %6 = arith.addf %3, %5 : vector<16x512xf32>
    %7 = vector.shape_cast %6 : vector<16x512xf32> to vector<2x8x512xf32>
    %c0_6 = arith.constant 0 : index
    %c0_7 = arith.constant 0 : index
    %8 = vector.load %arg3[%c0_6, %c0_7] : memref<128x512xf32, #tpu.memory_space<vmem>>, vector<128x512xf32>
    %cst_8 = arith.constant 0.000000e+00 : f32
    %9 = vector.broadcast %cst_8 : f32 to vector<2x128xf32>
    %10 = vector.extract_strided_slice %7 {offsets = [0, 0, 0], sizes = [2, 1, 512], strides = [1, 1, 1]} : vector<2x8x512xf32> to vector<2x1x512xf32>
    %11 = vector.shape_cast %10 : vector<2x1x512xf32> to vector<2x512xf32>
    %12 = vector.extract_strided_slice %11 {offsets = [0, 0], sizes = [2, 128], strides = [1, 1]} : vector<2x512xf32> to vector<2x128xf32>
    %13 = arith.negf %12 : vector<2x128xf32>
    %14 = math.exp %13 : vector<2x128xf32>
    %cst_9 = arith.constant 1.000000e+00 : f32
    %15 = vector.broadcast %cst_9 : f32 to vector<2x128xf32>
    %16 = arith.addf %15, %14 : vector<2x128xf32>
    %17 = arith.divf %15, %16 : vector<2x128xf32>
    %18 = vector.extract_strided_slice %11 {offsets = [0, 128], sizes = [2, 128], strides = [1, 1]} : vector<2x512xf32> to vector<2x128xf32>
    %19 = arith.negf %18 : vector<2x128xf32>
    %20 = math.exp %19 : vector<2x128xf32>
    %cst_10 = arith.constant 1.000000e+00 : f32
    %21 = vector.broadcast %cst_10 : f32 to vector<2x128xf32>
    %22 = arith.addf %21, %20 : vector<2x128xf32>
    %23 = arith.divf %21, %22 : vector<2x128xf32>
    %24 = vector.extract_strided_slice %11 {offsets = [0, 256], sizes = [2, 128], strides = [1, 1]} : vector<2x512xf32> to vector<2x128xf32>
    %25 = math.tanh %24 : vector<2x128xf32>
    %26 = vector.extract_strided_slice %11 {offsets = [0, 384], sizes = [2, 128], strides = [1, 1]} : vector<2x512xf32> to vector<2x128xf32>
    %27 = arith.negf %26 : vector<2x128xf32>
    %28 = math.exp %27 : vector<2x128xf32>
    %cst_11 = arith.constant 1.000000e+00 : f32
    %29 = vector.broadcast %cst_11 : f32 to vector<2x128xf32>
    %30 = arith.addf %29, %28 : vector<2x128xf32>
    %31 = arith.divf %29, %30 : vector<2x128xf32>
    %32 = arith.mulf %23, %9 : vector<2x128xf32>
    %33 = arith.mulf %17, %25 : vector<2x128xf32>
    %34 = arith.addf %32, %33 : vector<2x128xf32>
    %35 = math.tanh %34 : vector<2x128xf32>
    %36 = arith.mulf %31, %35 : vector<2x128xf32>
    %37 = vector.extract_strided_slice %7 {offsets = [0, 1, 0], sizes = [2, 1, 512], strides = [1, 1, 1]} : vector<2x8x512xf32> to vector<2x1x512xf32>
    %38 = vector.shape_cast %37 : vector<2x1x512xf32> to vector<2x512xf32>
    %cst_12 = arith.constant dense<0.000000e+00> : vector<2x512xf32>
    %39 = tpu.matmul %36, %8, %cst_12 {dimension_numbers = #tpu.dot_dimension_numbers<[1], [0], [0], [1], [0, 0, 1, 1], [], []>} : vector<2x128xf32>, vector<128x512xf32>, vector<2x512xf32> -> vector<2x512xf32>
    %40 = arith.addf %38, %39 : vector<2x512xf32>
    %41 = vector.extract_strided_slice %40 {offsets = [0, 0], sizes = [2, 128], strides = [1, 1]} : vector<2x512xf32> to vector<2x128xf32>
    %42 = arith.negf %41 : vector<2x128xf32>
    %43 = math.exp %42 : vector<2x128xf32>
    %cst_13 = arith.constant 1.000000e+00 : f32
    %44 = vector.broadcast %cst_13 : f32 to vector<2x128xf32>
    %45 = arith.addf %44, %43 : vector<2x128xf32>
    %46 = arith.divf %44, %45 : vector<2x128xf32>
    %47 = vector.extract_strided_slice %40 {offsets = [0, 128], sizes = [2, 128], strides = [1, 1]} : vector<2x512xf32> to vector<2x128xf32>
    %48 = arith.negf %47 : vector<2x128xf32>
    %49 = math.exp %48 : vector<2x128xf32>
    %cst_14 = arith.constant 1.000000e+00 : f32
    %50 = vector.broadcast %cst_14 : f32 to vector<2x128xf32>
    %51 = arith.addf %50, %49 : vector<2x128xf32>
    %52 = arith.divf %50, %51 : vector<2x128xf32>
    %53 = vector.extract_strided_slice %40 {offsets = [0, 256], sizes = [2, 128], strides = [1, 1]} : vector<2x512xf32> to vector<2x128xf32>
    %54 = math.tanh %53 : vector<2x128xf32>
    %55 = vector.extract_strided_slice %40 {offsets = [0, 384], sizes = [2, 128], strides = [1, 1]} : vector<2x512xf32> to vector<2x128xf32>
    %56 = arith.negf %55 : vector<2x128xf32>
    %57 = math.exp %56 : vector<2x128xf32>
    %cst_15 = arith.constant 1.000000e+00 : f32
    %58 = vector.broadcast %cst_15 : f32 to vector<2x128xf32>
    %59 = arith.addf %58, %57 : vector<2x128xf32>
    %60 = arith.divf %58, %59 : vector<2x128xf32>
    %61 = arith.mulf %52, %34 : vector<2x128xf32>
    %62 = arith.mulf %46, %54 : vector<2x128xf32>
    %63 = arith.addf %61, %62 : vector<2x128xf32>
    %64 = math.tanh %63 : vector<2x128xf32>
    %65 = arith.mulf %60, %64 : vector<2x128xf32>
    %66 = vector.extract_strided_slice %7 {offsets = [0, 2, 0], sizes = [2, 1, 512], strides = [1, 1, 1]} : vector<2x8x512xf32> to vector<2x1x512xf32>
    %67 = vector.shape_cast %66 : vector<2x1x512xf32> to vector<2x512xf32>
    %cst_16 = arith.constant dense<0.000000e+00> : vector<2x512xf32>
    %68 = tpu.matmul %65, %8, %cst_16 {dimension_numbers = #tpu.dot_dimension_numbers<[1], [0], [0], [1], [0, 0, 1, 1], [], []>} : vector<2x128xf32>, vector<128x512xf32>, vector<2x512xf32> -> vector<2x512xf32>
    %69 = arith.addf %67, %68 : vector<2x512xf32>
    %70 = vector.extract_strided_slice %69 {offsets = [0, 0], sizes = [2, 128], strides = [1, 1]} : vector<2x512xf32> to vector<2x128xf32>
    %71 = arith.negf %70 : vector<2x128xf32>
    %72 = math.exp %71 : vector<2x128xf32>
    %cst_17 = arith.constant 1.000000e+00 : f32
    %73 = vector.broadcast %cst_17 : f32 to vector<2x128xf32>
    %74 = arith.addf %73, %72 : vector<2x128xf32>
    %75 = arith.divf %73, %74 : vector<2x128xf32>
    %76 = vector.extract_strided_slice %69 {offsets = [0, 128], sizes = [2, 128], strides = [1, 1]} : vector<2x512xf32> to vector<2x128xf32>
    %77 = arith.negf %76 : vector<2x128xf32>
    %78 = math.exp %77 : vector<2x128xf32>
    %cst_18 = arith.constant 1.000000e+00 : f32
    %79 = vector.broadcast %cst_18 : f32 to vector<2x128xf32>
    %80 = arith.addf %79, %78 : vector<2x128xf32>
    %81 = arith.divf %79, %80 : vector<2x128xf32>
    %82 = vector.extract_strided_slice %69 {offsets = [0, 256], sizes = [2, 128], strides = [1, 1]} : vector<2x512xf32> to vector<2x128xf32>
    %83 = math.tanh %82 : vector<2x128xf32>
    %84 = vector.extract_strided_slice %69 {offsets = [0, 384], sizes = [2, 128], strides = [1, 1]} : vector<2x512xf32> to vector<2x128xf32>
    %85 = arith.negf %84 : vector<2x128xf32>
    %86 = math.exp %85 : vector<2x128xf32>
    %cst_19 = arith.constant 1.000000e+00 : f32
    %87 = vector.broadcast %cst_19 : f32 to vector<2x128xf32>
    %88 = arith.addf %87, %86 : vector<2x128xf32>
    %89 = arith.divf %87, %88 : vector<2x128xf32>
    %90 = arith.mulf %81, %63 : vector<2x128xf32>
    %91 = arith.mulf %75, %83 : vector<2x128xf32>
    %92 = arith.addf %90, %91 : vector<2x128xf32>
    %93 = math.tanh %92 : vector<2x128xf32>
    %94 = arith.mulf %89, %93 : vector<2x128xf32>
    %95 = vector.extract_strided_slice %7 {offsets = [0, 3, 0], sizes = [2, 1, 512], strides = [1, 1, 1]} : vector<2x8x512xf32> to vector<2x1x512xf32>
    %96 = vector.shape_cast %95 : vector<2x1x512xf32> to vector<2x512xf32>
    %cst_20 = arith.constant dense<0.000000e+00> : vector<2x512xf32>
    %97 = tpu.matmul %94, %8, %cst_20 {dimension_numbers = #tpu.dot_dimension_numbers<[1], [0], [0], [1], [0, 0, 1, 1], [], []>} : vector<2x128xf32>, vector<128x512xf32>, vector<2x512xf32> -> vector<2x512xf32>
    %98 = arith.addf %96, %97 : vector<2x512xf32>
    %99 = vector.extract_strided_slice %98 {offsets = [0, 0], sizes = [2, 128], strides = [1, 1]} : vector<2x512xf32> to vector<2x128xf32>
    %100 = arith.negf %99 : vector<2x128xf32>
    %101 = math.exp %100 : vector<2x128xf32>
    %cst_21 = arith.constant 1.000000e+00 : f32
    %102 = vector.broadcast %cst_21 : f32 to vector<2x128xf32>
    %103 = arith.addf %102, %101 : vector<2x128xf32>
    %104 = arith.divf %102, %103 : vector<2x128xf32>
    %105 = vector.extract_strided_slice %98 {offsets = [0, 128], sizes = [2, 128], strides = [1, 1]} : vector<2x512xf32> to vector<2x128xf32>
    %106 = arith.negf %105 : vector<2x128xf32>
    %107 = math.exp %106 : vector<2x128xf32>
    %cst_22 = arith.constant 1.000000e+00 : f32
    %108 = vector.broadcast %cst_22 : f32 to vector<2x128xf32>
    %109 = arith.addf %108, %107 : vector<2x128xf32>
    %110 = arith.divf %108, %109 : vector<2x128xf32>
    %111 = vector.extract_strided_slice %98 {offsets = [0, 256], sizes = [2, 128], strides = [1, 1]} : vector<2x512xf32> to vector<2x128xf32>
    %112 = math.tanh %111 : vector<2x128xf32>
    %113 = vector.extract_strided_slice %98 {offsets = [0, 384], sizes = [2, 128], strides = [1, 1]} : vector<2x512xf32> to vector<2x128xf32>
    %114 = arith.negf %113 : vector<2x128xf32>
    %115 = math.exp %114 : vector<2x128xf32>
    %cst_23 = arith.constant 1.000000e+00 : f32
    %116 = vector.broadcast %cst_23 : f32 to vector<2x128xf32>
    %117 = arith.addf %116, %115 : vector<2x128xf32>
    %118 = arith.divf %116, %117 : vector<2x128xf32>
    %119 = arith.mulf %110, %92 : vector<2x128xf32>
    %120 = arith.mulf %104, %112 : vector<2x128xf32>
    %121 = arith.addf %119, %120 : vector<2x128xf32>
    %122 = math.tanh %121 : vector<2x128xf32>
    %123 = arith.mulf %118, %122 : vector<2x128xf32>
    %124 = vector.extract_strided_slice %7 {offsets = [0, 4, 0], sizes = [2, 1, 512], strides = [1, 1, 1]} : vector<2x8x512xf32> to vector<2x1x512xf32>
    %125 = vector.shape_cast %124 : vector<2x1x512xf32> to vector<2x512xf32>
    %cst_24 = arith.constant dense<0.000000e+00> : vector<2x512xf32>
    %126 = tpu.matmul %123, %8, %cst_24 {dimension_numbers = #tpu.dot_dimension_numbers<[1], [0], [0], [1], [0, 0, 1, 1], [], []>} : vector<2x128xf32>, vector<128x512xf32>, vector<2x512xf32> -> vector<2x512xf32>
    %127 = arith.addf %125, %126 : vector<2x512xf32>
    %128 = vector.extract_strided_slice %127 {offsets = [0, 0], sizes = [2, 128], strides = [1, 1]} : vector<2x512xf32> to vector<2x128xf32>
    %129 = arith.negf %128 : vector<2x128xf32>
    %130 = math.exp %129 : vector<2x128xf32>
    %cst_25 = arith.constant 1.000000e+00 : f32
    %131 = vector.broadcast %cst_25 : f32 to vector<2x128xf32>
    %132 = arith.addf %131, %130 : vector<2x128xf32>
    %133 = arith.divf %131, %132 : vector<2x128xf32>
    %134 = vector.extract_strided_slice %127 {offsets = [0, 128], sizes = [2, 128], strides = [1, 1]} : vector<2x512xf32> to vector<2x128xf32>
    %135 = arith.negf %134 : vector<2x128xf32>
    %136 = math.exp %135 : vector<2x128xf32>
    %cst_26 = arith.constant 1.000000e+00 : f32
    %137 = vector.broadcast %cst_26 : f32 to vector<2x128xf32>
    %138 = arith.addf %137, %136 : vector<2x128xf32>
    %139 = arith.divf %137, %138 : vector<2x128xf32>
    %140 = vector.extract_strided_slice %127 {offsets = [0, 256], sizes = [2, 128], strides = [1, 1]} : vector<2x512xf32> to vector<2x128xf32>
    %141 = math.tanh %140 : vector<2x128xf32>
    %142 = vector.extract_strided_slice %127 {offsets = [0, 384], sizes = [2, 128], strides = [1, 1]} : vector<2x512xf32> to vector<2x128xf32>
    %143 = arith.negf %142 : vector<2x128xf32>
    %144 = math.exp %143 : vector<2x128xf32>
    %cst_27 = arith.constant 1.000000e+00 : f32
    %145 = vector.broadcast %cst_27 : f32 to vector<2x128xf32>
    %146 = arith.addf %145, %144 : vector<2x128xf32>
    %147 = arith.divf %145, %146 : vector<2x128xf32>
    %148 = arith.mulf %139, %121 : vector<2x128xf32>
    %149 = arith.mulf %133, %141 : vector<2x128xf32>
    %150 = arith.addf %148, %149 : vector<2x128xf32>
    %151 = math.tanh %150 : vector<2x128xf32>
    %152 = arith.mulf %147, %151 : vector<2x128xf32>
    %153 = vector.extract_strided_slice %7 {offsets = [0, 5, 0], sizes = [2, 1, 512], strides = [1, 1, 1]} : vector<2x8x512xf32> to vector<2x1x512xf32>
    %154 = vector.shape_cast %153 : vector<2x1x512xf32> to vector<2x512xf32>
    %cst_28 = arith.constant dense<0.000000e+00> : vector<2x512xf32>
    %155 = tpu.matmul %152, %8, %cst_28 {dimension_numbers = #tpu.dot_dimension_numbers<[1], [0], [0], [1], [0, 0, 1, 1], [], []>} : vector<2x128xf32>, vector<128x512xf32>, vector<2x512xf32> -> vector<2x512xf32>
    %156 = arith.addf %154, %155 : vector<2x512xf32>
    %157 = vector.extract_strided_slice %156 {offsets = [0, 0], sizes = [2, 128], strides = [1, 1]} : vector<2x512xf32> to vector<2x128xf32>
    %158 = arith.negf %157 : vector<2x128xf32>
    %159 = math.exp %158 : vector<2x128xf32>
    %cst_29 = arith.constant 1.000000e+00 : f32
    %160 = vector.broadcast %cst_29 : f32 to vector<2x128xf32>
    %161 = arith.addf %160, %159 : vector<2x128xf32>
    %162 = arith.divf %160, %161 : vector<2x128xf32>
    %163 = vector.extract_strided_slice %156 {offsets = [0, 128], sizes = [2, 128], strides = [1, 1]} : vector<2x512xf32> to vector<2x128xf32>
    %164 = arith.negf %163 : vector<2x128xf32>
    %165 = math.exp %164 : vector<2x128xf32>
    %cst_30 = arith.constant 1.000000e+00 : f32
    %166 = vector.broadcast %cst_30 : f32 to vector<2x128xf32>
    %167 = arith.addf %166, %165 : vector<2x128xf32>
    %168 = arith.divf %166, %167 : vector<2x128xf32>
    %169 = vector.extract_strided_slice %156 {offsets = [0, 256], sizes = [2, 128], strides = [1, 1]} : vector<2x512xf32> to vector<2x128xf32>
    %170 = math.tanh %169 : vector<2x128xf32>
    %171 = vector.extract_strided_slice %156 {offsets = [0, 384], sizes = [2, 128], strides = [1, 1]} : vector<2x512xf32> to vector<2x128xf32>
    %172 = arith.negf %171 : vector<2x128xf32>
    %173 = math.exp %172 : vector<2x128xf32>
    %cst_31 = arith.constant 1.000000e+00 : f32
    %174 = vector.broadcast %cst_31 : f32 to vector<2x128xf32>
    %175 = arith.addf %174, %173 : vector<2x128xf32>
    %176 = arith.divf %174, %175 : vector<2x128xf32>
    %177 = arith.mulf %168, %150 : vector<2x128xf32>
    %178 = arith.mulf %162, %170 : vector<2x128xf32>
    %179 = arith.addf %177, %178 : vector<2x128xf32>
    %180 = math.tanh %179 : vector<2x128xf32>
    %181 = arith.mulf %176, %180 : vector<2x128xf32>
    %182 = vector.extract_strided_slice %7 {offsets = [0, 6, 0], sizes = [2, 1, 512], strides = [1, 1, 1]} : vector<2x8x512xf32> to vector<2x1x512xf32>
    %183 = vector.shape_cast %182 : vector<2x1x512xf32> to vector<2x512xf32>
    %cst_32 = arith.constant dense<0.000000e+00> : vector<2x512xf32>
    %184 = tpu.matmul %181, %8, %cst_32 {dimension_numbers = #tpu.dot_dimension_numbers<[1], [0], [0], [1], [0, 0, 1, 1], [], []>} : vector<2x128xf32>, vector<128x512xf32>, vector<2x512xf32> -> vector<2x512xf32>
    %185 = arith.addf %183, %184 : vector<2x512xf32>
    %186 = vector.extract_strided_slice %185 {offsets = [0, 0], sizes = [2, 128], strides = [1, 1]} : vector<2x512xf32> to vector<2x128xf32>
    %187 = arith.negf %186 : vector<2x128xf32>
    %188 = math.exp %187 : vector<2x128xf32>
    %cst_33 = arith.constant 1.000000e+00 : f32
    %189 = vector.broadcast %cst_33 : f32 to vector<2x128xf32>
    %190 = arith.addf %189, %188 : vector<2x128xf32>
    %191 = arith.divf %189, %190 : vector<2x128xf32>
    %192 = vector.extract_strided_slice %185 {offsets = [0, 128], sizes = [2, 128], strides = [1, 1]} : vector<2x512xf32> to vector<2x128xf32>
    %193 = arith.negf %192 : vector<2x128xf32>
    %194 = math.exp %193 : vector<2x128xf32>
    %cst_34 = arith.constant 1.000000e+00 : f32
    %195 = vector.broadcast %cst_34 : f32 to vector<2x128xf32>
    %196 = arith.addf %195, %194 : vector<2x128xf32>
    %197 = arith.divf %195, %196 : vector<2x128xf32>
    %198 = vector.extract_strided_slice %185 {offsets = [0, 256], sizes = [2, 128], strides = [1, 1]} : vector<2x512xf32> to vector<2x128xf32>
    %199 = math.tanh %198 : vector<2x128xf32>
    %200 = vector.extract_strided_slice %185 {offsets = [0, 384], sizes = [2, 128], strides = [1, 1]} : vector<2x512xf32> to vector<2x128xf32>
    %201 = arith.negf %200 : vector<2x128xf32>
    %202 = math.exp %201 : vector<2x128xf32>
    %cst_35 = arith.constant 1.000000e+00 : f32
    %203 = vector.broadcast %cst_35 : f32 to vector<2x128xf32>
    %204 = arith.addf %203, %202 : vector<2x128xf32>
    %205 = arith.divf %203, %204 : vector<2x128xf32>
    %206 = arith.mulf %197, %179 : vector<2x128xf32>
    %207 = arith.mulf %191, %199 : vector<2x128xf32>
    %208 = arith.addf %206, %207 : vector<2x128xf32>
    %209 = math.tanh %208 : vector<2x128xf32>
    %210 = arith.mulf %205, %209 : vector<2x128xf32>
    %211 = vector.extract_strided_slice %7 {offsets = [0, 7, 0], sizes = [2, 1, 512], strides = [1, 1, 1]} : vector<2x8x512xf32> to vector<2x1x512xf32>
    %212 = vector.shape_cast %211 : vector<2x1x512xf32> to vector<2x512xf32>
    %cst_36 = arith.constant dense<0.000000e+00> : vector<2x512xf32>
    %213 = tpu.matmul %210, %8, %cst_36 {dimension_numbers = #tpu.dot_dimension_numbers<[1], [0], [0], [1], [0, 0, 1, 1], [], []>} : vector<2x128xf32>, vector<128x512xf32>, vector<2x512xf32> -> vector<2x512xf32>
    %214 = arith.addf %212, %213 : vector<2x512xf32>
    %215 = vector.extract_strided_slice %214 {offsets = [0, 0], sizes = [2, 128], strides = [1, 1]} : vector<2x512xf32> to vector<2x128xf32>
    %216 = arith.negf %215 : vector<2x128xf32>
    %217 = math.exp %216 : vector<2x128xf32>
    %cst_37 = arith.constant 1.000000e+00 : f32
    %218 = vector.broadcast %cst_37 : f32 to vector<2x128xf32>
    %219 = arith.addf %218, %217 : vector<2x128xf32>
    %220 = arith.divf %218, %219 : vector<2x128xf32>
    %221 = vector.extract_strided_slice %214 {offsets = [0, 128], sizes = [2, 128], strides = [1, 1]} : vector<2x512xf32> to vector<2x128xf32>
    %222 = arith.negf %221 : vector<2x128xf32>
    %223 = math.exp %222 : vector<2x128xf32>
    %cst_38 = arith.constant 1.000000e+00 : f32
    %224 = vector.broadcast %cst_38 : f32 to vector<2x128xf32>
    %225 = arith.addf %224, %223 : vector<2x128xf32>
    %226 = arith.divf %224, %225 : vector<2x128xf32>
    %227 = vector.extract_strided_slice %214 {offsets = [0, 256], sizes = [2, 128], strides = [1, 1]} : vector<2x512xf32> to vector<2x128xf32>
    %228 = math.tanh %227 : vector<2x128xf32>
    %229 = vector.extract_strided_slice %214 {offsets = [0, 384], sizes = [2, 128], strides = [1, 1]} : vector<2x512xf32> to vector<2x128xf32>
    %230 = arith.negf %229 : vector<2x128xf32>
    %231 = math.exp %230 : vector<2x128xf32>
    %cst_39 = arith.constant 1.000000e+00 : f32
    %232 = vector.broadcast %cst_39 : f32 to vector<2x128xf32>
    %233 = arith.addf %232, %231 : vector<2x128xf32>
    %234 = arith.divf %232, %233 : vector<2x128xf32>
    %235 = arith.mulf %226, %208 : vector<2x128xf32>
    %236 = arith.mulf %220, %228 : vector<2x128xf32>
    %237 = arith.addf %235, %236 : vector<2x128xf32>
    %238 = math.tanh %237 : vector<2x128xf32>
    %239 = arith.mulf %234, %238 : vector<2x128xf32>
    %c0_40 = arith.constant 0 : index
    %c0_41 = arith.constant 0 : index
    %240 = vector.load %arg5[%c0_40, %c0_41] : memref<128x1xf32, #tpu.memory_space<vmem>>, vector<128x1xf32>
    %cst_42 = arith.constant dense<0.000000e+00> : vector<2x1xf32>
    %241 = tpu.matmul %239, %240, %cst_42 {dimension_numbers = #tpu.dot_dimension_numbers<[1], [0], [0], [1], [0, 0, 1, 1], [], []>} : vector<2x128xf32>, vector<128x1xf32>, vector<2x1xf32> -> vector<2x1xf32>
    %c0_43 = arith.constant 0 : index
    %c0_44 = arith.constant 0 : index
    %242 = vector.load %arg6[%c0_43, %c0_44] : memref<1x1xf32, #tpu.memory_space<vmem>>, vector<1x1xf32>
    %243 = vector.broadcast %242 : vector<1x1xf32> to vector<2x1xf32>
    %244 = arith.addf %241, %243 : vector<2x1xf32>
    %c0_45 = arith.constant 0 : index
    %c0_46 = arith.constant 0 : index
    %245 = vector.load %arg7[%c0_45, %c0_46] : memref<2x1xf32, #tpu.memory_space<vmem>>, vector<2x1xf32>
    tpu.vector_store %arg7[%c0_45, %c0_46], %244 {strides = array<i32>} : memref<2x1xf32, #tpu.memory_space<vmem>>, vector<2x1xf32>,
    return
  }
  func.func @transform_0(%arg0: i32) -> (i32, i32, i32) {
    %c0_i32 = arith.constant 0 : i32
    %c0_i32_0 = arith.constant 0 : i32
    %c0_i32_1 = arith.constant 0 : i32
    %c0_i32_2 = arith.constant 0 : i32
    return %c0_i32, %c0_i32_0, %c0_i32_1 : i32, i32, i32
  }
  func.func @transform_1(%arg0: i32) -> (i32, i32) {
    %c0_i32 = arith.constant 0 : i32
    %c0_i32_0 = arith.constant 0 : i32
    %c0_i32_1 = arith.constant 0 : i32
    return %c0_i32, %c0_i32_0 : i32, i32
  }
  func.func @transform_2(%arg0: i32) -> (i32, i32) {
    %c0_i32 = arith.constant 0 : i32
    %c0_i32_0 = arith.constant 0 : i32
    %c0_i32_1 = arith.constant 0 : i32
    return %c0_i32, %c0_i32_0 : i32, i32
  }
  func.func @transform_3(%arg0: i32) -> (i32, i32) {
    %c0_i32 = arith.constant 0 : i32
    %c0_i32_0 = arith.constant 0 : i32
    %c0_i32_1 = arith.constant 0 : i32
    return %c0_i32, %c0_i32_0 : i32, i32
  }
  func.func @transform_4(%arg0: i32) -> (i32, i32) {
    %c0_i32 = arith.constant 0 : i32
    %c0_i32_0 = arith.constant 0 : i32
    %c0_i32_1 = arith.constant 0 : i32
    return %c0_i32, %c0_i32_0 : i32, i32
  }
  func.func @transform_5(%arg0: i32) -> (i32, i32) {
    %c0_i32 = arith.constant 0 : i32
    %c0_i32_0 = arith.constant 0 : i32
    %c0_i32_1 = arith.constant 0 : i32
    return %c0_i32, %c0_i32_0 : i32, i32
  }
  func.func @transform_6(%arg0: i32) -> (i32, i32) {
    %c0_i32 = arith.constant 0 : i32
    %c0_i32_0 = arith.constant 0 : i32
    %c0_i32_1 = arith.constant 0 : i32
    return %c0_i32, %c0_i32_0 : i32, i32
  }
}

</mosaic_0001>

<llo_original>
// kernel: tpu_custom_call.1
$region0: #{tpu_custom_call.1}
  #allocation0 [shape = 'u32[]', space=smem, size = 0x4, offset = 0x4, fixed_abs, tag = 'smem constant byte address 0x4 - core index']
  #allocation1 [shape = 'u32[144,128]{1,0:T(1,128)}', space=vmem, size = 0x12000, scoped, tag = 'internal scratch']
  #allocation2 [shape = 'f32[1,1]{1,0:T(1,128)S(1)}', space=vmem, size = 0x200, scoped, tag = 'scoped memory for tpu_custom_call.1']
  %s0 = inlined_call_operand.hbm [shape: f32[2,8,768], index: 0, kind: input, shape index: {}]
  %s1 = inlined_call_operand.hbm [shape: f32[768,512], index: 1, kind: input, shape index: {}]
  %s2 = inlined_call_operand.hbm [shape: f32[128,512], index: 2, kind: input, shape index: {}]
  %s3 = inlined_call_operand.hbm [shape: f32[1,512], index: 3, kind: input, shape index: {}]
  %s4 = inlined_call_operand.vmem [shape: f32[128,1], index: 4, kind: input, shape index: {}]
  %s5 = inlined_call_operand.<no memory space> [shape: f32[1,1], index: 5, kind: input, shape index: {}]
  %s6 = inlined_call_operand.vmem [shape: f32[2,1], index: 6, kind: output, shape index: {}]
  %s7 = sld [smem:[#allocation0]]
  $region50: #{tpu_custom_call.1} parent=0
    _
  %s9 = ssub.s32 1, %s7
  %s10 = scalar_select 0, %s9, %s7
  %v11 = vstv %s5
  %12 = vst [vmem:[#allocation2] sm:$0x1] %v11
  $region1: #{tpu_custom_call.1} parent=0
    #allocation3 [shape = 'u8[49152]{0}', space=vmem, size = 0xc000, scoped, tag = 'input window, operand 0, single buffered']
    #allocation4 [shape = 's32[1]{0}', space=sflag, size = 0x4, scoped, tag = 'scoped memory for tpu_custom_call.1']
    #allocation5 [shape = 'u8[1572864]{0}', space=vmem, size = 0x180000, scoped, tag = 'input window, operand 1, single buffered']
    #allocation6 [shape = 's32[1]{0}', space=sflag, size = 0x4, scoped, tag = 'scoped memory for tpu_custom_call.1']
    #allocation7 [shape = 'u8[262144]{0}', space=vmem, size = 0x40000, scoped, tag = 'input window, operand 2, single buffered']
    #allocation8 [shape = 'u8[2048]{0}', space=vmem, size = 0x800, scoped, tag = 'input window, operand 3, single buffered']
    #allocation9 [shape = 's32[1]{0}', space=sflag, size = 0x4, scoped, tag = 'scoped memory for tpu_custom_call.1']
    %13 = vsyncpa [#allocation4], 0
    %14 = vsyncpa [#allocation6], 0
    %15 = vsyncpa [#allocation9], 0
    // Predicated region
    $region2: #{tpu_custom_call.1} parent=1 // pred_check
      _
    $region3: #{tpu_custom_call.1} parent=1 // pred_check_branch
      %17 = sbr.rel (0) target = $region5
    $region4: #{tpu_custom_call.1} parent=1 // pred_region
      %s19 = ssub.s32 1536, 1536
      %20 = vsyncadd [#allocation4], %s19
      %s21 = sshll.u32 [#allocation3], 4
      %s22 = int_to_ptr.vmem [resolvable:$true] %s21
      %27 = dma.hbm_to_vmem [thread:$0]  %s0, 1536, %s22, [#allocation4], 768, 768, 48
    $region5: #{tpu_custom_call.1} parent=1 // pred_fallthru
      _
    // Predicated region
    $region6: #{tpu_custom_call.1} parent=1 // pred_check
      _
    $region7: #{tpu_custom_call.1} parent=1 // pred_check_branch
      %29 = sbr.rel (0) target = $region9
    $region8: #{tpu_custom_call.1} parent=1 // pred_region
      %s31 = ssub.s32 49152, 49152
      %32 = vsyncadd [#allocation6], %s31
      %s33 = sshll.u32 [#allocation5], 4
      %s34 = int_to_ptr.vmem [resolvable:$true] %s33
      %39 = dma.hbm_to_vmem [thread:$0]  %s1, 49152, %s34, [#allocation6], 512, 512, 32
    $region9: #{tpu_custom_call.1} parent=1 // pred_fallthru
      _
    // Predicated region
    $region10: #{tpu_custom_call.1} parent=1 // pred_check
      _
    $region11: #{tpu_custom_call.1} parent=1 // pred_check_branch
      %41 = sbr.rel (0) target = $region13
    $region12: #{tpu_custom_call.1} parent=1 // pred_region
      %s43 = ssub.s32 8192, 8192
      %44 = vsyncadd [#allocation6], %s43
      %s45 = sshll.u32 [#allocation7], 4
      %s46 = int_to_ptr.vmem [resolvable:$true] %s45
      %51 = dma.hbm_to_vmem [thread:$0]  %s2, 8192, %s46, [#allocation6], 512, 512, 32
    $region13: #{tpu_custom_call.1} parent=1 // pred_fallthru
      _
    // Predicated region
    $region14: #{tpu_custom_call.1} parent=1 // pred_check
      _
    $region15: #{tpu_custom_call.1} parent=1 // pred_check_branch
      %53 = sbr.rel (0) target = $region17
    $region16: #{tpu_custom_call.1} parent=1 // pred_region
      %s55 = ssub.s32 64, 64
      %56 = vsyncadd [#allocation9], %s55
      %s58 = sshll.u32 [#allocation8], 4
      %s59 = int_to_ptr.vmem [resolvable:$true] %s58
      %61 = dma.hbm_to_vmem [thread:$0]  %s3, 64, %s59, [#allocation9]
    $region17: #{tpu_custom_call.1} parent=1 // pred_fallthru
      _
    // Predicated region
    $region18: #{tpu_custom_call.1} parent=1 // pred_check
      _
    $region19: #{tpu_custom_call.1} parent=1 // pred_check_branch
      %63 = sbr.rel (0) target = $region21
    $region20: #{tpu_custom_call.1} parent=1 // pred_region
      _
    $region21: #{tpu_custom_call.1} parent=1 // pred_fallthru
      _
    // Predicated region
    $region22: #{tpu_custom_call.1} parent=1 // pred_check
      _
    $region23: #{tpu_custom_call.1} parent=1 // pred_check_branch
      %65 = sbr.rel (0) target = $region25
    $region24: #{tpu_custom_call.1} parent=1 // pred_region
      _
    $region25: #{tpu_custom_call.1} parent=1 // pred_fallthru
      _
    // Predicated region
    $region26: #{tpu_custom_call.1} parent=1 // pred_check
      _
    $region27: #{tpu_custom_call.1} parent=1 // pred_check_branch
      %67 = sbr.rel (0) target = $region29
    $region28: #{tpu_custom_call.1} parent=1 // pred_region
      %68 = dma.done [#allocation4], 1536
    $region29: #{tpu_custom_call.1} parent=1 // pred_fallthru
      _
    // Predicated region
    $region30: #{tpu_custom_call.1} parent=1 // pred_check
      _
    $region31: #{tpu_custom_call.1} parent=1 // pred_check_branch
      %70 = sbr.rel (0) target = $region33
    $region32: #{tpu_custom_call.1} parent=1 // pred_region
      %71 = dma.done [#allocation6], 49152
    $region33: #{tpu_custom_call.1} parent=1 // pred_fallthru
      _
    // Predicated region
    $region34: #{tpu_custom_call.1} parent=1 // pred_check
      _
    $region35: #{tpu_custom_call.1} parent=1 // pred_check_branch
      %73 = sbr.rel (0) target = $region37
    $region36: #{tpu_custom_call.1} parent=1 // pred_region
      %74 = dma.done [#allocation6], 8192
    $region37: #{tpu_custom_call.1} parent=1 // pred_fallthru
      _
    // Predicated region
    $region38: #{tpu_custom_call.1} parent=1 // pred_check
      _
    $region39: #{tpu_custom_call.1} parent=1 // pred_check_branch
      %76 = sbr.rel (0) target = $region41
    $region40: #{tpu_custom_call.1} parent=1 // pred_region
      %77 = dma.done [#allocation9], 64
    $region41: #{tpu_custom_call.1} parent=1 // pred_fallthru
      _
    %v78 = vld [vmem:[#allocation3] sm:$0xff]
    %v79 = vld [vmem:[#allocation3 + $0x8] sm:$0xff]
    %v80 = vld [vmem:[#allocation3 + $0x10] sm:$0xff]
    %v81 = vld [vmem:[#allocation3 + $0x18] sm:$0xff]
    %v82 = vld [vmem:[#allocation3 + $0x20] sm:$0xff]
    %v83 = vld [vmem:[#allocation3 + $0x28] sm:$0xff]
    %v84 = vld [vmem:[#allocation3 + $0x30] sm:$0xff]
    %v85 = vld [vmem:[#allocation3 + $0x38] sm:$0xff]
    %v86 = vld [vmem:[#allocation3 + $0x40] sm:$0xff]
    %v87 = vld [vmem:[#allocation3 + $0x48] sm:$0xff]
    %v88 = vld [vmem:[#allocation3 + $0x50] sm:$0xff]
    %v89 = vld [vmem:[#allocation3 + $0x58] sm:$0xff]
    %v90 = vld [vmem:[#allocation5] sm:$0xff]
    %v91 = vld [vmem:[#allocation5 + $0x8] sm:$0xff]
    %v92 = vld [vmem:[#allocation5 + $0x10] sm:$0xff]
    %v93 = vld [vmem:[#allocation5 + $0x18] sm:$0xff]
    %v94 = vld [vmem:[#allocation5 + $0x20] sm:$0xff]
    %v95 = vld [vmem:[#allocation5 + $0x28] sm:$0xff]
    %v96 = vld [vmem:[#allocation5 + $0x30] sm:$0xff]
    %v97 = vld [vmem:[#allocation5 + $0x38] sm:$0xff]
    %v98 = vld [vmem:[#allocation5 + $0x40] sm:$0xff]
    %v99 = vld [vmem:[#allocation5 + $0x48] sm:$0xff]
    %v100 = vld [vmem:[#allocation5 + $0x50] sm:$0xff]
    %v101 = vld [vmem:[#allocation5 + $0x58] sm:$0xff]
    %v102 = vld [vmem:[#allocation5 + $0x60] sm:$0xff]
    %v103 = vld [vmem:[#allocation5 + $0x68] sm:$0xff]
    %v104 = vld [vmem:[#allocation5 + $0x70] sm:$0xff]
    %v105 = vld [vmem:[#allocation5 + $0x78] sm:$0xff]
    %v106 = vld [vmem:[#allocation5 + $0x80] sm:$0xff]
    %v107 = vld [vmem:[#allocation5 + $0x88] sm:$0xff]
    %v108 = vld [vmem:[#allocation5 + $0x90] sm:$0xff]
    %v109 = vld [vmem:[#allocation5 + $0x98] sm:$0xff]
    %v110 = vld [vmem:[#allocation5 + $0xa0] sm:$0xff]
    %v111 = vld [vmem:[#allocation5 + $0xa8] sm:$0xff]
    %v112 = vld [vmem:[#allocation5 + $0xb0] sm:$0xff]
    %v113 = vld [vmem:[#allocation5 + $0xb8] sm:$0xff]
    %v114 = vld [vmem:[#allocation5 + $0xc0] sm:$0xff]
    %v115 = vld [vmem:[#allocation5 + $0xc8] sm:$0xff]
    %v116 = vld [vmem:[#allocation5 + $0xd0] sm:$0xff]
    %v117 = vld [vmem:[#allocation5 + $0xd8] sm:$0xff]
    %v118 = vld [vmem:[#allocation5 + $0xe0] sm:$0xff]
    %v119 = vld [vmem:[#allocation5 + $0xe8] sm:$0xff]
    %v120 = vld [vmem:[#allocation5 + $0xf0] sm:$0xff]
    %v121 = vld [vmem:[#allocation5 + $0xf8] sm:$0xff]
    %v122 = vld [vmem:[#allocation5 + $0x100] sm:$0xff]
    %v123 = vld [vmem:[#allocation5 + $0x108] sm:$0xff]
    %v124 = vld [vmem:[#allocation5 + $0x110] sm:$0xff]
    %v125 = vld [vmem:[#allocation5 + $0x118] sm:$0xff]
    %v126 = vld [vmem:[#allocation5 + $0x120] sm:$0xff]
    %v127 = vld [vmem:[#allocation5 + $0x128] sm:$0xff]
    %v128 = vld [vmem:[#allocation5 + $0x130] sm:$0xff]
    %v129 = vld [vmem:[#allocation5 + $0x138] sm:$0xff]
    %v130 = vld [vmem:[#allocation5 + $0x140] sm:$0xff]
    %v131 = vld [vmem:[#allocation5 + $0x148] sm:$0xff]
    %v132 = vld [vmem:[#allocation5 + $0x150] sm:$0xff]
    %v133 = vld [vmem:[#allocation5 + $0x158] sm:$0xff]
    %v134 = vld [vmem:[#allocation5 + $0x160] sm:$0xff]
    %v135 = vld [vmem:[#allocation5 + $0x168] sm:$0xff]
    %v136 = vld [vmem:[#allocation5 + $0x170] sm:$0xff]
    %v137 = vld [vmem:[#allocation5 + $0x178] sm:$0xff]
    %v138 = vld [vmem:[#allocation5 + $0x180] sm:$0xff]
    %v139 = vld [vmem:[#allocation5 + $0x188] sm:$0xff]
    %v140 = vld [vmem:[#allocation5 + $0x190] sm:$0xff]
    %v141 = vld [vmem:[#allocation5 + $0x198] sm:$0xff]
    %v142 = vld [vmem:[#allocation5 + $0x1a0] sm:$0xff]
    %v143 = vld [vmem:[#allocation5 + $0x1a8] sm:$0xff]
    %v144 = vld [vmem:[#allocation5 + $0x1b0] sm:$0xff]
    %v145 = vld [vmem:[#allocation5 + $0x1b8] sm:$0xff]
    %v146 = vld [vmem:[#allocation5 + $0x1c0] sm:$0xff]
    %v147 = vld [vmem:[#allocation5 + $0x1c8] sm:$0xff]
    %v148 = vld [vmem:[#allocation5 + $0x1d0] sm:$0xff]
    %v149 = vld [vmem:[#allocation5 + $0x1d8] sm:$0xff]
    %v150 = vld [vmem:[#allocation5 + $0x1e0] sm:$0xff]
    %v151 = vld [vmem:[#allocation5 + $0x1e8] sm:$0xff]
    %v152 = vld [vmem:[#allocation5 + $0x1f0] sm:$0xff]
    %v153 = vld [vmem:[#allocation5 + $0x1f8] sm:$0xff]
    %v154 = vld [vmem:[#allocation5 + $0x200] sm:$0xff]
    %v155 = vld [vmem:[#allocation5 + $0x208] sm:$0xff]
    %v156 = vld [vmem:[#allocation5 + $0x210] sm:$0xff]
    %v157 = vld [vmem:[#allocation5 + $0x218] sm:$0xff]
    %v158 = vld [vmem:[#allocation5 + $0x220] sm:$0xff]
    %v159 = vld [vmem:[#allocation5 + $0x228] sm:$0xff]
    %v160 = vld [vmem:[#allocation5 + $0x230] sm:$0xff]
    %v161 = vld [vmem:[#allocation5 + $0x238] sm:$0xff]
    %v162 = vld [vmem:[#allocation5 + $0x240] sm:$0xff]
    %v163 = vld [vmem:[#allocation5 + $0x248] sm:$0xff]
    %v164 = vld [vmem:[#allocation5 + $0x250] sm:$0xff]
    %v165 = vld [vmem:[#allocation5 + $0x258] sm:$0xff]
    %v166 = vld [vmem:[#allocation5 + $0x260] sm:$0xff]
    %v167 = vld [vmem:[#allocation5 + $0x268] sm:$0xff]
    %v168 = vld [vmem:[#allocation5 + $0x270] sm:$0xff]
    %v169 = vld [vmem:[#allocation5 + $0x278] sm:$0xff]
    %v170 = vld [vmem:[#allocation5 + $0x280] sm:$0xff]
    %v171 = vld [vmem:[#allocation5 + $0x288] sm:$0xff]
    %v172 = vld [vmem:[#allocation5 + $0x290] sm:$0xff]
    %v173 = vld [vmem:[#allocation5 + $0x298] sm:$0xff]
    %v174 = vld [vmem:[#allocation5 + $0x2a0] sm:$0xff]
    %v175 = vld [vmem:[#allocation5 + $0x2a8] sm:$0xff]
    %v176 = vld [vmem:[#allocation5 + $0x2b0] sm:$0xff]
    %v177 = vld [vmem:[#allocation5 + $0x2b8] sm:$0xff]
    %v178 = vld [vmem:[#allocation5 + $0x2c0] sm:$0xff]
    %v179 = vld [vmem:[#allocation5 + $0x2c8] sm:$0xff]
    %v180 = vld [vmem:[#allocation5 + $0x2d0] sm:$0xff]
    %v181 = vld [vmem:[#allocation5 + $0x2d8] sm:$0xff]
    %v182 = vld [vmem:[#allocation5 + $0x2e0] sm:$0xff]
    %v183 = vld [vmem:[#allocation5 + $0x2e8] sm:$0xff]
    %v184 = vld [vmem:[#allocation5 + $0x2f0] sm:$0xff]
    %v185 = vld [vmem:[#allocation5 + $0x2f8] sm:$0xff]
    %v186 = vld [vmem:[#allocation5 + $0x300] sm:$0xff]
    %v187 = vld [vmem:[#allocation5 + $0x308] sm:$0xff]
    %v188 = vld [vmem:[#allocation5 + $0x310] sm:$0xff]
    %v189 = vld [vmem:[#allocation5 + $0x318] sm:$0xff]
    %v190 = vld [vmem:[#allocation5 + $0x320] sm:$0xff]
    %v191 = vld [vmem:[#allocation5 + $0x328] sm:$0xff]
    %v192 = vld [vmem:[#allocation5 + $0x330] sm:$0xff]
    %v193 = vld [vmem:[#allocation5 + $0x338] sm:$0xff]
    %v194 = vld [vmem:[#allocation5 + $0x340] sm:$0xff]
    %v195 = vld [vmem:[#allocation5 + $0x348] sm:$0xff]
    %v196 = vld [vmem:[#allocation5 + $0x350] sm:$0xff]
    %v197 = vld [vmem:[#allocation5 + $0x358] sm:$0xff]
    %v198 = vld [vmem:[#allocation5 + $0x360] sm:$0xff]
    %v199 = vld [vmem:[#allocation5 + $0x368] sm:$0xff]
    %v200 = vld [vmem:[#allocation5 + $0x370] sm:$0xff]
    %v201 = vld [vmem:[#allocation5 + $0x378] sm:$0xff]
    %v202 = vld [vmem:[#allocation5 + $0x380] sm:$0xff]
    %v203 = vld [vmem:[#allocation5 + $0x388] sm:$0xff]
    %v204 = vld [vmem:[#allocation5 + $0x390] sm:$0xff]
    %v205 = vld [vmem:[#allocation5 + $0x398] sm:$0xff]
    %v206 = vld [vmem:[#allocation5 + $0x3a0] sm:$0xff]
    %v207 = vld [vmem:[#allocation5 + $0x3a8] sm:$0xff]
    %v208 = vld [vmem:[#allocation5 + $0x3b0] sm:$0xff]
    %v209 = vld [vmem:[#allocation5 + $0x3b8] sm:$0xff]
    %v210 = vld [vmem:[#allocation5 + $0x3c0] sm:$0xff]
    %v211 = vld [vmem:[#allocation5 + $0x3c8] sm:$0xff]
    %v212 = vld [vmem:[#allocation5 + $0x3d0] sm:$0xff]
    %v213 = vld [vmem:[#allocation5 + $0x3d8] sm:$0xff]
    %v214 = vld [vmem:[#allocation5 + $0x3e0] sm:$0xff]
    %v215 = vld [vmem:[#allocation5 + $0x3e8] sm:$0xff]
    %v216 = vld [vmem:[#allocation5 + $0x3f0] sm:$0xff]
    %v217 = vld [vmem:[#allocation5 + $0x3f8] sm:$0xff]
    %v218 = vld [vmem:[#allocation5 + $0x400] sm:$0xff]
    %v219 = vld [vmem:[#allocation5 + $0x408] sm:$0xff]
    %v220 = vld [vmem:[#allocation5 + $0x410] sm:$0xff]
    %v221 = vld [vmem:[#allocation5 + $0x418] sm:$0xff]
    %v222 = vld [vmem:[#allocation5 + $0x420] sm:$0xff]
    %v223 = vld [vmem:[#allocation5 + $0x428] sm:$0xff]
    %v224 = vld [vmem:[#allocation5 + $0x430] sm:$0xff]
    %v225 = vld [vmem:[#allocation5 + $0x438] sm:$0xff]
    %v226 = vld [vmem:[#allocation5 + $0x440] sm:$0xff]
    %v227 = vld [vmem:[#allocation5 + $0x448] sm:$0xff]
    %v228 = vld [vmem:[#allocation5 + $0x450] sm:$0xff]
    %v229 = vld [vmem:[#allocation5 + $0x458] sm:$0xff]
    %v230 = vld [vmem:[#allocation5 + $0x460] sm:$0xff]
    %v231 = vld [vmem:[#allocation5 + $0x468] sm:$0xff]
    %v232 = vld [vmem:[#allocation5 + $0x470] sm:$0xff]
    %v233 = vld [vmem:[#allocation5 + $0x478] sm:$0xff]
    %v234 = vld [vmem:[#allocation5 + $0x480] sm:$0xff]
    %v235 = vld [vmem:[#allocation5 + $0x488] sm:$0xff]
    %v236 = vld [vmem:[#allocation5 + $0x490] sm:$0xff]
    %v237 = vld [vmem:[#allocation5 + $0x498] sm:$0xff]
    %v238 = vld [vmem:[#allocation5 + $0x4a0] sm:$0xff]
    %v239 = vld [vmem:[#allocation5 + $0x4a8] sm:$0xff]
    %v240 = vld [vmem:[#allocation5 + $0x4b0] sm:$0xff]
    %v241 = vld [vmem:[#allocation5 + $0x4b8] sm:$0xff]
    %v242 = vld [vmem:[#allocation5 + $0x4c0] sm:$0xff]
    %v243 = vld [vmem:[#allocation5 + $0x4c8] sm:$0xff]
    %v244 = vld [vmem:[#allocation5 + $0x4d0] sm:$0xff]
    %v245 = vld [vmem:[#allocation5 + $0x4d8] sm:$0xff]
    %v246 = vld [vmem:[#allocation5 + $0x4e0] sm:$0xff]
    %v247 = vld [vmem:[#allocation5 + $0x4e8] sm:$0xff]
    %v248 = vld [vmem:[#allocation5 + $0x4f0] sm:$0xff]
    %v249 = vld [vmem:[#allocation5 + $0x4f8] sm:$0xff]
    %v250 = vld [vmem:[#allocation5 + $0x500] sm:$0xff]
    %v251 = vld [vmem:[#allocation5 + $0x508] sm:$0xff]
    %v252 = vld [vmem:[#allocation5 + $0x510] sm:$0xff]
    %v253 = vld [vmem:[#allocation5 + $0x518] sm:$0xff]
    %v254 = vld [vmem:[#allocation5 + $0x520] sm:$0xff]
    %v255 = vld [vmem:[#allocation5 + $0x528] sm:$0xff]
    %v256 = vld [vmem:[#allocation5 + $0x530] sm:$0xff]
    %v257 = vld [vmem:[#allocation5 + $0x538] sm:$0xff]
    %v258 = vld [vmem:[#allocation5 + $0x540] sm:$0xff]
    %v259 = vld [vmem:[#allocation5 + $0x548] sm:$0xff]
    %v260 = vld [vmem:[#allocation5 + $0x550] sm:$0xff]
    %v261 = vld [vmem:[#allocation5 + $0x558] sm:$0xff]
    %v262 = vld [vmem:[#allocation5 + $0x560] sm:$0xff]
    %v263 = vld [vmem:[#allocation5 + $0x568] sm:$0xff]
    %v264 = vld [vmem:[#allocation5 + $0x570] sm:$0xff]
    %v265 = vld [vmem:[#allocation5 + $0x578] sm:$0xff]
    %v266 = vld [vmem:[#allocation5 + $0x580] sm:$0xff]
    %v267 = vld [vmem:[#allocation5 + $0x588] sm:$0xff]
    %v268 = vld [vmem:[#allocation5 + $0x590] sm:$0xff]
    %v269 = vld [vmem:[#allocation5 + $0x598] sm:$0xff]
    %v270 = vld [vmem:[#allocation5 + $0x5a0] sm:$0xff]
    %v271 = vld [vmem:[#allocation5 + $0x5a8] sm:$0xff]
    %v272 = vld [vmem:[#allocation5 + $0x5b0] sm:$0xff]
    %v273 = vld [vmem:[#allocation5 + $0x5b8] sm:$0xff]
    %v274 = vld [vmem:[#allocation5 + $0x5c0] sm:$0xff]
    %v275 = vld [vmem:[#allocation5 + $0x5c8] sm:$0xff]
    %v276 = vld [vmem:[#allocation5 + $0x5d0] sm:$0xff]
    %v277 = vld [vmem:[#allocation5 + $0x5d8] sm:$0xff]
    %v278 = vld [vmem:[#allocation5 + $0x5e0] sm:$0xff]
    %v279 = vld [vmem:[#allocation5 + $0x5e8] sm:$0xff]
    %v280 = vld [vmem:[#allocation5 + $0x5f0] sm:$0xff]
    %v281 = vld [vmem:[#allocation5 + $0x5f8] sm:$0xff]
    %v282 = vld [vmem:[#allocation5 + $0x600] sm:$0xff]
    %v283 = vld [vmem:[#allocation5 + $0x608] sm:$0xff]
    %v284 = vld [vmem:[#allocation5 + $0x610] sm:$0xff]
    %v285 = vld [vmem:[#allocation5 + $0x618] sm:$0xff]
    %v286 = vld [vmem:[#allocation5 + $0x620] sm:$0xff]
    %v287 = vld [vmem:[#allocation5 + $0x628] sm:$0xff]
    %v288 = vld [vmem:[#allocation5 + $0x630] sm:$0xff]
    %v289 = vld [vmem:[#allocation5 + $0x638] sm:$0xff]
    %v290 = vld [vmem:[#allocation5 + $0x640] sm:$0xff]
    %v291 = vld [vmem:[#allocation5 + $0x648] sm:$0xff]
    %v292 = vld [vmem:[#allocation5 + $0x650] sm:$0xff]
    %v293 = vld [vmem:[#allocation5 + $0x658] sm:$0xff]
    %v294 = vld [vmem:[#allocation5 + $0x660] sm:$0xff]
    %v295 = vld [vmem:[#allocation5 + $0x668] sm:$0xff]
    %v296 = vld [vmem:[#allocation5 + $0x670] sm:$0xff]
    %v297 = vld [vmem:[#allocation5 + $0x678] sm:$0xff]
    %v298 = vld [vmem:[#allocation5 + $0x680] sm:$0xff]
    %v299 = vld [vmem:[#allocation5 + $0x688] sm:$0xff]
    %v300 = vld [vmem:[#allocation5 + $0x690] sm:$0xff]
    %v301 = vld [vmem:[#allocation5 + $0x698] sm:$0xff]
    %v302 = vld [vmem:[#allocation5 + $0x6a0] sm:$0xff]
    %v303 = vld [vmem:[#allocation5 + $0x6a8] sm:$0xff]
    %v304 = vld [vmem:[#allocation5 + $0x6b0] sm:$0xff]
    %v305 = vld [vmem:[#allocation5 + $0x6b8] sm:$0xff]
    %v306 = vld [vmem:[#allocation5 + $0x6c0] sm:$0xff]
    %v307 = vld [vmem:[#allocation5 + $0x6c8] sm:$0xff]
    %v308 = vld [vmem:[#allocation5 + $0x6d0] sm:$0xff]
    %v309 = vld [vmem:[#allocation5 + $0x6d8] sm:$0xff]
    %v310 = vld [vmem:[#allocation5 + $0x6e0] sm:$0xff]
    %v311 = vld [vmem:[#allocation5 + $0x6e8] sm:$0xff]
    %v312 = vld [vmem:[#allocation5 + $0x6f0] sm:$0xff]
    %v313 = vld [vmem:[#allocation5 + $0x6f8] sm:$0xff]
    %v314 = vld [vmem:[#allocation5 + $0x700] sm:$0xff]
    %v315 = vld [vmem:[#allocation5 + $0x708] sm:$0xff]
    %v316 = vld [vmem:[#allocation5 + $0x710] sm:$0xff]
    %v317 = vld [vmem:[#allocation5 + $0x718] sm:$0xff]
    %v318 = vld [vmem:[#allocation5 + $0x720] sm:$0xff]
    %v319 = vld [vmem:[#allocation5 + $0x728] sm:$0xff]
    %v320 = vld [vmem:[#allocation5 + $0x730] sm:$0xff]
    %v321 = vld [vmem:[#allocation5 + $0x738] sm:$0xff]
    %v322 = vld [vmem:[#allocation5 + $0x740] sm:$0xff]
    %v323 = vld [vmem:[#allocation5 + $0x748] sm:$0xff]
    %v324 = vld [vmem:[#allocation5 + $0x750] sm:$0xff]
    %v325 = vld [vmem:[#allocation5 + $0x758] sm:$0xff]
    %v326 = vld [vmem:[#allocation5 + $0x760] sm:$0xff]
    %v327 = vld [vmem:[#allocation5 + $0x768] sm:$0xff]
    %v328 = vld [vmem:[#allocation5 + $0x770] sm:$0xff]
    %v329 = vld [vmem:[#allocation5 + $0x778] sm:$0xff]
    %v330 = vld [vmem:[#allocation5 + $0x780] sm:$0xff]
    %v331 = vld [vmem:[#allocation5 + $0x788] sm:$0xff]
    %v332 = vld [vmem:[#allocation5 + $0x790] sm:$0xff]
    %v333 = vld [vmem:[#allocation5 + $0x798] sm:$0xff]
    %v334 = vld [vmem:[#allocation5 + $0x7a0] sm:$0xff]
    %v335 = vld [vmem:[#allocation5 + $0x7a8] sm:$0xff]
    %v336 = vld [vmem:[#allocation5 + $0x7b0] sm:$0xff]
    %v337 = vld [vmem:[#allocation5 + $0x7b8] sm:$0xff]
    %v338 = vld [vmem:[#allocation5 + $0x7c0] sm:$0xff]
    %v339 = vld [vmem:[#allocation5 + $0x7c8] sm:$0xff]
    %v340 = vld [vmem:[#allocation5 + $0x7d0] sm:$0xff]
    %v341 = vld [vmem:[#allocation5 + $0x7d8] sm:$0xff]
    %v342 = vld [vmem:[#allocation5 + $0x7e0] sm:$0xff]
    %v343 = vld [vmem:[#allocation5 + $0x7e8] sm:$0xff]
    %v344 = vld [vmem:[#allocation5 + $0x7f0] sm:$0xff]
    %v345 = vld [vmem:[#allocation5 + $0x7f8] sm:$0xff]
    %v346 = vld [vmem:[#allocation5 + $0x800] sm:$0xff]
    %v347 = vld [vmem:[#allocation5 + $0x808] sm:$0xff]
    %v348 = vld [vmem:[#allocation5 + $0x810] sm:$0xff]
    %v349 = vld [vmem:[#allocation5 + $0x818] sm:$0xff]
    %v350 = vld [vmem:[#allocation5 + $0x820] sm:$0xff]
    %v351 = vld [vmem:[#allocation5 + $0x828] sm:$0xff]
    %v352 = vld [vmem:[#allocation5 + $0x830] sm:$0xff]
    %v353 = vld [vmem:[#allocation5 + $0x838] sm:$0xff]
    %v354 = vld [vmem:[#allocation5 + $0x840] sm:$0xff]
    %v355 = vld [vmem:[#allocation5 + $0x848] sm:$0xff]
    %v356 = vld [vmem:[#allocation5 + $0x850] sm:$0xff]
    %v357 = vld [vmem:[#allocation5 + $0x858] sm:$0xff]
    %v358 = vld [vmem:[#allocation5 + $0x860] sm:$0xff]
    %v359 = vld [vmem:[#allocation5 + $0x868] sm:$0xff]
    %v360 = vld [vmem:[#allocation5 + $0x870] sm:$0xff]
    %v361 = vld [vmem:[#allocation5 + $0x878] sm:$0xff]
    %v362 = vld [vmem:[#allocation5 + $0x880] sm:$0xff]
    %v363 = vld [vmem:[#allocation5 + $0x888] sm:$0xff]
    %v364 = vld [vmem:[#allocation5 + $0x890] sm:$0xff]
    %v365 = vld [vmem:[#allocation5 + $0x898] sm:$0xff]
    %v366 = vld [vmem:[#allocation5 + $0x8a0] sm:$0xff]
    %v367 = vld [vmem:[#allocation5 + $0x8a8] sm:$0xff]
    %v368 = vld [vmem:[#allocation5 + $0x8b0] sm:$0xff]
    %v369 = vld [vmem:[#allocation5 + $0x8b8] sm:$0xff]
    %v370 = vld [vmem:[#allocation5 + $0x8c0] sm:$0xff]
    %v371 = vld [vmem:[#allocation5 + $0x8c8] sm:$0xff]
    %v372 = vld [vmem:[#allocation5 + $0x8d0] sm:$0xff]
    %v373 = vld [vmem:[#allocation5 + $0x8d8] sm:$0xff]
    %v374 = vld [vmem:[#allocation5 + $0x8e0] sm:$0xff]
    %v375 = vld [vmem:[#allocation5 + $0x8e8] sm:$0xff]
    %v376 = vld [vmem:[#allocation5 + $0x8f0] sm:$0xff]
    %v377 = vld [vmem:[#allocation5 + $0x8f8] sm:$0xff]
    %v378 = vld [vmem:[#allocation5 + $0x900] sm:$0xff]
    %v379 = vld [vmem:[#allocation5 + $0x908] sm:$0xff]
    %v380 = vld [vmem:[#allocation5 + $0x910] sm:$0xff]
    %v381 = vld [vmem:[#allocation5 + $0x918] sm:$0xff]
    %v382 = vld [vmem:[#allocation5 + $0x920] sm:$0xff]
    %v383 = vld [vmem:[#allocation5 + $0x928] sm:$0xff]
    %v384 = vld [vmem:[#allocation5 + $0x930] sm:$0xff]
    %v385 = vld [vmem:[#allocation5 + $0x938] sm:$0xff]
    %v386 = vld [vmem:[#allocation5 + $0x940] sm:$0xff]
    %v387 = vld [vmem:[#allocation5 + $0x948] sm:$0xff]
    %v388 = vld [vmem:[#allocation5 + $0x950] sm:$0xff]
    %v389 = vld [vmem:[#allocation5 + $0x958] sm:$0xff]
    %v390 = vld [vmem:[#allocation5 + $0x960] sm:$0xff]
    %v391 = vld [vmem:[#allocation5 + $0x968] sm:$0xff]
    %v392 = vld [vmem:[#allocation5 + $0x970] sm:$0xff]
    %v393 = vld [vmem:[#allocation5 + $0x978] sm:$0xff]
    %v394 = vld [vmem:[#allocation5 + $0x980] sm:$0xff]
    %v395 = vld [vmem:[#allocation5 + $0x988] sm:$0xff]
    %v396 = vld [vmem:[#allocation5 + $0x990] sm:$0xff]
    %v397 = vld [vmem:[#allocation5 + $0x998] sm:$0xff]
    %v398 = vld [vmem:[#allocation5 + $0x9a0] sm:$0xff]
    %v399 = vld [vmem:[#allocation5 + $0x9a8] sm:$0xff]
    %v400 = vld [vmem:[#allocation5 + $0x9b0] sm:$0xff]
    %v401 = vld [vmem:[#allocation5 + $0x9b8] sm:$0xff]
    %v402 = vld [vmem:[#allocation5 + $0x9c0] sm:$0xff]
    %v403 = vld [vmem:[#allocation5 + $0x9c8] sm:$0xff]
    %v404 = vld [vmem:[#allocation5 + $0x9d0] sm:$0xff]
    %v405 = vld [vmem:[#allocation5 + $0x9d8] sm:$0xff]
    %v406 = vld [vmem:[#allocation5 + $0x9e0] sm:$0xff]
    %v407 = vld [vmem:[#allocation5 + $0x9e8] sm:$0xff]
    %v408 = vld [vmem:[#allocation5 + $0x9f0] sm:$0xff]
    %v409 = vld [vmem:[#allocation5 + $0x9f8] sm:$0xff]
    %v410 = vld [vmem:[#allocation5 + $0xa00] sm:$0xff]
    %v411 = vld [vmem:[#allocation5 + $0xa08] sm:$0xff]
    %v412 = vld [vmem:[#allocation5 + $0xa10] sm:$0xff]
    %v413 = vld [vmem:[#allocation5 + $0xa18] sm:$0xff]
    %v414 = vld [vmem:[#allocation5 + $0xa20] sm:$0xff]
    %v415 = vld [vmem:[#allocation5 + $0xa28] sm:$0xff]
    %v416 = vld [vmem:[#allocation5 + $0xa30] sm:$0xff]
    %v417 = vld [vmem:[#allocation5 + $0xa38] sm:$0xff]
    %v418 = vld [vmem:[#allocation5 + $0xa40] sm:$0xff]
    %v419 = vld [vmem:[#allocation5 + $0xa48] sm:$0xff]
    %v420 = vld [vmem:[#allocation5 + $0xa50] sm:$0xff]
    %v421 = vld [vmem:[#allocation5 + $0xa58] sm:$0xff]
    %v422 = vld [vmem:[#allocation5 + $0xa60] sm:$0xff]
    %v423 = vld [vmem:[#allocation5 + $0xa68] sm:$0xff]
    %v424 = vld [vmem:[#allocation5 + $0xa70] sm:$0xff]
    %v425 = vld [vmem:[#allocation5 + $0xa78] sm:$0xff]
    %v426 = vld [vmem:[#allocation5 + $0xa80] sm:$0xff]
    %v427 = vld [vmem:[#allocation5 + $0xa88] sm:$0xff]
    %v428 = vld [vmem:[#allocation5 + $0xa90] sm:$0xff]
    %v429 = vld [vmem:[#allocation5 + $0xa98] sm:$0xff]
    %v430 = vld [vmem:[#allocation5 + $0xaa0] sm:$0xff]
    %v431 = vld [vmem:[#allocation5 + $0xaa8] sm:$0xff]
    %v432 = vld [vmem:[#allocation5 + $0xab0] sm:$0xff]
    %v433 = vld [vmem:[#allocation5 + $0xab8] sm:$0xff]
    %v434 = vld [vmem:[#allocation5 + $0xac0] sm:$0xff]
    %v435 = vld [vmem:[#allocation5 + $0xac8] sm:$0xff]
    %v436 = vld [vmem:[#allocation5 + $0xad0] sm:$0xff]
    %v437 = vld [vmem:[#allocation5 + $0xad8] sm:$0xff]
    %v438 = vld [vmem:[#allocation5 + $0xae0] sm:$0xff]
    %v439 = vld [vmem:[#allocation5 + $0xae8] sm:$0xff]
    %v440 = vld [vmem:[#allocation5 + $0xaf0] sm:$0xff]
    %v441 = vld [vmem:[#allocation5 + $0xaf8] sm:$0xff]
    %v442 = vld [vmem:[#allocation5 + $0xb00] sm:$0xff]
    %v443 = vld [vmem:[#allocation5 + $0xb08] sm:$0xff]
    %v444 = vld [vmem:[#allocation5 + $0xb10] sm:$0xff]
    %v445 = vld [vmem:[#allocation5 + $0xb18] sm:$0xff]
    %v446 = vld [vmem:[#allocation5 + $0xb20] sm:$0xff]
    %v447 = vld [vmem:[#allocation5 + $0xb28] sm:$0xff]
    %v448 = vld [vmem:[#allocation5 + $0xb30] sm:$0xff]
    %v449 = vld [vmem:[#allocation5 + $0xb38] sm:$0xff]
    %v450 = vld [vmem:[#allocation5 + $0xb40] sm:$0xff]
    %v451 = vld [vmem:[#allocation5 + $0xb48] sm:$0xff]
    %v452 = vld [vmem:[#allocation5 + $0xb50] sm:$0xff]
    %v453 = vld [vmem:[#allocation5 + $0xb58] sm:$0xff]
    %v454 = vld [vmem:[#allocation5 + $0xb60] sm:$0xff]
    %v455 = vld [vmem:[#allocation5 + $0xb68] sm:$0xff]
    %v456 = vld [vmem:[#allocation5 + $0xb70] sm:$0xff]
    %v457 = vld [vmem:[#allocation5 + $0xb78] sm:$0xff]
    %v458 = vld [vmem:[#allocation5 + $0xb80] sm:$0xff]
    %v459 = vld [vmem:[#allocation5 + $0xb88] sm:$0xff]
    %v460 = vld [vmem:[#allocation5 + $0xb90] sm:$0xff]
    %v461 = vld [vmem:[#allocation5 + $0xb98] sm:$0xff]
    %v462 = vld [vmem:[#allocation5 + $0xba0] sm:$0xff]
    %v463 = vld [vmem:[#allocation5 + $0xba8] sm:$0xff]
    %v464 = vld [vmem:[#allocation5 + $0xbb0] sm:$0xff]
    %v465 = vld [vmem:[#allocation5 + $0xbb8] sm:$0xff]
    %v466 = vld [vmem:[#allocation5 + $0xbc0] sm:$0xff]
    %v467 = vld [vmem:[#allocation5 + $0xbc8] sm:$0xff]
    %v468 = vld [vmem:[#allocation5 + $0xbd0] sm:$0xff]
    %v469 = vld [vmem:[#allocation5 + $0xbd8] sm:$0xff]
    %v470 = vld [vmem:[#allocation5 + $0xbe0] sm:$0xff]
    %v471 = vld [vmem:[#allocation5 + $0xbe8] sm:$0xff]
    %v472 = vld [vmem:[#allocation5 + $0xbf0] sm:$0xff]
    %v473 = vld [vmem:[#allocation5 + $0xbf8] sm:$0xff]
    %v474 = vld [vmem:[#allocation8] sm:$0xf]
    %v476 = vlaneseq
    %v477 = vshrl.u32 %v476, 7
    %v478 = vsub.s32 0, %v477
    %v479 = vrot.slane %v474, %v478
    %v480 = vlaneseq
    %v481 = vshrl.u32 %v480, 7
    %v482 = vsub.s32 1, %v481
    %v483 = vrot.slane %v474, %v482
    %v484 = vlaneseq
    %v485 = vshrl.u32 %v484, 7
    %v486 = vsub.s32 2, %v485
    %v487 = vrot.slane %v474, %v486
    %v488 = vlaneseq
    %v489 = vshrl.u32 %v488, 7
    %v490 = vsub.s32 3, %v489
    %v491 = vrot.slane %v474, %v490
    %496 = vmatprep.subr.mxu0 %v91
    %497 = vmatpush1.msra.mxu0 %v90
    %498 = vmatprep.subr.mxu0 %v95
    %499 = vmatpush1.msra.mxu0 %v94
    %500 = vmatprep.subr.mxu0 %v99
    %501 = vmatpush1.msra.mxu0 %v98
    %502 = vmatprep.subr.mxu0 %v103
    %503 = vmatpush1.msra.mxu0 %v102
    %504 = vmatprep.subr.mxu0 %v107
    %505 = vmatpush1.msra.mxu0 %v106
    %506 = vmatprep.subr.mxu0 %v111
    %507 = vmatpush1.msra.mxu0 %v110
    %508 = vmatprep.subr.mxu0 %v115
    %509 = vmatpush1.msra.mxu0 %v114
    %510 = vmatprep.subr.mxu0 %v119
    %511 = vmatpush1.msra.mxu0 %v118
    %512 = vmatprep.subr.mxu0 %v123
    %513 = vmatpush1.msra.mxu0 %v122
    %514 = vmatprep.subr.mxu0 %v127
    %515 = vmatpush1.msra.mxu0 %v126
    %516 = vmatprep.subr.mxu0 %v131
    %517 = vmatpush1.msra.mxu0 %v130
    %518 = vmatprep.subr.mxu0 %v135
    %519 = vmatpush1.msra.mxu0 %v134
    %520 = vmatprep.subr.mxu0 %v139
    %521 = vmatpush1.msra.mxu0 %v138
    %522 = vmatprep.subr.mxu0 %v143
    %523 = vmatpush1.msra.mxu0 %v142
    %524 = vmatprep.subr.mxu0 %v147
    %525 = vmatpush1.msra.mxu0 %v146
    %526 = vmatprep.subr.mxu0 %v151
    %527 = vmatpush1.msra.mxu0 %v150
    %528 = vmatprep.subr.mxu0 %v155
    %529 = vmatpush1.msra.mxu0 %v154
    %530 = vmatprep.subr.mxu0 %v159
    %531 = vmatpush1.msra.mxu0 %v158
    %532 = vmatprep.subr.mxu0 %v163
    %533 = vmatpush1.msra.mxu0 %v162
    %534 = vmatprep.subr.mxu0 %v167
    %535 = vmatpush1.msra.mxu0 %v166
    %536 = vmatprep.subr.mxu0 %v171
    %537 = vmatpush1.msra.mxu0 %v170
    %538 = vmatprep.subr.mxu0 %v175
    %539 = vmatpush1.msra.mxu0 %v174
    %540 = vmatprep.subr.mxu0 %v179
    %541 = vmatpush1.msra.mxu0 %v178
    %542 = vmatprep.subr.mxu0 %v183
    %543 = vmatpush1.msra.mxu0 %v182
    %544 = vmatprep.subr.mxu0 %v187
    %545 = vmatpush1.msra.mxu0 %v186
    %546 = vmatprep.subr.mxu0 %v191
    %547 = vmatpush1.msra.mxu0 %v190
    %548 = vmatprep.subr.mxu0 %v195
    %549 = vmatpush1.msra.mxu0 %v194
    %550 = vmatprep.subr.mxu0 %v199
    %551 = vmatpush1.msra.mxu0 %v198
    %552 = vmatprep.subr.mxu0 %v203
    %553 = vmatpush1.msra.mxu0 %v202
    %554 = vmatprep.subr.mxu0 %v207
    %555 = vmatpush1.msra.mxu0 %v206
    %556 = vmatprep.subr.mxu0 %v211
    %557 = vmatpush1.msra.mxu0 %v210
    %558 = vmatprep.subr.mxu0 %v215
    %559 = vmatpush1.msra.mxu0 %v214
    %560 = vmatprep.mubr.f32.mxu0 %v79
    %561 = vmatmul.mubr.f32.gmra.mrb[0].mxu0 %v78
    %v562 = vpop.f32.mrb[0].mxu0
    %v563 = vadd.f32 %v479, %v562
    %v564 = vpop.f32.mrb[0].mxu0
    %v565 = vadd.f32 %v483, %v564
    %566 = vmatprep.mubr.f32.mxu0 %v85
    %567 = vmatmul.mubr.f32.gmra.mrb[0].mxu0 %v84
    %v568 = vpop.f32.mrb[0].mxu0
    %v569 = vadd.f32 %v479, %v568
    %v570 = vpop.f32.mrb[0].mxu0
    %v571 = vadd.f32 %v483, %v570
    %572 = vdwg.mxu0
    %573 = vmatprep.subr.mxu0 %v219
    %574 = vmatpush1.msra.mxu0 %v218
    %575 = vmatprep.subr.mxu0 %v223
    %576 = vmatpush1.msra.mxu0 %v222
    %577 = vmatprep.subr.mxu0 %v227
    %578 = vmatpush1.msra.mxu0 %v226
    %579 = vmatprep.subr.mxu0 %v231
    %580 = vmatpush1.msra.mxu0 %v230
    %581 = vmatprep.subr.mxu0 %v235
    %582 = vmatpush1.msra.mxu0 %v234
    %583 = vmatprep.subr.mxu0 %v239
    %584 = vmatpush1.msra.mxu0 %v238
    %585 = vmatprep.subr.mxu0 %v243
    %586 = vmatpush1.msra.mxu0 %v242
    %587 = vmatprep.subr.mxu0 %v247
    %588 = vmatpush1.msra.mxu0 %v246
    %589 = vmatprep.subr.mxu0 %v251
    %590 = vmatpush1.msra.mxu0 %v250
    %591 = vmatprep.subr.mxu0 %v255
    %592 = vmatpush1.msra.mxu0 %v254
    %593 = vmatprep.subr.mxu0 %v259
    %594 = vmatpush1.msra.mxu0 %v258
    %595 = vmatprep.subr.mxu0 %v263
    %596 = vmatpush1.msra.mxu0 %v262
    %597 = vmatprep.subr.mxu0 %v267
    %598 = vmatpush1.msra.mxu0 %v266
    %599 = vmatprep.subr.mxu0 %v271
    %600 = vmatpush1.msra.mxu0 %v270
    %601 = vmatprep.subr.mxu0 %v275
    %602 = vmatpush1.msra.mxu0 %v274
    %603 = vmatprep.subr.mxu0 %v279
    %604 = vmatpush1.msra.mxu0 %v278
    %605 = vmatprep.subr.mxu0 %v283
    %606 = vmatpush1.msra.mxu0 %v282
    %607 = vmatprep.subr.mxu0 %v287
    %608 = vmatpush1.msra.mxu0 %v286
    %609 = vmatprep.subr.mxu0 %v291
    %610 = vmatpush1.msra.mxu0 %v290
    %611 = vmatprep.subr.mxu0 %v295
    %612 = vmatpush1.msra.mxu0 %v294
    %613 = vmatprep.subr.mxu0 %v299
    %614 = vmatpush1.msra.mxu0 %v298
    %615 = vmatprep.subr.mxu0 %v303
    %616 = vmatpush1.msra.mxu0 %v302
    %617 = vmatprep.subr.mxu0 %v307
    %618 = vmatpush1.msra.mxu0 %v306
    %619 = vmatprep.subr.mxu0 %v311
    %620 = vmatpush1.msra.mxu0 %v310
    %621 = vmatprep.subr.mxu0 %v315
    %622 = vmatpush1.msra.mxu0 %v314
    %623 = vmatprep.subr.mxu0 %v319
    %624 = vmatpush1.msra.mxu0 %v318
    %625 = vmatprep.subr.mxu0 %v323
    %626 = vmatpush1.msra.mxu0 %v322
    %627 = vmatprep.subr.mxu0 %v327
    %628 = vmatpush1.msra.mxu0 %v326
    %629 = vmatprep.subr.mxu0 %v331
    %630 = vmatpush1.msra.mxu0 %v330
    %631 = vmatprep.subr.mxu0 %v335
    %632 = vmatpush1.msra.mxu0 %v334
    %633 = vmatprep.subr.mxu0 %v339
    %634 = vmatpush1.msra.mxu0 %v338
    %635 = vmatprep.subr.mxu0 %v343
    %636 = vmatpush1.msra.mxu0 %v342
    %637 = vmatprep.mubr.f32.mxu0 %v81
    %638 = vmatmul.mubr.f32.gmra.mrb[0].mxu0 %v80
    %v639 = vpop.f32.mrb[0].mxu0
    %v640 = vadd.f32 %v563, %v639
    %v641 = vpop.f32.mrb[0].mxu0
    %v642 = vadd.f32 %v565, %v641
    %643 = vmatprep.mubr.f32.mxu0 %v87
    %644 = vmatmul.mubr.f32.gmra.mrb[0].mxu0 %v86
    %v645 = vpop.f32.mrb[0].mxu0
    %v646 = vadd.f32 %v569, %v645
    %v647 = vpop.f32.mrb[0].mxu0
    %v648 = vadd.f32 %v571, %v647
    %649 = vdwg.mxu0
    %650 = vmatprep.subr.mxu0 %v347
    %651 = vmatpush1.msra.mxu0 %v346
    %652 = vmatprep.subr.mxu0 %v351
    %653 = vmatpush1.msra.mxu0 %v350
    %654 = vmatprep.subr.mxu0 %v355
    %655 = vmatpush1.msra.mxu0 %v354
    %656 = vmatprep.subr.mxu0 %v359
    %657 = vmatpush1.msra.mxu0 %v358
    %658 = vmatprep.subr.mxu0 %v363
    %659 = vmatpush1.msra.mxu0 %v362
    %660 = vmatprep.subr.mxu0 %v367
    %661 = vmatpush1.msra.mxu0 %v366
    %662 = vmatprep.subr.mxu0 %v371
    %663 = vmatpush1.msra.mxu0 %v370
    %664 = vmatprep.subr.mxu0 %v375
    %665 = vmatpush1.msra.mxu0 %v374
    %666 = vmatprep.subr.mxu0 %v379
    %667 = vmatpush1.msra.mxu0 %v378
    %668 = vmatprep.subr.mxu0 %v383
    %669 = vmatpush1.msra.mxu0 %v382
    %670 = vmatprep.subr.mxu0 %v387
    %671 = vmatpush1.msra.mxu0 %v386
    %672 = vmatprep.subr.mxu0 %v391
    %673 = vmatpush1.msra.mxu0 %v390
    %674 = vmatprep.subr.mxu0 %v395
    %675 = vmatpush1.msra.mxu0 %v394
    %676 = vmatprep.subr.mxu0 %v399
    %677 = vmatpush1.msra.mxu0 %v398
    %678 = vmatprep.subr.mxu0 %v403
    %679 = vmatpush1.msra.mxu0 %v402
    %680 = vmatprep.subr.mxu0 %v407
    %681 = vmatpush1.msra.mxu0 %v406
    %682 = vmatprep.subr.mxu0 %v411
    %683 = vmatpush1.msra.mxu0 %v410
    %684 = vmatprep.subr.mxu0 %v415
    %685 = vmatpush1.msra.mxu0 %v414
    %686 = vmatprep.subr.mxu0 %v419
    %687 = vmatpush1.msra.mxu0 %v418
    %688 = vmatprep.subr.mxu0 %v423
    %689 = vmatpush1.msra.mxu0 %v422
    %690 = vmatprep.subr.mxu0 %v427
    %691 = vmatpush1.msra.mxu0 %v426
    %692 = vmatprep.subr.mxu0 %v431
    %693 = vmatpush1.msra.mxu0 %v430
    %694 = vmatprep.subr.mxu0 %v435
    %695 = vmatpush1.msra.mxu0 %v434
    %696 = vmatprep.subr.mxu0 %v439
    %697 = vmatpush1.msra.mxu0 %v438
    %698 = vmatprep.subr.mxu0 %v443
    %699 = vmatpush1.msra.mxu0 %v442
    %700 = vmatprep.subr.mxu0 %v447
    %701 = vmatpush1.msra.mxu0 %v446
    %702 = vmatprep.subr.mxu0 %v451
    %703 = vmatpush1.msra.mxu0 %v450
    %704 = vmatprep.subr.mxu0 %v455
    %705 = vmatpush1.msra.mxu0 %v454
    %706 = vmatprep.subr.mxu0 %v459
    %707 = vmatpush1.msra.mxu0 %v458
    %708 = vmatprep.subr.mxu0 %v463
    %709 = vmatpush1.msra.mxu0 %v462
    %710 = vmatprep.subr.mxu0 %v467
    %711 = vmatpush1.msra.mxu0 %v466
    %712 = vmatprep.subr.mxu0 %v471
    %713 = vmatpush1.msra.mxu0 %v470
    %714 = vmatprep.mubr.f32.mxu0 %v83
    %715 = vmatmul.mubr.f32.gmra.mrb[0].mxu0 %v82
    %v716 = vpop.f32.mrb[0].mxu0
    %v717 = vadd.f32 %v640, %v716
    %v718 = vpop.f32.mrb[0].mxu0
    %v719 = vadd.f32 %v642, %v718
    %720 = vmatprep.mubr.f32.mxu0 %v89
    %721 = vmatmul.mubr.f32.gmra.mrb[0].mxu0 %v88
    %v722 = vpop.f32.mrb[0].mxu0
    %v723 = vadd.f32 %v646, %v722
    %v724 = vpop.f32.mrb[0].mxu0
    %v725 = vadd.f32 %v648, %v724
    %726 = vdwg.mxu0
    %727 = vmatprep.subr.mxu0 %v93
    %728 = vmatpush1.msra.mxu0 %v92
    %729 = vmatprep.subr.mxu0 %v97
    %730 = vmatpush1.msra.mxu0 %v96
    %731 = vmatprep.subr.mxu0 %v101
    %732 = vmatpush1.msra.mxu0 %v100
    %733 = vmatprep.subr.mxu0 %v105
    %734 = vmatpush1.msra.mxu0 %v104
    %735 = vmatprep.subr.mxu0 %v109
    %736 = vmatpush1.msra.mxu0 %v108
    %737 = vmatprep.subr.mxu0 %v113
    %738 = vmatpush1.msra.mxu0 %v112
    %739 = vmatprep.subr.mxu0 %v117
    %740 = vmatpush1.msra.mxu0 %v116
    %741 = vmatprep.subr.mxu0 %v121
    %742 = vmatpush1.msra.mxu0 %v120
    %743 = vmatprep.subr.mxu0 %v125
    %744 = vmatpush1.msra.mxu0 %v124
    %745 = vmatprep.subr.mxu0 %v129
    %746 = vmatpush1.msra.mxu0 %v128
    %747 = vmatprep.subr.mxu0 %v133
    %748 = vmatpush1.msra.mxu0 %v132
    %749 = vmatprep.subr.mxu0 %v137
    %750 = vmatpush1.msra.mxu0 %v136
    %751 = vmatprep.subr.mxu0 %v141
    %752 = vmatpush1.msra.mxu0 %v140
    %753 = vmatprep.subr.mxu0 %v145
    %754 = vmatpush1.msra.mxu0 %v144
    %755 = vmatprep.subr.mxu0 %v149
    %756 = vmatpush1.msra.mxu0 %v148
    %757 = vmatprep.subr.mxu0 %v153
    %758 = vmatpush1.msra.mxu0 %v152
    %759 = vmatprep.subr.mxu0 %v157
    %760 = vmatpush1.msra.mxu0 %v156
    %761 = vmatprep.subr.mxu0 %v161
    %762 = vmatpush1.msra.mxu0 %v160
    %763 = vmatprep.subr.mxu0 %v165
    %764 = vmatpush1.msra.mxu0 %v164
    %765 = vmatprep.subr.mxu0 %v169
    %766 = vmatpush1.msra.mxu0 %v168
    %767 = vmatprep.subr.mxu0 %v173
    %768 = vmatpush1.msra.mxu0 %v172
    %769 = vmatprep.subr.mxu0 %v177
    %770 = vmatpush1.msra.mxu0 %v176
    %771 = vmatprep.subr.mxu0 %v181
    %772 = vmatpush1.msra.mxu0 %v180
    %773 = vmatprep.subr.mxu0 %v185
    %774 = vmatpush1.msra.mxu0 %v184
    %775 = vmatprep.subr.mxu0 %v189
    %776 = vmatpush1.msra.mxu0 %v188
    %777 = vmatprep.subr.mxu0 %v193
    %778 = vmatpush1.msra.mxu0 %v192
    %779 = vmatprep.subr.mxu0 %v197
    %780 = vmatpush1.msra.mxu0 %v196
    %781 = vmatprep.subr.mxu0 %v201
    %782 = vmatpush1.msra.mxu0 %v200
    %783 = vmatprep.subr.mxu0 %v205
    %784 = vmatpush1.msra.mxu0 %v204
    %785 = vmatprep.subr.mxu0 %v209
    %786 = vmatpush1.msra.mxu0 %v208
    %787 = vmatprep.subr.mxu0 %v213
    %788 = vmatpush1.msra.mxu0 %v212
    %789 = vmatprep.subr.mxu0 %v217
    %790 = vmatpush1.msra.mxu0 %v216
    %791 = vmatprep.mubr.f32.mxu0 %v79
    %792 = vmatmul.mubr.f32.gmra.mrb[0].mxu0 %v78
    %v793 = vpop.f32.mrb[0].mxu0
    %v794 = vadd.f32 %v487, %v793
    %v795 = vpop.f32.mrb[0].mxu0
    %v796 = vadd.f32 %v491, %v795
    %797 = vmatprep.mubr.f32.mxu0 %v85
    %798 = vmatmul.mubr.f32.gmra.mrb[0].mxu0 %v84
    %v799 = vpop.f32.mrb[0].mxu0
    %v800 = vadd.f32 %v487, %v799
    %v801 = vpop.f32.mrb[0].mxu0
    %v802 = vadd.f32 %v491, %v801
    %803 = vdwg.mxu0
    %804 = vmatprep.subr.mxu0 %v221
    %805 = vmatpush1.msra.mxu0 %v220
    %806 = vmatprep.subr.mxu0 %v225
    %807 = vmatpush1.msra.mxu0 %v224
    %808 = vmatprep.subr.mxu0 %v229
    %809 = vmatpush1.msra.mxu0 %v228
    %810 = vmatprep.subr.mxu0 %v233
    %811 = vmatpush1.msra.mxu0 %v232
    %812 = vmatprep.subr.mxu0 %v237
    %813 = vmatpush1.msra.mxu0 %v236
    %814 = vmatprep.subr.mxu0 %v241
    %815 = vmatpush1.msra.mxu0 %v240
    %816 = vmatprep.subr.mxu0 %v245
    %817 = vmatpush1.msra.mxu0 %v244
    %818 = vmatprep.subr.mxu0 %v249
    %819 = vmatpush1.msra.mxu0 %v248
    %820 = vmatprep.subr.mxu0 %v253
    %821 = vmatpush1.msra.mxu0 %v252
    %822 = vmatprep.subr.mxu0 %v257
    %823 = vmatpush1.msra.mxu0 %v256
    %824 = vmatprep.subr.mxu0 %v261
    %825 = vmatpush1.msra.mxu0 %v260
    %826 = vmatprep.subr.mxu0 %v265
    %827 = vmatpush1.msra.mxu0 %v264
    %828 = vmatprep.subr.mxu0 %v269
    %829 = vmatpush1.msra.mxu0 %v268
    %830 = vmatprep.subr.mxu0 %v273
    %831 = vmatpush1.msra.mxu0 %v272
    %832 = vmatprep.subr.mxu0 %v277
    %833 = vmatpush1.msra.mxu0 %v276
    %834 = vmatprep.subr.mxu0 %v281
    %835 = vmatpush1.msra.mxu0 %v280
    %836 = vmatprep.subr.mxu0 %v285
    %837 = vmatpush1.msra.mxu0 %v284
    %838 = vmatprep.subr.mxu0 %v289
    %839 = vmatpush1.msra.mxu0 %v288
    %840 = vmatprep.subr.mxu0 %v293
    %841 = vmatpush1.msra.mxu0 %v292
    %842 = vmatprep.subr.mxu0 %v297
    %843 = vmatpush1.msra.mxu0 %v296
    %844 = vmatprep.subr.mxu0 %v301
    %845 = vmatpush1.msra.mxu0 %v300
    %846 = vmatprep.subr.mxu0 %v305
    %847 = vmatpush1.msra.mxu0 %v304
    %848 = vmatprep.subr.mxu0 %v309
    %849 = vmatpush1.msra.mxu0 %v308
    %850 = vmatprep.subr.mxu0 %v313
    %851 = vmatpush1.msra.mxu0 %v312
    %852 = vmatprep.subr.mxu0 %v317
    %853 = vmatpush1.msra.mxu0 %v316
    %854 = vmatprep.subr.mxu0 %v321
    %855 = vmatpush1.msra.mxu0 %v320
    %856 = vmatprep.subr.mxu0 %v325
    %857 = vmatpush1.msra.mxu0 %v324
    %858 = vmatprep.subr.mxu0 %v329
    %859 = vmatpush1.msra.mxu0 %v328
    %860 = vmatprep.subr.mxu0 %v333
    %861 = vmatpush1.msra.mxu0 %v332
    %862 = vmatprep.subr.mxu0 %v337
    %863 = vmatpush1.msra.mxu0 %v336
    %864 = vmatprep.subr.mxu0 %v341
    %865 = vmatpush1.msra.mxu0 %v340
    %866 = vmatprep.subr.mxu0 %v345
    %867 = vmatpush1.msra.mxu0 %v344
    %868 = vmatprep.mubr.f32.mxu0 %v81
    %869 = vmatmul.mubr.f32.gmra.mrb[0].mxu0 %v80
    %v870 = vpop.f32.mrb[0].mxu0
    %v871 = vadd.f32 %v794, %v870
    %v872 = vpop.f32.mrb[0].mxu0
    %v873 = vadd.f32 %v796, %v872
    %874 = vmatprep.mubr.f32.mxu0 %v87
    %875 = vmatmul.mubr.f32.gmra.mrb[0].mxu0 %v86
    %v876 = vpop.f32.mrb[0].mxu0
    %v877 = vadd.f32 %v800, %v876
    %v878 = vpop.f32.mrb[0].mxu0
    %v879 = vadd.f32 %v802, %v878
    %880 = vdwg.mxu0
    %881 = vmatprep.subr.mxu0 %v349
    %882 = vmatpush1.msra.mxu0 %v348
    %883 = vmatprep.subr.mxu0 %v353
    %884 = vmatpush1.msra.mxu0 %v352
    %885 = vmatprep.subr.mxu0 %v357
    %886 = vmatpush1.msra.mxu0 %v356
    %887 = vmatprep.subr.mxu0 %v361
    %888 = vmatpush1.msra.mxu0 %v360
    %889 = vmatprep.subr.mxu0 %v365
    %890 = vmatpush1.msra.mxu0 %v364
    %891 = vmatprep.subr.mxu0 %v369
    %892 = vmatpush1.msra.mxu0 %v368
    %893 = vmatprep.subr.mxu0 %v373
    %894 = vmatpush1.msra.mxu0 %v372
    %895 = vmatprep.subr.mxu0 %v377
    %896 = vmatpush1.msra.mxu0 %v376
    %897 = vmatprep.subr.mxu0 %v381
    %898 = vmatpush1.msra.mxu0 %v380
    %899 = vmatprep.subr.mxu0 %v385
    %900 = vmatpush1.msra.mxu0 %v384
    %901 = vmatprep.subr.mxu0 %v389
    %902 = vmatpush1.msra.mxu0 %v388
    %903 = vmatprep.subr.mxu0 %v393
    %904 = vmatpush1.msra.mxu0 %v392
    %905 = vmatprep.subr.mxu0 %v397
    %906 = vmatpush1.msra.mxu0 %v396
    %907 = vmatprep.subr.mxu0 %v401
    %908 = vmatpush1.msra.mxu0 %v400
    %909 = vmatprep.subr.mxu0 %v405
    %910 = vmatpush1.msra.mxu0 %v404
    %911 = vmatprep.subr.mxu0 %v409
    %912 = vmatpush1.msra.mxu0 %v408
    %913 = vmatprep.subr.mxu0 %v413
    %914 = vmatpush1.msra.mxu0 %v412
    %915 = vmatprep.subr.mxu0 %v417
    %916 = vmatpush1.msra.mxu0 %v416
    %917 = vmatprep.subr.mxu0 %v421
    %918 = vmatpush1.msra.mxu0 %v420
    %919 = vmatprep.subr.mxu0 %v425
    %920 = vmatpush1.msra.mxu0 %v424
    %921 = vmatprep.subr.mxu0 %v429
    %922 = vmatpush1.msra.mxu0 %v428
    %923 = vmatprep.subr.mxu0 %v433
    %924 = vmatpush1.msra.mxu0 %v432
    %925 = vmatprep.subr.mxu0 %v437
    %926 = vmatpush1.msra.mxu0 %v436
    %927 = vmatprep.subr.mxu0 %v441
    %928 = vmatpush1.msra.mxu0 %v440
    %929 = vmatprep.subr.mxu0 %v445
    %930 = vmatpush1.msra.mxu0 %v444
    %931 = vmatprep.subr.mxu0 %v449
    %932 = vmatpush1.msra.mxu0 %v448
    %933 = vmatprep.subr.mxu0 %v453
    %934 = vmatpush1.msra.mxu0 %v452
    %935 = vmatprep.subr.mxu0 %v457
    %936 = vmatpush1.msra.mxu0 %v456
    %937 = vmatprep.subr.mxu0 %v461
    %938 = vmatpush1.msra.mxu0 %v460
    %939 = vmatprep.subr.mxu0 %v465
    %940 = vmatpush1.msra.mxu0 %v464
    %941 = vmatprep.subr.mxu0 %v469
    %942 = vmatpush1.msra.mxu0 %v468
    %943 = vmatprep.subr.mxu0 %v473
    %944 = vmatpush1.msra.mxu0 %v472
    %945 = vmatprep.mubr.f32.mxu0 %v83
    %946 = vmatmul.mubr.f32.gmra.mrb[0].mxu0 %v82
    %v947 = vpop.f32.mrb[0].mxu0
    %v948 = vadd.f32 %v871, %v947
    %v949 = vpop.f32.mrb[0].mxu0
    %v950 = vadd.f32 %v873, %v949
    %951 = vmatprep.mubr.f32.mxu0 %v89
    %952 = vmatmul.mubr.f32.gmra.mrb[0].mxu0 %v88
    %v953 = vpop.f32.mrb[0].mxu0
    %v954 = vadd.f32 %v877, %v953
    %v955 = vpop.f32.mrb[0].mxu0
    %v956 = vadd.f32 %v879, %v955
    %957 = vdwg.mxu0
    %v958 = vld [vmem:[#allocation7] sm:$0xff]
    %v959 = vld [vmem:[#allocation7 + $0x8] sm:$0xff]
    %v960 = vld [vmem:[#allocation7 + $0x10] sm:$0xff]
    %v961 = vld [vmem:[#allocation7 + $0x18] sm:$0xff]
    %v962 = vld [vmem:[#allocation7 + $0x20] sm:$0xff]
    %v963 = vld [vmem:[#allocation7 + $0x28] sm:$0xff]
    %v964 = vld [vmem:[#allocation7 + $0x30] sm:$0xff]
    %v965 = vld [vmem:[#allocation7 + $0x38] sm:$0xff]
    %v966 = vld [vmem:[#allocation7 + $0x40] sm:$0xff]
    %v967 = vld [vmem:[#allocation7 + $0x48] sm:$0xff]
    %v968 = vld [vmem:[#allocation7 + $0x50] sm:$0xff]
    %v969 = vld [vmem:[#allocation7 + $0x58] sm:$0xff]
    %v970 = vld [vmem:[#allocation7 + $0x60] sm:$0xff]
    %v971 = vld [vmem:[#allocation7 + $0x68] sm:$0xff]
    %v972 = vld [vmem:[#allocation7 + $0x70] sm:$0xff]
    %v973 = vld [vmem:[#allocation7 + $0x78] sm:$0xff]
    %v974 = vld [vmem:[#allocation7 + $0x80] sm:$0xff]
    %v975 = vld [vmem:[#allocation7 + $0x88] sm:$0xff]
    %v976 = vld [vmem:[#allocation7 + $0x90] sm:$0xff]
    %v977 = vld [vmem:[#allocation7 + $0x98] sm:$0xff]
    %v978 = vld [vmem:[#allocation7 + $0xa0] sm:$0xff]
    %v979 = vld [vmem:[#allocation7 + $0xa8] sm:$0xff]
    %v980 = vld [vmem:[#allocation7 + $0xb0] sm:$0xff]
    %v981 = vld [vmem:[#allocation7 + $0xb8] sm:$0xff]
    %v982 = vld [vmem:[#allocation7 + $0xc0] sm:$0xff]
    %v983 = vld [vmem:[#allocation7 + $0xc8] sm:$0xff]
    %v984 = vld [vmem:[#allocation7 + $0xd0] sm:$0xff]
    %v985 = vld [vmem:[#allocation7 + $0xd8] sm:$0xff]
    %v986 = vld [vmem:[#allocation7 + $0xe0] sm:$0xff]
    %v987 = vld [vmem:[#allocation7 + $0xe8] sm:$0xff]
    %v988 = vld [vmem:[#allocation7 + $0xf0] sm:$0xff]
    %v989 = vld [vmem:[#allocation7 + $0xf8] sm:$0xff]
    %v990 = vld [vmem:[#allocation7 + $0x100] sm:$0xff]
    %v991 = vld [vmem:[#allocation7 + $0x108] sm:$0xff]
    %v992 = vld [vmem:[#allocation7 + $0x110] sm:$0xff]
    %v993 = vld [vmem:[#allocation7 + $0x118] sm:$0xff]
    %v994 = vld [vmem:[#allocation7 + $0x120] sm:$0xff]
    %v995 = vld [vmem:[#allocation7 + $0x128] sm:$0xff]
    %v996 = vld [vmem:[#allocation7 + $0x130] sm:$0xff]
    %v997 = vld [vmem:[#allocation7 + $0x138] sm:$0xff]
    %v998 = vld [vmem:[#allocation7 + $0x140] sm:$0xff]
    %v999 = vld [vmem:[#allocation7 + $0x148] sm:$0xff]
    %v1000 = vld [vmem:[#allocation7 + $0x150] sm:$0xff]
    %v1001 = vld [vmem:[#allocation7 + $0x158] sm:$0xff]
    %v1002 = vld [vmem:[#allocation7 + $0x160] sm:$0xff]
    %v1003 = vld [vmem:[#allocation7 + $0x168] sm:$0xff]
    %v1004 = vld [vmem:[#allocation7 + $0x170] sm:$0xff]
    %v1005 = vld [vmem:[#allocation7 + $0x178] sm:$0xff]
    %v1006 = vld [vmem:[#allocation7 + $0x180] sm:$0xff]
    %v1007 = vld [vmem:[#allocation7 + $0x188] sm:$0xff]
    %v1008 = vld [vmem:[#allocation7 + $0x190] sm:$0xff]
    %v1009 = vld [vmem:[#allocation7 + $0x198] sm:$0xff]
    %v1010 = vld [vmem:[#allocation7 + $0x1a0] sm:$0xff]
    %v1011 = vld [vmem:[#allocation7 + $0x1a8] sm:$0xff]
    %v1012 = vld [vmem:[#allocation7 + $0x1b0] sm:$0xff]
    %v1013 = vld [vmem:[#allocation7 + $0x1b8] sm:$0xff]
    %v1014 = vld [vmem:[#allocation7 + $0x1c0] sm:$0xff]
    %v1015 = vld [vmem:[#allocation7 + $0x1c8] sm:$0xff]
    %v1016 = vld [vmem:[#allocation7 + $0x1d0] sm:$0xff]
    %v1017 = vld [vmem:[#allocation7 + $0x1d8] sm:$0xff]
    %v1018 = vld [vmem:[#allocation7 + $0x1e0] sm:$0xff]
    %v1019 = vld [vmem:[#allocation7 + $0x1e8] sm:$0xff]
    %v1020 = vld [vmem:[#allocation7 + $0x1f0] sm:$0xff]
    %v1021 = vld [vmem:[#allocation7 + $0x1f8] sm:$0xff]
    %v1022 = vxor.u32 %v717, 2147483648
    %v1023 = vxor.u32 %v723, 2147483648
    %v1024 = vmul.f32 %v1022, 1.442695
    %v1025 = vpow.pop %v1024
    %v1026 = vmul.f32 %v1023, 1.442695
    %v1027 = vpow.pop %v1026
    %v1028 = vadd.f32 %v1025, 1.0
    %v1029 = vadd.f32 %v1027, 1.0
    %v1030 = vrcp.pop %v1028
    %v1031 = vmul.f32 1.0, %v1030
    %v1032 = vrcp.pop %v1029
    %v1033 = vmul.f32 1.0, %v1032
    %v1034 = vxor.u32 %v719, 2147483648
    %v1035 = vxor.u32 %v725, 2147483648
    %v1036 = vmul.f32 %v1034, 1.442695
    %v1037 = vpow.pop %v1036
    %v1038 = vmul.f32 %v1035, 1.442695
    %v1039 = vpow.pop %v1038
    %v1040 = vadd.f32 %v1037, 1.0
    %v1041 = vadd.f32 %v1039, 1.0
    %v1042 = vrcp.pop %v1040
    %v1043 = vmul.f32 1.0, %v1042
    %v1044 = vrcp.pop %v1041
    %v1045 = vmul.f32 1.0, %v1044
    %v1046 = vtanh.pop %v948
    %v1047 = vtanh.pop %v954
    %v1048 = vxor.u32 %v950, 2147483648
    %v1049 = vxor.u32 %v956, 2147483648
    %v1050 = vmul.f32 %v1048, 1.442695
    %v1051 = vpow.pop %v1050
    %v1052 = vmul.f32 %v1049, 1.442695
    %v1053 = vpow.pop %v1052
    %v1054 = vadd.f32 %v1051, 1.0
    %v1055 = vadd.f32 %v1053, 1.0
    %v1056 = vrcp.pop %v1054
    %v1057 = vmul.f32 1.0, %v1056
    %v1058 = vrcp.pop %v1055
    %v1059 = vmul.f32 1.0, %v1058
    %v1060 = vmul.f32 %v1043, 0.0
    %v1061 = vmul.f32 %v1045, 0.0
    %v1062 = vmul.f32 %v1031, %v1046
    %v1063 = vmul.f32 %v1033, %v1047
    %v1064 = vadd.f32 %v1060, %v1062
    %v1065 = vadd.f32 %v1061, %v1063
    %v1066 = vtanh.pop %v1064
    %v1067 = vtanh.pop %v1065
    %v1068 = vmul.f32 %v1057, %v1066
    %v1069 = vmul.f32 %v1059, %v1067
    %v1072 = vrot.slane %v1069, 7
    %vm1073 = vcmask 1041409
    %v1074 = vsel %vm1073, %v1072, %v1068
    %1076 = vmatprep.subr.mxu0 %v959
    %1077 = vmatpush1.msra.mxu0 %v958
    %1078 = vmatprep.subr.mxu0 %v963
    %1079 = vmatpush1.msra.mxu0 %v962
    %1080 = vmatprep.subr.mxu0 %v967
    %1081 = vmatpush1.msra.mxu0 %v966
    %1082 = vmatprep.subr.mxu0 %v971
    %1083 = vmatpush1.msra.mxu0 %v970
    %1084 = vmatprep.subr.mxu0 %v975
    %1085 = vmatpush1.msra.mxu0 %v974
    %1086 = vmatprep.subr.mxu0 %v979
    %1087 = vmatpush1.msra.mxu0 %v978
    %1088 = vmatprep.subr.mxu0 %v983
    %1089 = vmatpush1.msra.mxu0 %v982
    %1090 = vmatprep.subr.mxu0 %v987
    %1091 = vmatpush1.msra.mxu0 %v986
    %1092 = vmatprep.subr.mxu0 %v991
    %1093 = vmatpush1.msra.mxu0 %v990
    %1094 = vmatprep.subr.mxu0 %v995
    %1095 = vmatpush1.msra.mxu0 %v994
    %1096 = vmatprep.subr.mxu0 %v999
    %1097 = vmatpush1.msra.mxu0 %v998
    %1098 = vmatprep.subr.mxu0 %v1003
    %1099 = vmatpush1.msra.mxu0 %v1002
    %1100 = vmatprep.subr.mxu0 %v1007
    %1101 = vmatpush1.msra.mxu0 %v1006
    %1102 = vmatprep.subr.mxu0 %v1011
    %1103 = vmatpush1.msra.mxu0 %v1010
    %1104 = vmatprep.subr.mxu0 %v1015
    %1105 = vmatpush1.msra.mxu0 %v1014
    %1106 = vmatprep.subr.mxu0 %v1019
    %1107 = vmatpush1.msra.mxu0 %v1018
    %1108 = vmatprep.subr.mxu0 0.0
    %1109 = vmatpush1.msra.mxu0 0.0
    %1110 = vmatprep.subr.mxu0 0.0
    %1111 = vmatpush1.msra.mxu0 0.0
    %1112 = vmatprep.subr.mxu0 0.0
    %1113 = vmatpush1.msra.mxu0 0.0
    %1114 = vmatprep.subr.mxu0 0.0
    %1115 = vmatpush1.msra.mxu0 0.0
    %1116 = vmatprep.subr.mxu0 0.0
    %1117 = vmatpush1.msra.mxu0 0.0
    %1118 = vmatprep.subr.mxu0 0.0
    %1119 = vmatpush1.msra.mxu0 0.0
    %1120 = vmatprep.subr.mxu0 0.0
    %1121 = vmatpush1.msra.mxu0 0.0
    %1122 = vmatprep.subr.mxu0 0.0
    %1123 = vmatpush1.msra.mxu0 0.0
    %1124 = vmatprep.subr.mxu0 0.0
    %1125 = vmatpush1.msra.mxu0 0.0
    %1126 = vmatprep.subr.mxu0 0.0
    %1127 = vmatpush1.msra.mxu0 0.0
    %1128 = vmatprep.subr.mxu0 0.0
    %1129 = vmatpush1.msra.mxu0 0.0
    %1130 = vmatprep.subr.mxu0 0.0
    %1131 = vmatpush1.msra.mxu0 0.0
    %1132 = vmatprep.subr.mxu0 0.0
    %1133 = vmatpush1.msra.mxu0 0.0
    %1134 = vmatprep.subr.mxu0 0.0
    %1135 = vmatpush1.msra.mxu0 0.0
    %1136 = vmatprep.subr.mxu0 0.0
    %1137 = vmatpush1.msra.mxu0 0.0
    %1138 = vmatprep.subr.mxu0 0.0
    %1139 = vmatpush1.msra.mxu0 0.0
    %1140 = vmatprep.mubr.f32.mxu0 0.0
    %1141 = vmatmul.mubr.f32.gmra.mrb[0].mxu0 %v1074
    %v1142 = vpop.f32.mrb[0].mxu0
    %v1143 = vadd.f32 0.0, %v1142
    %v1144 = vpop.f32.mrb[0].mxu0
    %v1145 = vadd.f32 0.0, %v1144
    %1146 = vdwg.mxu0
    %1147 = vmatprep.subr.mxu0 %v961
    %1148 = vmatpush1.msra.mxu0 %v960
    %1149 = vmatprep.subr.mxu0 %v965
    %1150 = vmatpush1.msra.mxu0 %v964
    %1151 = vmatprep.subr.mxu0 %v969
    %1152 = vmatpush1.msra.mxu0 %v968
    %1153 = vmatprep.subr.mxu0 %v973
    %1154 = vmatpush1.msra.mxu0 %v972
    %1155 = vmatprep.subr.mxu0 %v977
    %1156 = vmatpush1.msra.mxu0 %v976
    %1157 = vmatprep.subr.mxu0 %v981
    %1158 = vmatpush1.msra.mxu0 %v980
    %1159 = vmatprep.subr.mxu0 %v985
    %1160 = vmatpush1.msra.mxu0 %v984
    %1161 = vmatprep.subr.mxu0 %v989
    %1162 = vmatpush1.msra.mxu0 %v988
    %1163 = vmatprep.subr.mxu0 %v993
    %1164 = vmatpush1.msra.mxu0 %v992
    %1165 = vmatprep.subr.mxu0 %v997
    %1166 = vmatpush1.msra.mxu0 %v996
    %1167 = vmatprep.subr.mxu0 %v1001
    %1168 = vmatpush1.msra.mxu0 %v1000
    %1169 = vmatprep.subr.mxu0 %v1005
    %1170 = vmatpush1.msra.mxu0 %v1004
    %1171 = vmatprep.subr.mxu0 %v1009
    %1172 = vmatpush1.msra.mxu0 %v1008
    %1173 = vmatprep.subr.mxu0 %v1013
    %1174 = vmatpush1.msra.mxu0 %v1012
    %1175 = vmatprep.subr.mxu0 %v1017
    %1176 = vmatpush1.msra.mxu0 %v1016
    %1177 = vmatprep.subr.mxu0 %v1021
    %1178 = vmatpush1.msra.mxu0 %v1020
    %1179 = vmatprep.subr.mxu0 0.0
    %1180 = vmatpush1.msra.mxu0 0.0
    %1181 = vmatprep.subr.mxu0 0.0
    %1182 = vmatpush1.msra.mxu0 0.0
    %1183 = vmatprep.subr.mxu0 0.0
    %1184 = vmatpush1.msra.mxu0 0.0
    %1185 = vmatprep.subr.mxu0 0.0
    %1186 = vmatpush1.msra.mxu0 0.0
    %1187 = vmatprep.subr.mxu0 0.0
    %1188 = vmatpush1.msra.mxu0 0.0
    %1189 = vmatprep.subr.mxu0 0.0
    %1190 = vmatpush1.msra.mxu0 0.0
    %1191 = vmatprep.subr.mxu0 0.0
    %1192 = vmatpush1.msra.mxu0 0.0
    %1193 = vmatprep.subr.mxu0 0.0
    %1194 = vmatpush1.msra.mxu0 0.0
    %1195 = vmatprep.subr.mxu0 0.0
    %1196 = vmatpush1.msra.mxu0 0.0
    %1197 = vmatprep.subr.mxu0 0.0
    %1198 = vmatpush1.msra.mxu0 0.0
    %1199 = vmatprep.subr.mxu0 0.0
    %1200 = vmatpush1.msra.mxu0 0.0
    %1201 = vmatprep.subr.mxu0 0.0
    %1202 = vmatpush1.msra.mxu0 0.0
    %1203 = vmatprep.subr.mxu0 0.0
    %1204 = vmatpush1.msra.mxu0 0.0
    %1205 = vmatprep.subr.mxu0 0.0
    %1206 = vmatpush1.msra.mxu0 0.0
    %1207 = vmatprep.subr.mxu0 0.0
    %1208 = vmatpush1.msra.mxu0 0.0
    %1209 = vmatprep.subr.mxu0 0.0
    %1210 = vmatpush1.msra.mxu0 0.0
    %1211 = vmatprep.mubr.f32.mxu0 0.0
    %1212 = vmatmul.mubr.f32.gmra.mrb[0].mxu0 %v1074
    %v1213 = vpop.f32.mrb[0].mxu0
    %v1214 = vadd.f32 0.0, %v1213
    %v1215 = vpop.f32.mrb[0].mxu0
    %v1216 = vadd.f32 0.0, %v1215
    %1217 = vdwg.mxu0
    %v1222 = vrot.slane %v1143, 7
    %v1223 = vrot.slane %v1145, 7
    %v1224 = vrot.slane %v1214, 7
    %v1225 = vrot.slane %v1216, 7
    %v1234 = vadd.f32 %v717, %v1222
    %v1235 = vadd.f32 %v719, %v1223
    %v1236 = vadd.f32 %v948, %v1224
    %v1237 = vadd.f32 %v950, %v1225
    %v1238 = vadd.f32 %v723, %v1143
    %v1239 = vadd.f32 %v725, %v1145
    %v1240 = vadd.f32 %v954, %v1214
    %v1241 = vadd.f32 %v956, %v1216
    %v1242 = vxor.u32 %v1234, 2147483648
    %v1243 = vxor.u32 %v1238, 2147483648
    %v1244 = vmul.f32 %v1242, 1.442695
    %v1245 = vpow.pop %v1244
    %v1246 = vmul.f32 %v1243, 1.442695
    %v1247 = vpow.pop %v1246
    %v1248 = vadd.f32 %v1245, 1.0
    %v1249 = vadd.f32 %v1247, 1.0
    %v1250 = vrcp.pop %v1248
    %v1251 = vmul.f32 1.0, %v1250
    %v1252 = vrcp.pop %v1249
    %v1253 = vmul.f32 1.0, %v1252
    %v1254 = vxor.u32 %v1235, 2147483648
    %v1255 = vxor.u32 %v1239, 2147483648
    %v1256 = vmul.f32 %v1254, 1.442695
    %v1257 = vpow.pop %v1256
    %v1258 = vmul.f32 %v1255, 1.442695
    %v1259 = vpow.pop %v1258
    %v1260 = vadd.f32 %v1257, 1.0
    %v1261 = vadd.f32 %v1259, 1.0
    %v1262 = vrcp.pop %v1260
    %v1263 = vmul.f32 1.0, %v1262
    %v1264 = vrcp.pop %v1261
    %v1265 = vmul.f32 1.0, %v1264
    %v1266 = vtanh.pop %v1236
    %v1267 = vtanh.pop %v1240
    %v1268 = vxor.u32 %v1237, 2147483648
    %v1269 = vxor.u32 %v1241, 2147483648
    %v1270 = vmul.f32 %v1268, 1.442695
    %v1271 = vpow.pop %v1270
    %v1272 = vmul.f32 %v1269, 1.442695
    %v1273 = vpow.pop %v1272
    %v1274 = vadd.f32 %v1271, 1.0
    %v1275 = vadd.f32 %v1273, 1.0
    %v1276 = vrcp.pop %v1274
    %v1277 = vmul.f32 1.0, %v1276
    %v1278 = vrcp.pop %v1275
    %v1279 = vmul.f32 1.0, %v1278
    %v1282 = vrot.slane %v1064, 7
    %v1283 = vrot.slane %v1065, 7
    %v1286 = vmul.f32 %v1263, %v1282
    %v1287 = vmul.f32 %v1265, %v1283
    %v1288 = vmul.f32 %v1251, %v1266
    %v1289 = vmul.f32 %v1253, %v1267
    %v1290 = vadd.f32 %v1286, %v1288
    %v1291 = vadd.f32 %v1287, %v1289
    %v1292 = vtanh.pop %v1290
    %v1293 = vtanh.pop %v1291
    %v1294 = vmul.f32 %v1277, %v1292
    %v1295 = vmul.f32 %v1279, %v1293
    %v1298 = vrot.slane %v1294, 1
    %v1299 = vsel %vm1073, %v1295, %v1298
    %1301 = vmatprep.subr.mxu0 %v959
    %1302 = vmatpush1.msra.mxu0 %v958
    %1303 = vmatprep.subr.mxu0 %v963
    %1304 = vmatpush1.msra.mxu0 %v962
    %1305 = vmatprep.subr.mxu0 %v967
    %1306 = vmatpush1.msra.mxu0 %v966
    %1307 = vmatprep.subr.mxu0 %v971
    %1308 = vmatpush1.msra.mxu0 %v970
    %1309 = vmatprep.subr.mxu0 %v975
    %1310 = vmatpush1.msra.mxu0 %v974
    %1311 = vmatprep.subr.mxu0 %v979
    %1312 = vmatpush1.msra.mxu0 %v978
    %1313 = vmatprep.subr.mxu0 %v983
    %1314 = vmatpush1.msra.mxu0 %v982
    %1315 = vmatprep.subr.mxu0 %v987
    %1316 = vmatpush1.msra.mxu0 %v986
    %1317 = vmatprep.subr.mxu0 %v991
    %1318 = vmatpush1.msra.mxu0 %v990
    %1319 = vmatprep.subr.mxu0 %v995
    %1320 = vmatpush1.msra.mxu0 %v994
    %1321 = vmatprep.subr.mxu0 %v999
    %1322 = vmatpush1.msra.mxu0 %v998
    %1323 = vmatprep.subr.mxu0 %v1003
    %1324 = vmatpush1.msra.mxu0 %v1002
    %1325 = vmatprep.subr.mxu0 %v1007
    %1326 = vmatpush1.msra.mxu0 %v1006
    %1327 = vmatprep.subr.mxu0 %v1011
    %1328 = vmatpush1.msra.mxu0 %v1010
    %1329 = vmatprep.subr.mxu0 %v1015
    %1330 = vmatpush1.msra.mxu0 %v1014
    %1331 = vmatprep.subr.mxu0 %v1019
    %1332 = vmatpush1.msra.mxu0 %v1018
    %1333 = vmatprep.subr.mxu0 0.0
    %1334 = vmatpush1.msra.mxu0 0.0
    %1335 = vmatprep.subr.mxu0 0.0
    %1336 = vmatpush1.msra.mxu0 0.0
    %1337 = vmatprep.subr.mxu0 0.0
    %1338 = vmatpush1.msra.mxu0 0.0
    %1339 = vmatprep.subr.mxu0 0.0
    %1340 = vmatpush1.msra.mxu0 0.0
    %1341 = vmatprep.subr.mxu0 0.0
    %1342 = vmatpush1.msra.mxu0 0.0
    %1343 = vmatprep.subr.mxu0 0.0
    %1344 = vmatpush1.msra.mxu0 0.0
    %1345 = vmatprep.subr.mxu0 0.0
    %1346 = vmatpush1.msra.mxu0 0.0
    %1347 = vmatprep.subr.mxu0 0.0
    %1348 = vmatpush1.msra.mxu0 0.0
    %1349 = vmatprep.subr.mxu0 0.0
    %1350 = vmatpush1.msra.mxu0 0.0
    %1351 = vmatprep.subr.mxu0 0.0
    %1352 = vmatpush1.msra.mxu0 0.0
    %1353 = vmatprep.subr.mxu0 0.0
    %1354 = vmatpush1.msra.mxu0 0.0
    %1355 = vmatprep.subr.mxu0 0.0
    %1356 = vmatpush1.msra.mxu0 0.0
    %1357 = vmatprep.subr.mxu0 0.0
    %1358 = vmatpush1.msra.mxu0 0.0
    %1359 = vmatprep.subr.mxu0 0.0
    %1360 = vmatpush1.msra.mxu0 0.0
    %1361 = vmatprep.subr.mxu0 0.0
    %1362 = vmatpush1.msra.mxu0 0.0
    %1363 = vmatprep.subr.mxu0 0.0
    %1364 = vmatpush1.msra.mxu0 0.0
    %1365 = vmatprep.mubr.f32.mxu0 0.0
    %1366 = vmatmul.mubr.f32.gmra.mrb[0].mxu0 %v1299
    %v1367 = vpop.f32.mrb[0].mxu0
    %v1368 = vadd.f32 0.0, %v1367
    %v1369 = vpop.f32.mrb[0].mxu0
    %v1370 = vadd.f32 0.0, %v1369
    %1371 = vdwg.mxu0
    %1372 = vmatprep.subr.mxu0 %v961
    %1373 = vmatpush1.msra.mxu0 %v960
    %1374 = vmatprep.subr.mxu0 %v965
    %1375 = vmatpush1.msra.mxu0 %v964
    %1376 = vmatprep.subr.mxu0 %v969
    %1377 = vmatpush1.msra.mxu0 %v968
    %1378 = vmatprep.subr.mxu0 %v973
    %1379 = vmatpush1.msra.mxu0 %v972
    %1380 = vmatprep.subr.mxu0 %v977
    %1381 = vmatpush1.msra.mxu0 %v976
    %1382 = vmatprep.subr.mxu0 %v981
    %1383 = vmatpush1.msra.mxu0 %v980
    %1384 = vmatprep.subr.mxu0 %v985
    %1385 = vmatpush1.msra.mxu0 %v984
    %1386 = vmatprep.subr.mxu0 %v989
    %1387 = vmatpush1.msra.mxu0 %v988
    %1388 = vmatprep.subr.mxu0 %v993
    %1389 = vmatpush1.msra.mxu0 %v992
    %1390 = vmatprep.subr.mxu0 %v997
    %1391 = vmatpush1.msra.mxu0 %v996
    %1392 = vmatprep.subr.mxu0 %v1001
    %1393 = vmatpush1.msra.mxu0 %v1000
    %1394 = vmatprep.subr.mxu0 %v1005
    %1395 = vmatpush1.msra.mxu0 %v1004
    %1396 = vmatprep.subr.mxu0 %v1009
    %1397 = vmatpush1.msra.mxu0 %v1008
    %1398 = vmatprep.subr.mxu0 %v1013
    %1399 = vmatpush1.msra.mxu0 %v1012
    %1400 = vmatprep.subr.mxu0 %v1017
    %1401 = vmatpush1.msra.mxu0 %v1016
    %1402 = vmatprep.subr.mxu0 %v1021
    %1403 = vmatpush1.msra.mxu0 %v1020
    %1404 = vmatprep.subr.mxu0 0.0
    %1405 = vmatpush1.msra.mxu0 0.0
    %1406 = vmatprep.subr.mxu0 0.0
    %1407 = vmatpush1.msra.mxu0 0.0
    %1408 = vmatprep.subr.mxu0 0.0
    %1409 = vmatpush1.msra.mxu0 0.0
    %1410 = vmatprep.subr.mxu0 0.0
    %1411 = vmatpush1.msra.mxu0 0.0
    %1412 = vmatprep.subr.mxu0 0.0
    %1413 = vmatpush1.msra.mxu0 0.0
    %1414 = vmatprep.subr.mxu0 0.0
    %1415 = vmatpush1.msra.mxu0 0.0
    %1416 = vmatprep.subr.mxu0 0.0
    %1417 = vmatpush1.msra.mxu0 0.0
    %1418 = vmatprep.subr.mxu0 0.0
    %1419 = vmatpush1.msra.mxu0 0.0
    %1420 = vmatprep.subr.mxu0 0.0
    %1421 = vmatpush1.msra.mxu0 0.0
    %1422 = vmatprep.subr.mxu0 0.0
    %1423 = vmatpush1.msra.mxu0 0.0
    %1424 = vmatprep.subr.mxu0 0.0
    %1425 = vmatpush1.msra.mxu0 0.0
    %1426 = vmatprep.subr.mxu0 0.0
    %1427 = vmatpush1.msra.mxu0 0.0
    %1428 = vmatprep.subr.mxu0 0.0
    %1429 = vmatpush1.msra.mxu0 0.0
    %1430 = vmatprep.subr.mxu0 0.0
    %1431 = vmatpush1.msra.mxu0 0.0
    %1432 = vmatprep.subr.mxu0 0.0
    %1433 = vmatpush1.msra.mxu0 0.0
    %1434 = vmatprep.subr.mxu0 0.0
    %1435 = vmatpush1.msra.mxu0 0.0
    %1436 = vmatprep.mubr.f32.mxu0 0.0
    %1437 = vmatmul.mubr.f32.gmra.mrb[0].mxu0 %v1299
    %v1438 = vpop.f32.mrb[0].mxu0
    %v1439 = vadd.f32 0.0, %v1438
    %v1440 = vpop.f32.mrb[0].mxu0
    %v1441 = vadd.f32 0.0, %v1440
    %1442 = vdwg.mxu0
    %v1447 = vrot.slane %v1368, 6
    %v1448 = vrot.slane %v1370, 6
    %v1449 = vrot.slane %v1439, 6
    %v1450 = vrot.slane %v1441, 6
    %v1451 = vrot.slane %v1368, 7
    %v1452 = vrot.slane %v1370, 7
    %v1453 = vrot.slane %v1439, 7
    %v1454 = vrot.slane %v1441, 7
    %v1463 = vadd.f32 %v717, %v1447
    %v1464 = vadd.f32 %v719, %v1448
    %v1465 = vadd.f32 %v948, %v1449
    %v1466 = vadd.f32 %v950, %v1450
    %v1467 = vadd.f32 %v723, %v1451
    %v1468 = vadd.f32 %v725, %v1452
    %v1469 = vadd.f32 %v954, %v1453
    %v1470 = vadd.f32 %v956, %v1454
    %v1471 = vxor.u32 %v1463, 2147483648
    %v1472 = vxor.u32 %v1467, 2147483648
    %v1473 = vmul.f32 %v1471, 1.442695
    %v1474 = vpow.pop %v1473
    %v1475 = vmul.f32 %v1472, 1.442695
    %v1476 = vpow.pop %v1475
    %v1477 = vadd.f32 %v1474, 1.0
    %v1478 = vadd.f32 %v1476, 1.0
    %v1479 = vrcp.pop %v1477
    %v1480 = vmul.f32 1.0, %v1479
    %v1481 = vrcp.pop %v1478
    %v1482 = vmul.f32 1.0, %v1481
    %v1483 = vxor.u32 %v1464, 2147483648
    %v1484 = vxor.u32 %v1468, 2147483648
    %v1485 = vmul.f32 %v1483, 1.442695
    %v1486 = vpow.pop %v1485
    %v1487 = vmul.f32 %v1484, 1.442695
    %v1488 = vpow.pop %v1487
    %v1489 = vadd.f32 %v1486, 1.0
    %v1490 = vadd.f32 %v1488, 1.0
    %v1491 = vrcp.pop %v1489
    %v1492 = vmul.f32 1.0, %v1491
    %v1493 = vrcp.pop %v1490
    %v1494 = vmul.f32 1.0, %v1493
    %v1495 = vtanh.pop %v1465
    %v1496 = vtanh.pop %v1469
    %v1497 = vxor.u32 %v1466, 2147483648
    %v1498 = vxor.u32 %v1470, 2147483648
    %v1499 = vmul.f32 %v1497, 1.442695
    %v1500 = vpow.pop %v1499
    %v1501 = vmul.f32 %v1498, 1.442695
    %v1502 = vpow.pop %v1501
    %v1503 = vadd.f32 %v1500, 1.0
    %v1504 = vadd.f32 %v1502, 1.0
    %v1505 = vrcp.pop %v1503
    %v1506 = vmul.f32 1.0, %v1505
    %v1507 = vrcp.pop %v1504
    %v1508 = vmul.f32 1.0, %v1507
    %v1511 = vrot.slane %v1290, 7
    %v1512 = vrot.slane %v1291, 7
    %v1515 = vmul.f32 %v1492, %v1511
    %v1516 = vmul.f32 %v1494, %v1512
    %v1517 = vmul.f32 %v1480, %v1495
    %v1518 = vmul.f32 %v1482, %v1496
    %v1519 = vadd.f32 %v1515, %v1517
    %v1520 = vadd.f32 %v1516, %v1518
    %v1521 = vtanh.pop %v1519
    %v1522 = vtanh.pop %v1520
    %v1523 = vmul.f32 %v1506, %v1521
    %v1524 = vmul.f32 %v1508, %v1522
    %v1527 = vrot.slane %v1523, 2
    %v1528 = vrot.slane %v1524, 1
    %v1529 = vsel %vm1073, %v1528, %v1527
    %1531 = vmatprep.subr.mxu0 %v959
    %1532 = vmatpush1.msra.mxu0 %v958
    %1533 = vmatprep.subr.mxu0 %v963
    %1534 = vmatpush1.msra.mxu0 %v962
    %1535 = vmatprep.subr.mxu0 %v967
    %1536 = vmatpush1.msra.mxu0 %v966
    %1537 = vmatprep.subr.mxu0 %v971
    %1538 = vmatpush1.msra.mxu0 %v970
    %1539 = vmatprep.subr.mxu0 %v975
    %1540 = vmatpush1.msra.mxu0 %v974
    %1541 = vmatprep.subr.mxu0 %v979
    %1542 = vmatpush1.msra.mxu0 %v978
    %1543 = vmatprep.subr.mxu0 %v983
    %1544 = vmatpush1.msra.mxu0 %v982
    %1545 = vmatprep.subr.mxu0 %v987
    %1546 = vmatpush1.msra.mxu0 %v986
    %1547 = vmatprep.subr.mxu0 %v991
    %1548 = vmatpush1.msra.mxu0 %v990
    %1549 = vmatprep.subr.mxu0 %v995
    %1550 = vmatpush1.msra.mxu0 %v994
    %1551 = vmatprep.subr.mxu0 %v999
    %1552 = vmatpush1.msra.mxu0 %v998
    %1553 = vmatprep.subr.mxu0 %v1003
    %1554 = vmatpush1.msra.mxu0 %v1002
    %1555 = vmatprep.subr.mxu0 %v1007
    %1556 = vmatpush1.msra.mxu0 %v1006
    %1557 = vmatprep.subr.mxu0 %v1011
    %1558 = vmatpush1.msra.mxu0 %v1010
    %1559 = vmatprep.subr.mxu0 %v1015
    %1560 = vmatpush1.msra.mxu0 %v1014
    %1561 = vmatprep.subr.mxu0 %v1019
    %1562 = vmatpush1.msra.mxu0 %v1018
    %1563 = vmatprep.subr.mxu0 0.0
    %1564 = vmatpush1.msra.mxu0 0.0
    %1565 = vmatprep.subr.mxu0 0.0
    %1566 = vmatpush1.msra.mxu0 0.0
    %1567 = vmatprep.subr.mxu0 0.0
    %1568 = vmatpush1.msra.mxu0 0.0
    %1569 = vmatprep.subr.mxu0 0.0
    %1570 = vmatpush1.msra.mxu0 0.0
    %1571 = vmatprep.subr.mxu0 0.0
    %1572 = vmatpush1.msra.mxu0 0.0
    %1573 = vmatprep.subr.mxu0 0.0
    %1574 = vmatpush1.msra.mxu0 0.0
    %1575 = vmatprep.subr.mxu0 0.0
    %1576 = vmatpush1.msra.mxu0 0.0
    %1577 = vmatprep.subr.mxu0 0.0
    %1578 = vmatpush1.msra.mxu0 0.0
    %1579 = vmatprep.subr.mxu0 0.0
    %1580 = vmatpush1.msra.mxu0 0.0
    %1581 = vmatprep.subr.mxu0 0.0
    %1582 = vmatpush1.msra.mxu0 0.0
    %1583 = vmatprep.subr.mxu0 0.0
    %1584 = vmatpush1.msra.mxu0 0.0
    %1585 = vmatprep.subr.mxu0 0.0
    %1586 = vmatpush1.msra.mxu0 0.0
    %1587 = vmatprep.subr.mxu0 0.0
    %1588 = vmatpush1.msra.mxu0 0.0
    %1589 = vmatprep.subr.mxu0 0.0
    %1590 = vmatpush1.msra.mxu0 0.0
    %1591 = vmatprep.subr.mxu0 0.0
    %1592 = vmatpush1.msra.mxu0 0.0
    %1593 = vmatprep.subr.mxu0 0.0
    %1594 = vmatpush1.msra.mxu0 0.0
    %1595 = vmatprep.mubr.f32.mxu0 0.0
    %1596 = vmatmul.mubr.f32.gmra.mrb[0].mxu0 %v1529
    %v1597 = vpop.f32.mrb[0].mxu0
    %v1598 = vadd.f32 0.0, %v1597
    %v1599 = vpop.f32.mrb[0].mxu0
    %v1600 = vadd.f32 0.0, %v1599
    %1601 = vdwg.mxu0
    %1602 = vmatprep.subr.mxu0 %v961
    %1603 = vmatpush1.msra.mxu0 %v960
    %1604 = vmatprep.subr.mxu0 %v965
    %1605 = vmatpush1.msra.mxu0 %v964
    %1606 = vmatprep.subr.mxu0 %v969
    %1607 = vmatpush1.msra.mxu0 %v968
    %1608 = vmatprep.subr.mxu0 %v973
    %1609 = vmatpush1.msra.mxu0 %v972
    %1610 = vmatprep.subr.mxu0 %v977
    %1611 = vmatpush1.msra.mxu0 %v976
    %1612 = vmatprep.subr.mxu0 %v981
    %1613 = vmatpush1.msra.mxu0 %v980
    %1614 = vmatprep.subr.mxu0 %v985
    %1615 = vmatpush1.msra.mxu0 %v984
    %1616 = vmatprep.subr.mxu0 %v989
    %1617 = vmatpush1.msra.mxu0 %v988
    %1618 = vmatprep.subr.mxu0 %v993
    %1619 = vmatpush1.msra.mxu0 %v992
    %1620 = vmatprep.subr.mxu0 %v997
    %1621 = vmatpush1.msra.mxu0 %v996
    %1622 = vmatprep.subr.mxu0 %v1001
    %1623 = vmatpush1.msra.mxu0 %v1000
    %1624 = vmatprep.subr.mxu0 %v1005
    %1625 = vmatpush1.msra.mxu0 %v1004
    %1626 = vmatprep.subr.mxu0 %v1009
    %1627 = vmatpush1.msra.mxu0 %v1008
    %1628 = vmatprep.subr.mxu0 %v1013
    %1629 = vmatpush1.msra.mxu0 %v1012
    %1630 = vmatprep.subr.mxu0 %v1017
    %1631 = vmatpush1.msra.mxu0 %v1016
    %1632 = vmatprep.subr.mxu0 %v1021
    %1633 = vmatpush1.msra.mxu0 %v1020
    %1634 = vmatprep.subr.mxu0 0.0
    %1635 = vmatpush1.msra.mxu0 0.0
    %1636 = vmatprep.subr.mxu0 0.0
    %1637 = vmatpush1.msra.mxu0 0.0
    %1638 = vmatprep.subr.mxu0 0.0
    %1639 = vmatpush1.msra.mxu0 0.0
    %1640 = vmatprep.subr.mxu0 0.0
    %1641 = vmatpush1.msra.mxu0 0.0
    %1642 = vmatprep.subr.mxu0 0.0
    %1643 = vmatpush1.msra.mxu0 0.0
    %1644 = vmatprep.subr.mxu0 0.0
    %1645 = vmatpush1.msra.mxu0 0.0
    %1646 = vmatprep.subr.mxu0 0.0
    %1647 = vmatpush1.msra.mxu0 0.0
    %1648 = vmatprep.subr.mxu0 0.0
    %1649 = vmatpush1.msra.mxu0 0.0
    %1650 = vmatprep.subr.mxu0 0.0
    %1651 = vmatpush1.msra.mxu0 0.0
    %1652 = vmatprep.subr.mxu0 0.0
    %1653 = vmatpush1.msra.mxu0 0.0
    %1654 = vmatprep.subr.mxu0 0.0
    %1655 = vmatpush1.msra.mxu0 0.0
    %1656 = vmatprep.subr.mxu0 0.0
    %1657 = vmatpush1.msra.mxu0 0.0
    %1658 = vmatprep.subr.mxu0 0.0
    %1659 = vmatpush1.msra.mxu0 0.0
    %1660 = vmatprep.subr.mxu0 0.0
    %1661 = vmatpush1.msra.mxu0 0.0
    %1662 = vmatprep.subr.mxu0 0.0
    %1663 = vmatpush1.msra.mxu0 0.0
    %1664 = vmatprep.subr.mxu0 0.0
    %1665 = vmatpush1.msra.mxu0 0.0
    %1666 = vmatprep.mubr.f32.mxu0 0.0
    %1667 = vmatmul.mubr.f32.gmra.mrb[0].mxu0 %v1529
    %v1668 = vpop.f32.mrb[0].mxu0
    %v1669 = vadd.f32 0.0, %v1668
    %v1670 = vpop.f32.mrb[0].mxu0
    %v1671 = vadd.f32 0.0, %v1670
    %1672 = vdwg.mxu0
    %v1677 = vrot.slane %v1598, 5
    %v1678 = vrot.slane %v1600, 5
    %v1679 = vrot.slane %v1669, 5
    %v1680 = vrot.slane %v1671, 5
    %v1681 = vrot.slane %v1598, 6
    %v1682 = vrot.slane %v1600, 6
    %v1683 = vrot.slane %v1669, 6
    %v1684 = vrot.slane %v1671, 6
    %v1693 = vadd.f32 %v717, %v1677
    %v1694 = vadd.f32 %v719, %v1678
    %v1695 = vadd.f32 %v948, %v1679
    %v1696 = vadd.f32 %v950, %v1680
    %v1697 = vadd.f32 %v723, %v1681
    %v1698 = vadd.f32 %v725, %v1682
    %v1699 = vadd.f32 %v954, %v1683
    %v1700 = vadd.f32 %v956, %v1684
    %v1701 = vxor.u32 %v1693, 2147483648
    %v1702 = vxor.u32 %v1697, 2147483648
    %v1703 = vmul.f32 %v1701, 1.442695
    %v1704 = vpow.pop %v1703
    %v1705 = vmul.f32 %v1702, 1.442695
    %v1706 = vpow.pop %v1705
    %v1707 = vadd.f32 %v1704, 1.0
    %v1708 = vadd.f32 %v1706, 1.0
    %v1709 = vrcp.pop %v1707
    %v1710 = vmul.f32 1.0, %v1709
    %v1711 = vrcp.pop %v1708
    %v1712 = vmul.f32 1.0, %v1711
    %v1713 = vxor.u32 %v1694, 2147483648
    %v1714 = vxor.u32 %v1698, 2147483648
    %v1715 = vmul.f32 %v1713, 1.442695
    %v1716 = vpow.pop %v1715
    %v1717 = vmul.f32 %v1714, 1.442695
    %v1718 = vpow.pop %v1717
    %v1719 = vadd.f32 %v1716, 1.0
    %v1720 = vadd.f32 %v1718, 1.0
    %v1721 = vrcp.pop %v1719
    %v1722 = vmul.f32 1.0, %v1721
    %v1723 = vrcp.pop %v1720
    %v1724 = vmul.f32 1.0, %v1723
    %v1725 = vtanh.pop %v1695
    %v1726 = vtanh.pop %v1699
    %v1727 = vxor.u32 %v1696, 2147483648
    %v1728 = vxor.u32 %v1700, 2147483648
    %v1729 = vmul.f32 %v1727, 1.442695
    %v1730 = vpow.pop %v1729
    %v1731 = vmul.f32 %v1728, 1.442695
    %v1732 = vpow.pop %v1731
    %v1733 = vadd.f32 %v1730, 1.0
    %v1734 = vadd.f32 %v1732, 1.0
    %v1735 = vrcp.pop %v1733
    %v1736 = vmul.f32 1.0, %v1735
    %v1737 = vrcp.pop %v1734
    %v1738 = vmul.f32 1.0, %v1737
    %v1741 = vrot.slane %v1519, 7
    %v1742 = vrot.slane %v1520, 7
    %v1745 = vmul.f32 %v1722, %v1741
    %v1746 = vmul.f32 %v1724, %v1742
    %v1747 = vmul.f32 %v1710, %v1725
    %v1748 = vmul.f32 %v1712, %v1726
    %v1749 = vadd.f32 %v1745, %v1747
    %v1750 = vadd.f32 %v1746, %v1748
    %v1751 = vtanh.pop %v1749
    %v1752 = vtanh.pop %v1750
    %v1753 = vmul.f32 %v1736, %v1751
    %v1754 = vmul.f32 %v1738, %v1752
    %v1757 = vrot.slane %v1753, 3
    %v1758 = vrot.slane %v1754, 2
    %v1759 = vsel %vm1073, %v1758, %v1757
    %1761 = vmatprep.subr.mxu0 %v959
    %1762 = vmatpush1.msra.mxu0 %v958
    %1763 = vmatprep.subr.mxu0 %v963
    %1764 = vmatpush1.msra.mxu0 %v962
    %1765 = vmatprep.subr.mxu0 %v967
    %1766 = vmatpush1.msra.mxu0 %v966
    %1767 = vmatprep.subr.mxu0 %v971
    %1768 = vmatpush1.msra.mxu0 %v970
    %1769 = vmatprep.subr.mxu0 %v975
    %1770 = vmatpush1.msra.mxu0 %v974
    %1771 = vmatprep.subr.mxu0 %v979
    %1772 = vmatpush1.msra.mxu0 %v978
    %1773 = vmatprep.subr.mxu0 %v983
    %1774 = vmatpush1.msra.mxu0 %v982
    %1775 = vmatprep.subr.mxu0 %v987
    %1776 = vmatpush1.msra.mxu0 %v986
    %1777 = vmatprep.subr.mxu0 %v991
    %1778 = vmatpush1.msra.mxu0 %v990
    %1779 = vmatprep.subr.mxu0 %v995
    %1780 = vmatpush1.msra.mxu0 %v994
    %1781 = vmatprep.subr.mxu0 %v999
    %1782 = vmatpush1.msra.mxu0 %v998
    %1783 = vmatprep.subr.mxu0 %v1003
    %1784 = vmatpush1.msra.mxu0 %v1002
    %1785 = vmatprep.subr.mxu0 %v1007
    %1786 = vmatpush1.msra.mxu0 %v1006
    %1787 = vmatprep.subr.mxu0 %v1011
    %1788 = vmatpush1.msra.mxu0 %v1010
    %1789 = vmatprep.subr.mxu0 %v1015
    %1790 = vmatpush1.msra.mxu0 %v1014
    %1791 = vmatprep.subr.mxu0 %v1019
    %1792 = vmatpush1.msra.mxu0 %v1018
    %1793 = vmatprep.subr.mxu0 0.0
    %1794 = vmatpush1.msra.mxu0 0.0
    %1795 = vmatprep.subr.mxu0 0.0
    %1796 = vmatpush1.msra.mxu0 0.0
    %1797 = vmatprep.subr.mxu0 0.0
    %1798 = vmatpush1.msra.mxu0 0.0
    %1799 = vmatprep.subr.mxu0 0.0
    %1800 = vmatpush1.msra.mxu0 0.0
    %1801 = vmatprep.subr.mxu0 0.0
    %1802 = vmatpush1.msra.mxu0 0.0
    %1803 = vmatprep.subr.mxu0 0.0
    %1804 = vmatpush1.msra.mxu0 0.0
    %1805 = vmatprep.subr.mxu0 0.0
    %1806 = vmatpush1.msra.mxu0 0.0
    %1807 = vmatprep.subr.mxu0 0.0
    %1808 = vmatpush1.msra.mxu0 0.0
    %1809 = vmatprep.subr.mxu0 0.0
    %1810 = vmatpush1.msra.mxu0 0.0
    %1811 = vmatprep.subr.mxu0 0.0
    %1812 = vmatpush1.msra.mxu0 0.0
    %1813 = vmatprep.subr.mxu0 0.0
    %1814 = vmatpush1.msra.mxu0 0.0
    %1815 = vmatprep.subr.mxu0 0.0
    %1816 = vmatpush1.msra.mxu0 0.0
    %1817 = vmatprep.subr.mxu0 0.0
    %1818 = vmatpush1.msra.mxu0 0.0
    %1819 = vmatprep.subr.mxu0 0.0
    %1820 = vmatpush1.msra.mxu0 0.0
    %1821 = vmatprep.subr.mxu0 0.0
    %1822 = vmatpush1.msra.mxu0 0.0
    %1823 = vmatprep.subr.mxu0 0.0
    %1824 = vmatpush1.msra.mxu0 0.0
    %1825 = vmatprep.mubr.f32.mxu0 0.0
    %1826 = vmatmul.mubr.f32.gmra.mrb[0].mxu0 %v1759
    %v1827 = vpop.f32.mrb[0].mxu0
    %v1828 = vadd.f32 0.0, %v1827
    %v1829 = vpop.f32.mrb[0].mxu0
    %v1830 = vadd.f32 0.0, %v1829
    %1831 = vdwg.mxu0
    %1832 = vmatprep.subr.mxu0 %v961
    %1833 = vmatpush1.msra.mxu0 %v960
    %1834 = vmatprep.subr.mxu0 %v965
    %1835 = vmatpush1.msra.mxu0 %v964
    %1836 = vmatprep.subr.mxu0 %v969
    %1837 = vmatpush1.msra.mxu0 %v968
    %1838 = vmatprep.subr.mxu0 %v973
    %1839 = vmatpush1.msra.mxu0 %v972
    %1840 = vmatprep.subr.mxu0 %v977
    %1841 = vmatpush1.msra.mxu0 %v976
    %1842 = vmatprep.subr.mxu0 %v981
    %1843 = vmatpush1.msra.mxu0 %v980
    %1844 = vmatprep.subr.mxu0 %v985
    %1845 = vmatpush1.msra.mxu0 %v984
    %1846 = vmatprep.subr.mxu0 %v989
    %1847 = vmatpush1.msra.mxu0 %v988
    %1848 = vmatprep.subr.mxu0 %v993
    %1849 = vmatpush1.msra.mxu0 %v992
    %1850 = vmatprep.subr.mxu0 %v997
    %1851 = vmatpush1.msra.mxu0 %v996
    %1852 = vmatprep.subr.mxu0 %v1001
    %1853 = vmatpush1.msra.mxu0 %v1000
    %1854 = vmatprep.subr.mxu0 %v1005
    %1855 = vmatpush1.msra.mxu0 %v1004
    %1856 = vmatprep.subr.mxu0 %v1009
    %1857 = vmatpush1.msra.mxu0 %v1008
    %1858 = vmatprep.subr.mxu0 %v1013
    %1859 = vmatpush1.msra.mxu0 %v1012
    %1860 = vmatprep.subr.mxu0 %v1017
    %1861 = vmatpush1.msra.mxu0 %v1016
    %1862 = vmatprep.subr.mxu0 %v1021
    %1863 = vmatpush1.msra.mxu0 %v1020
    %1864 = vmatprep.subr.mxu0 0.0
    %1865 = vmatpush1.msra.mxu0 0.0
    %1866 = vmatprep.subr.mxu0 0.0
    %1867 = vmatpush1.msra.mxu0 0.0
    %1868 = vmatprep.subr.mxu0 0.0
    %1869 = vmatpush1.msra.mxu0 0.0
    %1870 = vmatprep.subr.mxu0 0.0
    %1871 = vmatpush1.msra.mxu0 0.0
    %1872 = vmatprep.subr.mxu0 0.0
    %1873 = vmatpush1.msra.mxu0 0.0
    %1874 = vmatprep.subr.mxu0 0.0
    %1875 = vmatpush1.msra.mxu0 0.0
    %1876 = vmatprep.subr.mxu0 0.0
    %1877 = vmatpush1.msra.mxu0 0.0
    %1878 = vmatprep.subr.mxu0 0.0
    %1879 = vmatpush1.msra.mxu0 0.0
    %1880 = vmatprep.subr.mxu0 0.0
    %1881 = vmatpush1.msra.mxu0 0.0
    %1882 = vmatprep.subr.mxu0 0.0
    %1883 = vmatpush1.msra.mxu0 0.0
    %1884 = vmatprep.subr.mxu0 0.0
    %1885 = vmatpush1.msra.mxu0 0.0
    %1886 = vmatprep.subr.mxu0 0.0
    %1887 = vmatpush1.msra.mxu0 0.0
    %1888 = vmatprep.subr.mxu0 0.0
    %1889 = vmatpush1.msra.mxu0 0.0
    %1890 = vmatprep.subr.mxu0 0.0
    %1891 = vmatpush1.msra.mxu0 0.0
    %1892 = vmatprep.subr.mxu0 0.0
    %1893 = vmatpush1.msra.mxu0 0.0
    %1894 = vmatprep.subr.mxu0 0.0
    %1895 = vmatpush1.msra.mxu0 0.0
    %1896 = vmatprep.mubr.f32.mxu0 0.0
    %1897 = vmatmul.mubr.f32.gmra.mrb[0].mxu0 %v1759
    %v1898 = vpop.f32.mrb[0].mxu0
    %v1899 = vadd.f32 0.0, %v1898
    %v1900 = vpop.f32.mrb[0].mxu0
    %v1901 = vadd.f32 0.0, %v1900
    %1902 = vdwg.mxu0
    %v1907 = vrot.slane %v1828, 4
    %v1908 = vrot.slane %v1830, 4
    %v1909 = vrot.slane %v1899, 4
    %v1910 = vrot.slane %v1901, 4
    %v1911 = vrot.slane %v1828, 5
    %v1912 = vrot.slane %v1830, 5
    %v1913 = vrot.slane %v1899, 5
    %v1914 = vrot.slane %v1901, 5
    %v1923 = vadd.f32 %v717, %v1907
    %v1924 = vadd.f32 %v719, %v1908
    %v1925 = vadd.f32 %v948, %v1909
    %v1926 = vadd.f32 %v950, %v1910
    %v1927 = vadd.f32 %v723, %v1911
    %v1928 = vadd.f32 %v725, %v1912
    %v1929 = vadd.f32 %v954, %v1913
    %v1930 = vadd.f32 %v956, %v1914
    %v1931 = vxor.u32 %v1923, 2147483648
    %v1932 = vxor.u32 %v1927, 2147483648
    %v1933 = vmul.f32 %v1931, 1.442695
    %v1934 = vpow.pop %v1933
    %v1935 = vmul.f32 %v1932, 1.442695
    %v1936 = vpow.pop %v1935
    %v1937 = vadd.f32 %v1934, 1.0
    %v1938 = vadd.f32 %v1936, 1.0
    %v1939 = vrcp.pop %v1937
    %v1940 = vmul.f32 1.0, %v1939
    %v1941 = vrcp.pop %v1938
    %v1942 = vmul.f32 1.0, %v1941
    %v1943 = vxor.u32 %v1924, 2147483648
    %v1944 = vxor.u32 %v1928, 2147483648
    %v1945 = vmul.f32 %v1943, 1.442695
    %v1946 = vpow.pop %v1945
    %v1947 = vmul.f32 %v1944, 1.442695
    %v1948 = vpow.pop %v1947
    %v1949 = vadd.f32 %v1946, 1.0
    %v1950 = vadd.f32 %v1948, 1.0
    %v1951 = vrcp.pop %v1949
    %v1952 = vmul.f32 1.0, %v1951
    %v1953 = vrcp.pop %v1950
    %v1954 = vmul.f32 1.0, %v1953
    %v1955 = vtanh.pop %v1925
    %v1956 = vtanh.pop %v1929
    %v1957 = vxor.u32 %v1926, 2147483648
    %v1958 = vxor.u32 %v1930, 2147483648
    %v1959 = vmul.f32 %v1957, 1.442695
    %v1960 = vpow.pop %v1959
    %v1961 = vmul.f32 %v1958, 1.442695
    %v1962 = vpow.pop %v1961
    %v1963 = vadd.f32 %v1960, 1.0
    %v1964 = vadd.f32 %v1962, 1.0
    %v1965 = vrcp.pop %v1963
    %v1966 = vmul.f32 1.0, %v1965
    %v1967 = vrcp.pop %v1964
    %v1968 = vmul.f32 1.0, %v1967
    %v1971 = vrot.slane %v1749, 7
    %v1972 = vrot.slane %v1750, 7
    %v1975 = vmul.f32 %v1952, %v1971
    %v1976 = vmul.f32 %v1954, %v1972
    %v1977 = vmul.f32 %v1940, %v1955
    %v1978 = vmul.f32 %v1942, %v1956
    %v1979 = vadd.f32 %v1975, %v1977
    %v1980 = vadd.f32 %v1976, %v1978
    %v1981 = vtanh.pop %v1979
    %v1982 = vtanh.pop %v1980
    %v1983 = vmul.f32 %v1966, %v1981
    %v1984 = vmul.f32 %v1968, %v1982
    %v1987 = vrot.slane %v1983, 4
    %v1988 = vrot.slane %v1984, 3
    %v1989 = vsel %vm1073, %v1988, %v1987
    %1991 = vmatprep.subr.mxu0 %v959
    %1992 = vmatpush1.msra.mxu0 %v958
    %1993 = vmatprep.subr.mxu0 %v963
    %1994 = vmatpush1.msra.mxu0 %v962
    %1995 = vmatprep.subr.mxu0 %v967
    %1996 = vmatpush1.msra.mxu0 %v966
    %1997 = vmatprep.subr.mxu0 %v971
    %1998 = vmatpush1.msra.mxu0 %v970
    %1999 = vmatprep.subr.mxu0 %v975
    %2000 = vmatpush1.msra.mxu0 %v974
    %2001 = vmatprep.subr.mxu0 %v979
    %2002 = vmatpush1.msra.mxu0 %v978
    %2003 = vmatprep.subr.mxu0 %v983
    %2004 = vmatpush1.msra.mxu0 %v982
    %2005 = vmatprep.subr.mxu0 %v987
    %2006 = vmatpush1.msra.mxu0 %v986
    %2007 = vmatprep.subr.mxu0 %v991
    %2008 = vmatpush1.msra.mxu0 %v990
    %2009 = vmatprep.subr.mxu0 %v995
    %2010 = vmatpush1.msra.mxu0 %v994
    %2011 = vmatprep.subr.mxu0 %v999
    %2012 = vmatpush1.msra.mxu0 %v998
    %2013 = vmatprep.subr.mxu0 %v1003
    %2014 = vmatpush1.msra.mxu0 %v1002
    %2015 = vmatprep.subr.mxu0 %v1007
    %2016 = vmatpush1.msra.mxu0 %v1006
    %2017 = vmatprep.subr.mxu0 %v1011
    %2018 = vmatpush1.msra.mxu0 %v1010
    %2019 = vmatprep.subr.mxu0 %v1015
    %2020 = vmatpush1.msra.mxu0 %v1014
    %2021 = vmatprep.subr.mxu0 %v1019
    %2022 = vmatpush1.msra.mxu0 %v1018
    %2023 = vmatprep.subr.mxu0 0.0
    %2024 = vmatpush1.msra.mxu0 0.0
    %2025 = vmatprep.subr.mxu0 0.0
    %2026 = vmatpush1.msra.mxu0 0.0
    %2027 = vmatprep.subr.mxu0 0.0
    %2028 = vmatpush1.msra.mxu0 0.0
    %2029 = vmatprep.subr.mxu0 0.0
    %2030 = vmatpush1.msra.mxu0 0.0
    %2031 = vmatprep.subr.mxu0 0.0
    %2032 = vmatpush1.msra.mxu0 0.0
    %2033 = vmatprep.subr.mxu0 0.0
    %2034 = vmatpush1.msra.mxu0 0.0
    %2035 = vmatprep.subr.mxu0 0.0
    %2036 = vmatpush1.msra.mxu0 0.0
    %2037 = vmatprep.subr.mxu0 0.0
    %2038 = vmatpush1.msra.mxu0 0.0
    %2039 = vmatprep.subr.mxu0 0.0
    %2040 = vmatpush1.msra.mxu0 0.0
    %2041 = vmatprep.subr.mxu0 0.0
    %2042 = vmatpush1.msra.mxu0 0.0
    %2043 = vmatprep.subr.mxu0 0.0
    %2044 = vmatpush1.msra.mxu0 0.0
    %2045 = vmatprep.subr.mxu0 0.0
    %2046 = vmatpush1.msra.mxu0 0.0
    %2047 = vmatprep.subr.mxu0 0.0
    %2048 = vmatpush1.msra.mxu0 0.0
    %2049 = vmatprep.subr.mxu0 0.0
    %2050 = vmatpush1.msra.mxu0 0.0
    %2051 = vmatprep.subr.mxu0 0.0
    %2052 = vmatpush1.msra.mxu0 0.0
    %2053 = vmatprep.subr.mxu0 0.0
    %2054 = vmatpush1.msra.mxu0 0.0
    %2055 = vmatprep.mubr.f32.mxu0 0.0
    %2056 = vmatmul.mubr.f32.gmra.mrb[0].mxu0 %v1989
    %v2057 = vpop.f32.mrb[0].mxu0
    %v2058 = vadd.f32 0.0, %v2057
    %v2059 = vpop.f32.mrb[0].mxu0
    %v2060 = vadd.f32 0.0, %v2059
    %2061 = vdwg.mxu0
    %2062 = vmatprep.subr.mxu0 %v961
    %2063 = vmatpush1.msra.mxu0 %v960
    %2064 = vmatprep.subr.mxu0 %v965
    %2065 = vmatpush1.msra.mxu0 %v964
    %2066 = vmatprep.subr.mxu0 %v969
    %2067 = vmatpush1.msra.mxu0 %v968
    %2068 = vmatprep.subr.mxu0 %v973
    %2069 = vmatpush1.msra.mxu0 %v972
    %2070 = vmatprep.subr.mxu0 %v977
    %2071 = vmatpush1.msra.mxu0 %v976
    %2072 = vmatprep.subr.mxu0 %v981
    %2073 = vmatpush1.msra.mxu0 %v980
    %2074 = vmatprep.subr.mxu0 %v985
    %2075 = vmatpush1.msra.mxu0 %v984
    %2076 = vmatprep.subr.mxu0 %v989
    %2077 = vmatpush1.msra.mxu0 %v988
    %2078 = vmatprep.subr.mxu0 %v993
    %2079 = vmatpush1.msra.mxu0 %v992
    %2080 = vmatprep.subr.mxu0 %v997
    %2081 = vmatpush1.msra.mxu0 %v996
    %2082 = vmatprep.subr.mxu0 %v1001
    %2083 = vmatpush1.msra.mxu0 %v1000
    %2084 = vmatprep.subr.mxu0 %v1005
    %2085 = vmatpush1.msra.mxu0 %v1004
    %2086 = vmatprep.subr.mxu0 %v1009
    %2087 = vmatpush1.msra.mxu0 %v1008
    %2088 = vmatprep.subr.mxu0 %v1013
    %2089 = vmatpush1.msra.mxu0 %v1012
    %2090 = vmatprep.subr.mxu0 %v1017
    %2091 = vmatpush1.msra.mxu0 %v1016
    %2092 = vmatprep.subr.mxu0 %v1021
    %2093 = vmatpush1.msra.mxu0 %v1020
    %2094 = vmatprep.subr.mxu0 0.0
    %2095 = vmatpush1.msra.mxu0 0.0
    %2096 = vmatprep.subr.mxu0 0.0
    %2097 = vmatpush1.msra.mxu0 0.0
    %2098 = vmatprep.subr.mxu0 0.0
    %2099 = vmatpush1.msra.mxu0 0.0
    %2100 = vmatprep.subr.mxu0 0.0
    %2101 = vmatpush1.msra.mxu0 0.0
    %2102 = vmatprep.subr.mxu0 0.0
    %2103 = vmatpush1.msra.mxu0 0.0
    %2104 = vmatprep.subr.mxu0 0.0
    %2105 = vmatpush1.msra.mxu0 0.0
    %2106 = vmatprep.subr.mxu0 0.0
    %2107 = vmatpush1.msra.mxu0 0.0
    %2108 = vmatprep.subr.mxu0 0.0
    %2109 = vmatpush1.msra.mxu0 0.0
    %2110 = vmatprep.subr.mxu0 0.0
    %2111 = vmatpush1.msra.mxu0 0.0
    %2112 = vmatprep.subr.mxu0 0.0
    %2113 = vmatpush1.msra.mxu0 0.0
    %2114 = vmatprep.subr.mxu0 0.0
    %2115 = vmatpush1.msra.mxu0 0.0
    %2116 = vmatprep.subr.mxu0 0.0
    %2117 = vmatpush1.msra.mxu0 0.0
    %2118 = vmatprep.subr.mxu0 0.0
    %2119 = vmatpush1.msra.mxu0 0.0
    %2120 = vmatprep.subr.mxu0 0.0
    %2121 = vmatpush1.msra.mxu0 0.0
    %2122 = vmatprep.subr.mxu0 0.0
    %2123 = vmatpush1.msra.mxu0 0.0
    %2124 = vmatprep.subr.mxu0 0.0
    %2125 = vmatpush1.msra.mxu0 0.0
    %2126 = vmatprep.mubr.f32.mxu0 0.0
    %2127 = vmatmul.mubr.f32.gmra.mrb[0].mxu0 %v1989
    %v2128 = vpop.f32.mrb[0].mxu0
    %v2129 = vadd.f32 0.0, %v2128
    %v2130 = vpop.f32.mrb[0].mxu0
    %v2131 = vadd.f32 0.0, %v2130
    %2132 = vdwg.mxu0
    %v2137 = vrot.slane %v2058, 3
    %v2138 = vrot.slane %v2060, 3
    %v2139 = vrot.slane %v2129, 3
    %v2140 = vrot.slane %v2131, 3
    %v2141 = vrot.slane %v2058, 4
    %v2142 = vrot.slane %v2060, 4
    %v2143 = vrot.slane %v2129, 4
    %v2144 = vrot.slane %v2131, 4
    %v2153 = vadd.f32 %v717, %v2137
    %v2154 = vadd.f32 %v719, %v2138
    %v2155 = vadd.f32 %v948, %v2139
    %v2156 = vadd.f32 %v950, %v2140
    %v2157 = vadd.f32 %v723, %v2141
    %v2158 = vadd.f32 %v725, %v2142
    %v2159 = vadd.f32 %v954, %v2143
    %v2160 = vadd.f32 %v956, %v2144
    %v2161 = vxor.u32 %v2153, 2147483648
    %v2162 = vxor.u32 %v2157, 2147483648
    %v2163 = vmul.f32 %v2161, 1.442695
    %v2164 = vpow.pop %v2163
    %v2165 = vmul.f32 %v2162, 1.442695
    %v2166 = vpow.pop %v2165
    %v2167 = vadd.f32 %v2164, 1.0
    %v2168 = vadd.f32 %v2166, 1.0
    %v2169 = vrcp.pop %v2167
    %v2170 = vmul.f32 1.0, %v2169
    %v2171 = vrcp.pop %v2168
    %v2172 = vmul.f32 1.0, %v2171
    %v2173 = vxor.u32 %v2154, 2147483648
    %v2174 = vxor.u32 %v2158, 2147483648
    %v2175 = vmul.f32 %v2173, 1.442695
    %v2176 = vpow.pop %v2175
    %v2177 = vmul.f32 %v2174, 1.442695
    %v2178 = vpow.pop %v2177
    %v2179 = vadd.f32 %v2176, 1.0
    %v2180 = vadd.f32 %v2178, 1.0
    %v2181 = vrcp.pop %v2179
    %v2182 = vmul.f32 1.0, %v2181
    %v2183 = vrcp.pop %v2180
    %v2184 = vmul.f32 1.0, %v2183
    %v2185 = vtanh.pop %v2155
    %v2186 = vtanh.pop %v2159
    %v2187 = vxor.u32 %v2156, 2147483648
    %v2188 = vxor.u32 %v2160, 2147483648
    %v2189 = vmul.f32 %v2187, 1.442695
    %v2190 = vpow.pop %v2189
    %v2191 = vmul.f32 %v2188, 1.442695
    %v2192 = vpow.pop %v2191
    %v2193 = vadd.f32 %v2190, 1.0
    %v2194 = vadd.f32 %v2192, 1.0
    %v2195 = vrcp.pop %v2193
    %v2196 = vmul.f32 1.0, %v2195
    %v2197 = vrcp.pop %v2194
    %v2198 = vmul.f32 1.0, %v2197
    %v2201 = vrot.slane %v1979, 7
    %v2202 = vrot.slane %v1980, 7
    %v2205 = vmul.f32 %v2182, %v2201
    %v2206 = vmul.f32 %v2184, %v2202
    %v2207 = vmul.f32 %v2170, %v2185
    %v2208 = vmul.f32 %v2172, %v2186
    %v2209 = vadd.f32 %v2205, %v2207
    %v2210 = vadd.f32 %v2206, %v2208
    %v2211 = vtanh.pop %v2209
    %v2212 = vtanh.pop %v2210
    %v2213 = vmul.f32 %v2196, %v2211
    %v2214 = vmul.f32 %v2198, %v2212
    %v2217 = vrot.slane %v2213, 5
    %v2218 = vrot.slane %v2214, 4
    %v2219 = vsel %vm1073, %v2218, %v2217
    %2221 = vmatprep.subr.mxu0 %v959
    %2222 = vmatpush1.msra.mxu0 %v958
    %2223 = vmatprep.subr.mxu0 %v963
    %2224 = vmatpush1.msra.mxu0 %v962
    %2225 = vmatprep.subr.mxu0 %v967
    %2226 = vmatpush1.msra.mxu0 %v966
    %2227 = vmatprep.subr.mxu0 %v971
    %2228 = vmatpush1.msra.mxu0 %v970
    %2229 = vmatprep.subr.mxu0 %v975
    %2230 = vmatpush1.msra.mxu0 %v974
    %2231 = vmatprep.subr.mxu0 %v979
    %2232 = vmatpush1.msra.mxu0 %v978
    %2233 = vmatprep.subr.mxu0 %v983
    %2234 = vmatpush1.msra.mxu0 %v982
    %2235 = vmatprep.subr.mxu0 %v987
    %2236 = vmatpush1.msra.mxu0 %v986
    %2237 = vmatprep.subr.mxu0 %v991
    %2238 = vmatpush1.msra.mxu0 %v990
    %2239 = vmatprep.subr.mxu0 %v995
    %2240 = vmatpush1.msra.mxu0 %v994
    %2241 = vmatprep.subr.mxu0 %v999
    %2242 = vmatpush1.msra.mxu0 %v998
    %2243 = vmatprep.subr.mxu0 %v1003
    %2244 = vmatpush1.msra.mxu0 %v1002
    %2245 = vmatprep.subr.mxu0 %v1007
    %2246 = vmatpush1.msra.mxu0 %v1006
    %2247 = vmatprep.subr.mxu0 %v1011
    %2248 = vmatpush1.msra.mxu0 %v1010
    %2249 = vmatprep.subr.mxu0 %v1015
    %2250 = vmatpush1.msra.mxu0 %v1014
    %2251 = vmatprep.subr.mxu0 %v1019
    %2252 = vmatpush1.msra.mxu0 %v1018
    %2253 = vmatprep.subr.mxu0 0.0
    %2254 = vmatpush1.msra.mxu0 0.0
    %2255 = vmatprep.subr.mxu0 0.0
    %2256 = vmatpush1.msra.mxu0 0.0
    %2257 = vmatprep.subr.mxu0 0.0
    %2258 = vmatpush1.msra.mxu0 0.0
    %2259 = vmatprep.subr.mxu0 0.0
    %2260 = vmatpush1.msra.mxu0 0.0
    %2261 = vmatprep.subr.mxu0 0.0
    %2262 = vmatpush1.msra.mxu0 0.0
    %2263 = vmatprep.subr.mxu0 0.0
    %2264 = vmatpush1.msra.mxu0 0.0
    %2265 = vmatprep.subr.mxu0 0.0
    %2266 = vmatpush1.msra.mxu0 0.0
    %2267 = vmatprep.subr.mxu0 0.0
    %2268 = vmatpush1.msra.mxu0 0.0
    %2269 = vmatprep.subr.mxu0 0.0
    %2270 = vmatpush1.msra.mxu0 0.0
    %2271 = vmatprep.subr.mxu0 0.0
    %2272 = vmatpush1.msra.mxu0 0.0
    %2273 = vmatprep.subr.mxu0 0.0
    %2274 = vmatpush1.msra.mxu0 0.0
    %2275 = vmatprep.subr.mxu0 0.0
    %2276 = vmatpush1.msra.mxu0 0.0
    %2277 = vmatprep.subr.mxu0 0.0
    %2278 = vmatpush1.msra.mxu0 0.0
    %2279 = vmatprep.subr.mxu0 0.0
    %2280 = vmatpush1.msra.mxu0 0.0
    %2281 = vmatprep.subr.mxu0 0.0
    %2282 = vmatpush1.msra.mxu0 0.0
    %2283 = vmatprep.subr.mxu0 0.0
    %2284 = vmatpush1.msra.mxu0 0.0
    %2285 = vmatprep.mubr.f32.mxu0 0.0
    %2286 = vmatmul.mubr.f32.gmra.mrb[0].mxu0 %v2219
    %v2287 = vpop.f32.mrb[0].mxu0
    %v2288 = vadd.f32 0.0, %v2287
    %v2289 = vpop.f32.mrb[0].mxu0
    %v2290 = vadd.f32 0.0, %v2289
    %2291 = vdwg.mxu0
    %2292 = vmatprep.subr.mxu0 %v961
    %2293 = vmatpush1.msra.mxu0 %v960
    %2294 = vmatprep.subr.mxu0 %v965
    %2295 = vmatpush1.msra.mxu0 %v964
    %2296 = vmatprep.subr.mxu0 %v969
    %2297 = vmatpush1.msra.mxu0 %v968
    %2298 = vmatprep.subr.mxu0 %v973
    %2299 = vmatpush1.msra.mxu0 %v972
    %2300 = vmatprep.subr.mxu0 %v977
    %2301 = vmatpush1.msra.mxu0 %v976
    %2302 = vmatprep.subr.mxu0 %v981
    %2303 = vmatpush1.msra.mxu0 %v980
    %2304 = vmatprep.subr.mxu0 %v985
    %2305 = vmatpush1.msra.mxu0 %v984
    %2306 = vmatprep.subr.mxu0 %v989
    %2307 = vmatpush1.msra.mxu0 %v988
    %2308 = vmatprep.subr.mxu0 %v993
    %2309 = vmatpush1.msra.mxu0 %v992
    %2310 = vmatprep.subr.mxu0 %v997
    %2311 = vmatpush1.msra.mxu0 %v996
    %2312 = vmatprep.subr.mxu0 %v1001
    %2313 = vmatpush1.msra.mxu0 %v1000
    %2314 = vmatprep.subr.mxu0 %v1005
    %2315 = vmatpush1.msra.mxu0 %v1004
    %2316 = vmatprep.subr.mxu0 %v1009
    %2317 = vmatpush1.msra.mxu0 %v1008
    %2318 = vmatprep.subr.mxu0 %v1013
    %2319 = vmatpush1.msra.mxu0 %v1012
    %2320 = vmatprep.subr.mxu0 %v1017
    %2321 = vmatpush1.msra.mxu0 %v1016
    %2322 = vmatprep.subr.mxu0 %v1021
    %2323 = vmatpush1.msra.mxu0 %v1020
    %2324 = vmatprep.subr.mxu0 0.0
    %2325 = vmatpush1.msra.mxu0 0.0
    %2326 = vmatprep.subr.mxu0 0.0
    %2327 = vmatpush1.msra.mxu0 0.0
    %2328 = vmatprep.subr.mxu0 0.0
    %2329 = vmatpush1.msra.mxu0 0.0
    %2330 = vmatprep.subr.mxu0 0.0
    %2331 = vmatpush1.msra.mxu0 0.0
    %2332 = vmatprep.subr.mxu0 0.0
    %2333 = vmatpush1.msra.mxu0 0.0
    %2334 = vmatprep.subr.mxu0 0.0
    %2335 = vmatpush1.msra.mxu0 0.0
    %2336 = vmatprep.subr.mxu0 0.0
    %2337 = vmatpush1.msra.mxu0 0.0
    %2338 = vmatprep.subr.mxu0 0.0
    %2339 = vmatpush1.msra.mxu0 0.0
    %2340 = vmatprep.subr.mxu0 0.0
    %2341 = vmatpush1.msra.mxu0 0.0
    %2342 = vmatprep.subr.mxu0 0.0
    %2343 = vmatpush1.msra.mxu0 0.0
    %2344 = vmatprep.subr.mxu0 0.0
    %2345 = vmatpush1.msra.mxu0 0.0
    %2346 = vmatprep.subr.mxu0 0.0
    %2347 = vmatpush1.msra.mxu0 0.0
    %2348 = vmatprep.subr.mxu0 0.0
    %2349 = vmatpush1.msra.mxu0 0.0
    %2350 = vmatprep.subr.mxu0 0.0
    %2351 = vmatpush1.msra.mxu0 0.0
    %2352 = vmatprep.subr.mxu0 0.0
    %2353 = vmatpush1.msra.mxu0 0.0
    %2354 = vmatprep.subr.mxu0 0.0
    %2355 = vmatpush1.msra.mxu0 0.0
    %2356 = vmatprep.mubr.f32.mxu0 0.0
    %2357 = vmatmul.mubr.f32.gmra.mrb[0].mxu0 %v2219
    %v2358 = vpop.f32.mrb[0].mxu0
    %v2359 = vadd.f32 0.0, %v2358
    %v2360 = vpop.f32.mrb[0].mxu0
    %v2361 = vadd.f32 0.0, %v2360
    %2362 = vdwg.mxu0
    %v2367 = vrot.slane %v2288, 2
    %v2368 = vrot.slane %v2290, 2
    %v2369 = vrot.slane %v2359, 2
    %v2370 = vrot.slane %v2361, 2
    %v2371 = vrot.slane %v2288, 3
    %v2372 = vrot.slane %v2290, 3
    %v2373 = vrot.slane %v2359, 3
    %v2374 = vrot.slane %v2361, 3
    %v2383 = vadd.f32 %v717, %v2367
    %v2384 = vadd.f32 %v719, %v2368
    %v2385 = vadd.f32 %v948, %v2369
    %v2386 = vadd.f32 %v950, %v2370
    %v2387 = vadd.f32 %v723, %v2371
    %v2388 = vadd.f32 %v725, %v2372
    %v2389 = vadd.f32 %v954, %v2373
    %v2390 = vadd.f32 %v956, %v2374
    %v2391 = vxor.u32 %v2383, 2147483648
    %v2392 = vxor.u32 %v2387, 2147483648
    %v2393 = vmul.f32 %v2391, 1.442695
    %v2394 = vpow.pop %v2393
    %v2395 = vmul.f32 %v2392, 1.442695
    %v2396 = vpow.pop %v2395
    %v2397 = vadd.f32 %v2394, 1.0
    %v2398 = vadd.f32 %v2396, 1.0
    %v2399 = vrcp.pop %v2397
    %v2400 = vmul.f32 1.0, %v2399
    %v2401 = vrcp.pop %v2398
    %v2402 = vmul.f32 1.0, %v2401
    %v2403 = vxor.u32 %v2384, 2147483648
    %v2404 = vxor.u32 %v2388, 2147483648
    %v2405 = vmul.f32 %v2403, 1.442695
    %v2406 = vpow.pop %v2405
    %v2407 = vmul.f32 %v2404, 1.442695
    %v2408 = vpow.pop %v2407
    %v2409 = vadd.f32 %v2406, 1.0
    %v2410 = vadd.f32 %v2408, 1.0
    %v2411 = vrcp.pop %v2409
    %v2412 = vmul.f32 1.0, %v2411
    %v2413 = vrcp.pop %v2410
    %v2414 = vmul.f32 1.0, %v2413
    %v2415 = vtanh.pop %v2385
    %v2416 = vtanh.pop %v2389
    %v2417 = vxor.u32 %v2386, 2147483648
    %v2418 = vxor.u32 %v2390, 2147483648
    %v2419 = vmul.f32 %v2417, 1.442695
    %v2420 = vpow.pop %v2419
    %v2421 = vmul.f32 %v2418, 1.442695
    %v2422 = vpow.pop %v2421
    %v2423 = vadd.f32 %v2420, 1.0
    %v2424 = vadd.f32 %v2422, 1.0
    %v2425 = vrcp.pop %v2423
    %v2426 = vmul.f32 1.0, %v2425
    %v2427 = vrcp.pop %v2424
    %v2428 = vmul.f32 1.0, %v2427
    %v2431 = vrot.slane %v2209, 7
    %v2432 = vrot.slane %v2210, 7
    %v2435 = vmul.f32 %v2412, %v2431
    %v2436 = vmul.f32 %v2414, %v2432
    %v2437 = vmul.f32 %v2400, %v2415
    %v2438 = vmul.f32 %v2402, %v2416
    %v2439 = vadd.f32 %v2435, %v2437
    %v2440 = vadd.f32 %v2436, %v2438
    %v2441 = vtanh.pop %v2439
    %v2442 = vtanh.pop %v2440
    %v2443 = vmul.f32 %v2426, %v2441
    %v2444 = vmul.f32 %v2428, %v2442
    %v2447 = vrot.slane %v2443, 6
    %v2448 = vrot.slane %v2444, 5
    %v2449 = vsel %vm1073, %v2448, %v2447
    %2451 = vmatprep.subr.mxu0 %v959
    %2452 = vmatpush1.msra.mxu0 %v958
    %2453 = vmatprep.subr.mxu0 %v963
    %2454 = vmatpush1.msra.mxu0 %v962
    %2455 = vmatprep.subr.mxu0 %v967
    %2456 = vmatpush1.msra.mxu0 %v966
    %2457 = vmatprep.subr.mxu0 %v971
    %2458 = vmatpush1.msra.mxu0 %v970
    %2459 = vmatprep.subr.mxu0 %v975
    %2460 = vmatpush1.msra.mxu0 %v974
    %2461 = vmatprep.subr.mxu0 %v979
    %2462 = vmatpush1.msra.mxu0 %v978
    %2463 = vmatprep.subr.mxu0 %v983
    %2464 = vmatpush1.msra.mxu0 %v982
    %2465 = vmatprep.subr.mxu0 %v987
    %2466 = vmatpush1.msra.mxu0 %v986
    %2467 = vmatprep.subr.mxu0 %v991
    %2468 = vmatpush1.msra.mxu0 %v990
    %2469 = vmatprep.subr.mxu0 %v995
    %2470 = vmatpush1.msra.mxu0 %v994
    %2471 = vmatprep.subr.mxu0 %v999
    %2472 = vmatpush1.msra.mxu0 %v998
    %2473 = vmatprep.subr.mxu0 %v1003
    %2474 = vmatpush1.msra.mxu0 %v1002
    %2475 = vmatprep.subr.mxu0 %v1007
    %2476 = vmatpush1.msra.mxu0 %v1006
    %2477 = vmatprep.subr.mxu0 %v1011
    %2478 = vmatpush1.msra.mxu0 %v1010
    %2479 = vmatprep.subr.mxu0 %v1015
    %2480 = vmatpush1.msra.mxu0 %v1014
    %2481 = vmatprep.subr.mxu0 %v1019
    %2482 = vmatpush1.msra.mxu0 %v1018
    %2483 = vmatprep.subr.mxu0 0.0
    %2484 = vmatpush1.msra.mxu0 0.0
    %2485 = vmatprep.subr.mxu0 0.0
    %2486 = vmatpush1.msra.mxu0 0.0
    %2487 = vmatprep.subr.mxu0 0.0
    %2488 = vmatpush1.msra.mxu0 0.0
    %2489 = vmatprep.subr.mxu0 0.0
    %2490 = vmatpush1.msra.mxu0 0.0
    %2491 = vmatprep.subr.mxu0 0.0
    %2492 = vmatpush1.msra.mxu0 0.0
    %2493 = vmatprep.subr.mxu0 0.0
    %2494 = vmatpush1.msra.mxu0 0.0
    %2495 = vmatprep.subr.mxu0 0.0
    %2496 = vmatpush1.msra.mxu0 0.0
    %2497 = vmatprep.subr.mxu0 0.0
    %2498 = vmatpush1.msra.mxu0 0.0
    %2499 = vmatprep.subr.mxu0 0.0
    %2500 = vmatpush1.msra.mxu0 0.0
    %2501 = vmatprep.subr.mxu0 0.0
    %2502 = vmatpush1.msra.mxu0 0.0
    %2503 = vmatprep.subr.mxu0 0.0
    %2504 = vmatpush1.msra.mxu0 0.0
    %2505 = vmatprep.subr.mxu0 0.0
    %2506 = vmatpush1.msra.mxu0 0.0
    %2507 = vmatprep.subr.mxu0 0.0
    %2508 = vmatpush1.msra.mxu0 0.0
    %2509 = vmatprep.subr.mxu0 0.0
    %2510 = vmatpush1.msra.mxu0 0.0
    %2511 = vmatprep.subr.mxu0 0.0
    %2512 = vmatpush1.msra.mxu0 0.0
    %2513 = vmatprep.subr.mxu0 0.0
    %2514 = vmatpush1.msra.mxu0 0.0
    %2515 = vmatprep.mubr.f32.mxu0 0.0
    %2516 = vmatmul.mubr.f32.gmra.mrb[0].mxu0 %v2449
    %v2517 = vpop.f32.mrb[0].mxu0
    %v2518 = vadd.f32 0.0, %v2517
    %v2519 = vpop.f32.mrb[0].mxu0
    %v2520 = vadd.f32 0.0, %v2519
    %2521 = vdwg.mxu0
    %2522 = vmatprep.subr.mxu0 %v961
    %2523 = vmatpush1.msra.mxu0 %v960
    %2524 = vmatprep.subr.mxu0 %v965
    %2525 = vmatpush1.msra.mxu0 %v964
    %2526 = vmatprep.subr.mxu0 %v969
    %2527 = vmatpush1.msra.mxu0 %v968
    %2528 = vmatprep.subr.mxu0 %v973
    %2529 = vmatpush1.msra.mxu0 %v972
    %2530 = vmatprep.subr.mxu0 %v977
    %2531 = vmatpush1.msra.mxu0 %v976
    %2532 = vmatprep.subr.mxu0 %v981
    %2533 = vmatpush1.msra.mxu0 %v980
    %2534 = vmatprep.subr.mxu0 %v985
    %2535 = vmatpush1.msra.mxu0 %v984
    %2536 = vmatprep.subr.mxu0 %v989
    %2537 = vmatpush1.msra.mxu0 %v988
    %2538 = vmatprep.subr.mxu0 %v993
    %2539 = vmatpush1.msra.mxu0 %v992
    %2540 = vmatprep.subr.mxu0 %v997
    %2541 = vmatpush1.msra.mxu0 %v996
    %2542 = vmatprep.subr.mxu0 %v1001
    %2543 = vmatpush1.msra.mxu0 %v1000
    %2544 = vmatprep.subr.mxu0 %v1005
    %2545 = vmatpush1.msra.mxu0 %v1004
    %2546 = vmatprep.subr.mxu0 %v1009
    %2547 = vmatpush1.msra.mxu0 %v1008
    %2548 = vmatprep.subr.mxu0 %v1013
    %2549 = vmatpush1.msra.mxu0 %v1012
    %2550 = vmatprep.subr.mxu0 %v1017
    %2551 = vmatpush1.msra.mxu0 %v1016
    %2552 = vmatprep.subr.mxu0 %v1021
    %2553 = vmatpush1.msra.mxu0 %v1020
    %2554 = vmatprep.subr.mxu0 0.0
    %2555 = vmatpush1.msra.mxu0 0.0
    %2556 = vmatprep.subr.mxu0 0.0
    %2557 = vmatpush1.msra.mxu0 0.0
    %2558 = vmatprep.subr.mxu0 0.0
    %2559 = vmatpush1.msra.mxu0 0.0
    %2560 = vmatprep.subr.mxu0 0.0
    %2561 = vmatpush1.msra.mxu0 0.0
    %2562 = vmatprep.subr.mxu0 0.0
    %2563 = vmatpush1.msra.mxu0 0.0
    %2564 = vmatprep.subr.mxu0 0.0
    %2565 = vmatpush1.msra.mxu0 0.0
    %2566 = vmatprep.subr.mxu0 0.0
    %2567 = vmatpush1.msra.mxu0 0.0
    %2568 = vmatprep.subr.mxu0 0.0
    %2569 = vmatpush1.msra.mxu0 0.0
    %2570 = vmatprep.subr.mxu0 0.0
    %2571 = vmatpush1.msra.mxu0 0.0
    %2572 = vmatprep.subr.mxu0 0.0
    %2573 = vmatpush1.msra.mxu0 0.0
    %2574 = vmatprep.subr.mxu0 0.0
    %2575 = vmatpush1.msra.mxu0 0.0
    %2576 = vmatprep.subr.mxu0 0.0
    %2577 = vmatpush1.msra.mxu0 0.0
    %2578 = vmatprep.subr.mxu0 0.0
    %2579 = vmatpush1.msra.mxu0 0.0
    %2580 = vmatprep.subr.mxu0 0.0
    %2581 = vmatpush1.msra.mxu0 0.0
    %2582 = vmatprep.subr.mxu0 0.0
    %2583 = vmatpush1.msra.mxu0 0.0
    %2584 = vmatprep.subr.mxu0 0.0
    %2585 = vmatpush1.msra.mxu0 0.0
    %2586 = vmatprep.mubr.f32.mxu0 0.0
    %2587 = vmatmul.mubr.f32.gmra.mrb[0].mxu0 %v2449
    %v2588 = vpop.f32.mrb[0].mxu0
    %v2589 = vadd.f32 0.0, %v2588
    %v2590 = vpop.f32.mrb[0].mxu0
    %v2591 = vadd.f32 0.0, %v2590
    %2592 = vdwg.mxu0
    %v2597 = vrot.slane %v2518, 1
    %v2598 = vrot.slane %v2520, 1
    %v2599 = vrot.slane %v2589, 1
    %v2600 = vrot.slane %v2591, 1
    %v2601 = vrot.slane %v2518, 2
    %v2602 = vrot.slane %v2520, 2
    %v2603 = vrot.slane %v2589, 2
    %v2604 = vrot.slane %v2591, 2
    %v2613 = vadd.f32 %v717, %v2597
    %v2614 = vadd.f32 %v719, %v2598
    %v2615 = vadd.f32 %v948, %v2599
    %v2616 = vadd.f32 %v950, %v2600
    %v2617 = vadd.f32 %v723, %v2601
    %v2618 = vadd.f32 %v725, %v2602
    %v2619 = vadd.f32 %v954, %v2603
    %v2620 = vadd.f32 %v956, %v2604
    %v2621 = vxor.u32 %v2613, 2147483648
    %v2622 = vxor.u32 %v2617, 2147483648
    %v2623 = vmul.f32 %v2621, 1.442695
    %v2624 = vpow.pop %v2623
    %v2625 = vmul.f32 %v2622, 1.442695
    %v2626 = vpow.pop %v2625
    %v2627 = vadd.f32 %v2624, 1.0
    %v2628 = vadd.f32 %v2626, 1.0
    %v2629 = vrcp.pop %v2627
    %v2630 = vmul.f32 1.0, %v2629
    %v2631 = vrcp.pop %v2628
    %v2632 = vmul.f32 1.0, %v2631
    %v2633 = vxor.u32 %v2614, 2147483648
    %v2634 = vxor.u32 %v2618, 2147483648
    %v2635 = vmul.f32 %v2633, 1.442695
    %v2636 = vpow.pop %v2635
    %v2637 = vmul.f32 %v2634, 1.442695
    %v2638 = vpow.pop %v2637
    %v2639 = vadd.f32 %v2636, 1.0
    %v2640 = vadd.f32 %v2638, 1.0
    %v2641 = vrcp.pop %v2639
    %v2642 = vmul.f32 1.0, %v2641
    %v2643 = vrcp.pop %v2640
    %v2644 = vmul.f32 1.0, %v2643
    %v2645 = vtanh.pop %v2615
    %v2646 = vtanh.pop %v2619
    %v2647 = vxor.u32 %v2616, 2147483648
    %v2648 = vxor.u32 %v2620, 2147483648
    %v2649 = vmul.f32 %v2647, 1.442695
    %v2650 = vpow.pop %v2649
    %v2651 = vmul.f32 %v2648, 1.442695
    %v2652 = vpow.pop %v2651
    %v2653 = vadd.f32 %v2650, 1.0
    %v2654 = vadd.f32 %v2652, 1.0
    %v2655 = vrcp.pop %v2653
    %v2656 = vmul.f32 1.0, %v2655
    %v2657 = vrcp.pop %v2654
    %v2658 = vmul.f32 1.0, %v2657
    %v2661 = vrot.slane %v2439, 7
    %v2662 = vrot.slane %v2440, 7
    %v2665 = vmul.f32 %v2642, %v2661
    %v2666 = vmul.f32 %v2644, %v2662
    %v2667 = vmul.f32 %v2630, %v2645
    %v2668 = vmul.f32 %v2632, %v2646
    %v2669 = vadd.f32 %v2665, %v2667
    %v2670 = vadd.f32 %v2666, %v2668
    %v2671 = vtanh.pop %v2669
    %v2672 = vtanh.pop %v2670
    %v2673 = vmul.f32 %v2656, %v2671
    %v2674 = vmul.f32 %v2658, %v2672
    %v2675 = vld [vmem:[%s4] sm:$0xff]
    %v2676 = vld [vmem:[%s4 + $0x8] sm:$0xff]
    %v2677 = vld [vmem:[%s4 + $0x10] sm:$0xff]
    %v2678 = vld [vmem:[%s4 + $0x18] sm:$0xff]
    %v2679 = vld [vmem:[%s4 + $0x20] sm:$0xff]
    %v2680 = vld [vmem:[%s4 + $0x28] sm:$0xff]
    %v2681 = vld [vmem:[%s4 + $0x30] sm:$0xff]
    %v2682 = vld [vmem:[%s4 + $0x38] sm:$0xff]
    %v2683 = vld [vmem:[%s4 + $0x40] sm:$0xff]
    %v2684 = vld [vmem:[%s4 + $0x48] sm:$0xff]
    %v2685 = vld [vmem:[%s4 + $0x50] sm:$0xff]
    %v2686 = vld [vmem:[%s4 + $0x58] sm:$0xff]
    %v2687 = vld [vmem:[%s4 + $0x60] sm:$0xff]
    %v2688 = vld [vmem:[%s4 + $0x68] sm:$0xff]
    %v2689 = vld [vmem:[%s4 + $0x70] sm:$0xff]
    %v2690 = vld [vmem:[%s4 + $0x78] sm:$0xff]
    %v2691 = vld [vmem:[#allocation2] sm:$0x1]
    %v2693 = vlaneseq
    %v2694 = vshrl.u32 %v2693, 7
    %v2695 = vsub.s32 0, %v2694
    %v2696 = vrot.slane %v2691, %v2695
    %v2700 = vrot.slane %v2673, 7
    %v2701 = vrot.slane %v2674, 6
    %v2702 = vsel %vm1073, %v2701, %v2700
    %2704 = vmatprep.subr.mxu0 0.0
    %2705 = vmatpush1.msra.mxu0 %v2675
    %2706 = vmatprep.subr.mxu0 0.0
    %2707 = vmatpush1.msra.mxu0 %v2676
    %2708 = vmatprep.subr.mxu0 0.0
    %2709 = vmatpush1.msra.mxu0 %v2677
    %2710 = vmatprep.subr.mxu0 0.0
    %2711 = vmatpush1.msra.mxu0 %v2678
    %2712 = vmatprep.subr.mxu0 0.0
    %2713 = vmatpush1.msra.mxu0 %v2679
    %2714 = vmatprep.subr.mxu0 0.0
    %2715 = vmatpush1.msra.mxu0 %v2680
    %2716 = vmatprep.subr.mxu0 0.0
    %2717 = vmatpush1.msra.mxu0 %v2681
    %2718 = vmatprep.subr.mxu0 0.0
    %2719 = vmatpush1.msra.mxu0 %v2682
    %2720 = vmatprep.subr.mxu0 0.0
    %2721 = vmatpush1.msra.mxu0 %v2683
    %2722 = vmatprep.subr.mxu0 0.0
    %2723 = vmatpush1.msra.mxu0 %v2684
    %2724 = vmatprep.subr.mxu0 0.0
    %2725 = vmatpush1.msra.mxu0 %v2685
    %2726 = vmatprep.subr.mxu0 0.0
    %2727 = vmatpush1.msra.mxu0 %v2686
    %2728 = vmatprep.subr.mxu0 0.0
    %2729 = vmatpush1.msra.mxu0 %v2687
    %2730 = vmatprep.subr.mxu0 0.0
    %2731 = vmatpush1.msra.mxu0 %v2688
    %2732 = vmatprep.subr.mxu0 0.0
    %2733 = vmatpush1.msra.mxu0 %v2689
    %2734 = vmatprep.subr.mxu0 0.0
    %2735 = vmatpush1.msra.mxu0 %v2690
    %2736 = vmatprep.subr.mxu0 0.0
    %2737 = vmatpush1.msra.mxu0 0.0
    %2738 = vmatprep.subr.mxu0 0.0
    %2739 = vmatpush1.msra.mxu0 0.0
    %2740 = vmatprep.subr.mxu0 0.0
    %2741 = vmatpush1.msra.mxu0 0.0
    %2742 = vmatprep.subr.mxu0 0.0
    %2743 = vmatpush1.msra.mxu0 0.0
    %2744 = vmatprep.subr.mxu0 0.0
    %2745 = vmatpush1.msra.mxu0 0.0
    %2746 = vmatprep.subr.mxu0 0.0
    %2747 = vmatpush1.msra.mxu0 0.0
    %2748 = vmatprep.subr.mxu0 0.0
    %2749 = vmatpush1.msra.mxu0 0.0
    %2750 = vmatprep.subr.mxu0 0.0
    %2751 = vmatpush1.msra.mxu0 0.0
    %2752 = vmatprep.subr.mxu0 0.0
    %2753 = vmatpush1.msra.mxu0 0.0
    %2754 = vmatprep.subr.mxu0 0.0
    %2755 = vmatpush1.msra.mxu0 0.0
    %2756 = vmatprep.subr.mxu0 0.0
    %2757 = vmatpush1.msra.mxu0 0.0
    %2758 = vmatprep.subr.mxu0 0.0
    %2759 = vmatpush1.msra.mxu0 0.0
    %2760 = vmatprep.subr.mxu0 0.0
    %2761 = vmatpush1.msra.mxu0 0.0
    %2762 = vmatprep.subr.mxu0 0.0
    %2763 = vmatpush1.msra.mxu0 0.0
    %2764 = vmatprep.subr.mxu0 0.0
    %2765 = vmatpush1.msra.mxu0 0.0
    %2766 = vmatprep.subr.mxu0 0.0
    %2767 = vmatpush1.msra.mxu0 0.0
    %2768 = vmatprep.mubr.f32.mxu0 0.0
    %2769 = vmatmul.mubr.f32.gmra.mrb[0].mxu0 %v2702
    %v2770 = vpop.f32.mrb[0].mxu0
    %v2771 = vadd.f32 %v2696, %v2770
    %v2772 = vpop.f32.mrb[0].mxu0
    %2773 = vdwg.mxu0
    %vm2774 = vcmask 1024
    %2775 = vst.msk [vmem:[%s6] sm:$0x3] %vm2774, %v2771
    // Predicated region
    $region42: #{tpu_custom_call.1} parent=1 // pred_check
      _
    $region43: #{tpu_custom_call.1} parent=1 // pred_check_branch
      %2777 = sbr.rel (0) target = $region45
    $region44: #{tpu_custom_call.1} parent=1 // pred_region
      _
    $region45: #{tpu_custom_call.1} parent=1 // pred_fallthru
      _
    // Predicated region
    $region46: #{tpu_custom_call.1} parent=1 // pred_check
      _
    $region47: #{tpu_custom_call.1} parent=1 // pred_check_branch
      %2779 = sbr.rel (0) target = $region49
    $region48: #{tpu_custom_call.1} parent=1 // pred_region
      _
    $region49: #{tpu_custom_call.1} parent=1 // pred_fallthru
      _
    %2780 = vsyncpa [#allocation4], 1
    %2781 = vsyncpa [#allocation6], 1
    %2782 = vsyncpa [#allocation9], 1

</llo_original>
